<compile_context>
chip_gen: v5e
topology: v5e:2x2
jax: 0.10.0
libtpu: 0.0.40
codegen_flags: <defaults>
</compile_context>

<pallas_src>
import functools

import jax
import jax.numpy as jnp
from jax import lax
from jax.experimental import pallas as pl
from jax.experimental.pallas import tpu as pltpu

KPAD = 128   # conv contraction dim (C*K*K = 75 zero-padded to 128)
OCP = 8      # conv out-channels (6) padded to a sublane group
FCL = 64     # packed FC lane dim (6*10 = 60 zero-padded to 64)


# ----------------------------------------------------------------------------
# Fused Pallas kernel: in-kernel im2col + conv1+conv2 (one matmul) + relu + add
# + single-dot FC, one batch element per grid step.
# ----------------------------------------------------------------------------
def simple_net_kernel(x_ref, w12_ref, b12_ref, wpack_ref, bfc_ref, o_ref,
                      patches_ref, *, K, img_w, oc):
    """One batch element.

    x_ref      : (1, C, HW)      flattened input image, HW = H*W = 1024
    w12_ref    : (2*OCP, KPAD)   [W1; W2] conv weights, row order (tap-major) col = t*C + c
    b12_ref    : (2*OCP, 1)      [b1; b2] biases (pad rows zero)
    wpack_ref  : (HW, FCL)       lane-dense FC weight, Wpack[i*W+j, c*10+o]
    bfc_ref    : (1, FC_OUT)
    o_ref      : (1, 1, FC_OUT)
    patches_ref: (KPAD, HW)      VMEM scratch for the im2col patch matrix
    """
    C = x_ref.shape[1]
    HW = x_ref.shape[2]
    kpad = patches_ref.shape[0]
    ocp = w12_ref.shape[0] // 2
    fc_out = bfc_ref.shape[1]
    ckk = C * K * K

    # ---- in-kernel im2col: patches[t*C + c, p] = x[c, p + s_t], s_t = di*W + dj ----
    # Lane shift via XLU roll. Wraparound values only land in conv columns whose
    # FC weight rows are zero, so they never reach the output.
    x = x_ref[0]                                                  # (C, HW)
    for t in range(K * K):
        di, dj = divmod(t, K)
        s = di * img_w + dj
        shifted = x if s == 0 else pltpu.roll(x, shift=HW - s, axis=1)
        patches_ref[pl.ds(C * t, C), :] = shifted
    # Keep contraction pad rows exactly zero every step (megacore-safe: cannot rely
    # on a program_id==0 init when the batch grid is sharded across TensorCores).
    patches_ref[pl.ds(ckk, kpad - ckk), :] = jnp.zeros((kpad - ckk, HW), jnp.float32)

    # ---- conv1 + conv2 in ONE MXU matmul, then bias + relu per half, then add ----
    zy = jnp.dot(w12_ref[...], patches_ref[...],
                 preferred_element_type=jnp.float32)              # (2*OCP, HW)
    zy = jnp.maximum(zy + b12_ref[...], 0.0)
    o = zy[:ocp, :] + zy[ocp:, :]                                 # (OCP, HW); sublane-8 split is free
    # (pad channel rows 6,7 are relu(0)=0)

    # ---- FC: one MXU dot against the lane-dense packed weight --------------------
    p = jnp.dot(o, wpack_ref[...], preferred_element_type=jnp.float32)   # (OCP, FCL)
    # Block-diagonal extraction: fc[o] = sum_c P[c, c*10 + o]
    lanes = lax.broadcasted_iota(jnp.int32, p.shape, 1)
    chans = lax.broadcasted_iota(jnp.int32, p.shape, 0)
    keep = (chans < oc) & (lanes >= chans * fc_out) & (lanes < (chans + 1) * fc_out)
    v = jnp.sum(jnp.where(keep, p, 0.0), axis=0, keepdims=True)          # (1, FCL)
    acc = bfc_ref[...]                                                   # (1, FC_OUT)
    for c in range(oc):
        acc = acc + v[:, c * fc_out:(c + 1) * fc_out]
    o_ref[0] = acc


# ----------------------------------------------------------------------------
# One-time host-side weight repacking (kept OUT of the per-call forward path)
# ----------------------------------------------------------------------------
def prepare_params(params, input_hw=(32, 32)):
    w1, b1, w2, b2, wfc, bfc = params
    OC, C, K, _ = w1.shape
    FC_OUT = bfc.shape[0]
    H, W = input_hw
    Ho, Wo = H - K + 1, W - K + 1
    CKK = C * K * K

    def pack_conv(w):
        # column order must match the kernel's patch rows: col = t*C + c, t = di*K + dj
        wt = w.transpose(0, 2, 3, 1).reshape(OC, CKK)
        return jnp.pad(wt, ((0, OCP - OC), (0, KPAD - CKK)))

    w12 = jnp.concatenate([pack_conv(w1), pack_conv(w2)], axis=0)        # (16, 128)
    b12 = jnp.concatenate([jnp.pad(b1, (0, OCP - OC)),
                           jnp.pad(b2, (0, OCP - OC))]).reshape(2 * OCP, 1)

    # Lane-dense FC weight: Wpack[i*W + j, c*FC_OUT + o] = wfc[o, c*Ho*Wo + i*Wo + j].
    # Rows at invalid conv columns (j >= Wo or i >= Ho) stay zero, masking out the
    # kernel's garbage conv columns (incl. roll wraparound).
    wp = wfc.reshape(FC_OUT, OC, Ho, Wo).transpose(2, 3, 1, 0)           # (Ho, Wo, OC, FC_OUT)
    wp = jnp.pad(wp, ((0, H - Ho), (0, W - Wo), (0, 0), (0, 0)))         # (H, W, OC, FC_OUT)
    wp = wp.reshape(H * W, OC * FC_OUT)                                  # (1024, 60)
    wp = jnp.pad(wp, ((0, 0), (0, FCL - OC * FC_OUT)))                   # (1024, 64)

    return w12, b12, wp, bfc.reshape(1, FC_OUT)


# ----------------------------------------------------------------------------
# Forward pass (per-call path: just a free reshape + one pallas_call)
# ----------------------------------------------------------------------------
def simple_net_forward(x, packed, *, oc=6, k=5):
    """Pallas implementation of SimpleNet.forward. x: (B, 3, 32, 32) float32."""
    w12, b12, wpack, bfc2 = packed
    B, C, H, W = x.shape
    HW = H * W
    kpad = w12.shape[1]
    oc2p = w12.shape[0]
    fcl = wpack.shape[1]
    fc_out = bfc2.shape[1]

    x2 = x.reshape(B, C, HW)                                             # free metadata reshape

    kernel = functools.partial(simple_net_kernel, K=k, img_w=W, oc=oc)
    out3 = pl.pallas_call(
        kernel,
        out_shape=jax.ShapeDtypeStruct((B, 1, fc_out), jnp.float32),
        grid_spec=pltpu.PrefetchScalarGridSpec(
            num_scalar_prefetch=0,
            grid=(B,),
            in_specs=[
                pl.BlockSpec((1, C, HW), lambda b: (b, 0, 0)),
                pl.BlockSpec((oc2p, kpad), lambda b: (0, 0)),
                pl.BlockSpec((oc2p, 1), lambda b: (0, 0)),
                pl.BlockSpec((HW, fcl), lambda b: (0, 0)),
                pl.BlockSpec((1, fc_out), lambda b: (0, 0)),
            ],
            out_specs=pl.BlockSpec((1, 1, fc_out), lambda b: (b, 0, 0)),
            scratch_shapes=[pltpu.VMEM((kpad, HW), jnp.float32)],
        ),
        compiler_params=pltpu.CompilerParams(
            dimension_semantics=("parallel",)),
    )(x2, w12, b12, wpack, bfc2)                                         # (B, 1, 10)

    return out3.reshape(B, fc_out)


# ----------------------------------------------------------------------------
# Pure-JAX reference (correctness sanity check)
# ----------------------------------------------------------------------------
def simple_net_reference(x, params):
    w1, b1, w2, b2, wfc, bfc = params
    dn = ("NCHW", "OIHW", "NCHW")
    z = lax.conv_general_dilated(x, w1, (1, 1), "VALID", dimension_numbers=dn)
    z = jax.nn.relu(z + b1[None, :, None, None])
    y = lax.conv_general_dilated(x, w2, (1, 1), "VALID", dimension_numbers=dn)
    y = jax.nn.relu(y + b2[None, :, None, None])
    o = z + y
    o = o.reshape(o.shape[0], -1)
    return o @ wfc.T + bfc[None, :]


# ----------------------------------------------------------------------------
# Main
# ----------------------------------------------------------------------------
if __name__ == "__main__":
    key = jax.random.PRNGKey(0)
    k_x, k_w1, k_b1, k_w2, k_b2, k_wfc, k_bfc = jax.random.split(key, 7)

    B, C, H, W = 2, 3, 32, 32       # fc expects 6*28*28 = 4704 -> spatial must be 32
    OC, K = 6, 5
    FC_IN, FC_OUT = OC * (H - K + 1) * (W - K + 1), 10   # 4704, 10

    x = jax.random.normal(k_x, (B, C, H, W), dtype=jnp.float32)

    # Deterministic synthetic parameters (PyTorch shapes: OIHW conv, (out,in) linear)
    w1 = 0.1 * jax.random.normal(k_w1, (OC, C, K, K), dtype=jnp.float32)
    b1 = 0.1 * jax.random.normal(k_b1, (OC,), dtype=jnp.float32)
    w2 = 0.1 * jax.random.normal(k_w2, (OC, C, K, K), dtype=jnp.float32)
    b2 = 0.1 * jax.random.normal(k_b2, (OC,), dtype=jnp.float32)
    wfc = 0.02 * jax.random.normal(k_wfc, (FC_OUT, FC_IN), dtype=jnp.float32)
    bfc = 0.02 * jax.random.normal(k_bfc, (FC_OUT,), dtype=jnp.float32)
    params = (w1, b1, w2, b2, wfc, bfc)

    # One-time weight repacking, outside the per-call forward path.
    packed = prepare_params(params, input_hw=(H, W))

    fwd = jax.jit(simple_net_forward)
    out = jax.block_until_ready(fwd(x, packed))
    assert out.shape == (B, FC_OUT), out.shape

    ref = jax.block_until_ready(simple_net_reference(x, params))
    assert jnp.allclose(out, ref, rtol=1e-4, atol=1e-4), (
        f"max abs err = {jnp.max(jnp.abs(out - ref))}"
    )

    print("KERNEL_OK")
</pallas_src>

<mosaic_0001>
module attributes {stable_mosaic.version = 11 : i64} {
  func.func @simple_net_kernel(%arg0: i32, %arg1: memref<1x3x1024xf32, #tpu.memory_space<vmem>>, %arg2: memref<16x128xf32, #tpu.memory_space<vmem>>, %arg3: memref<16x1xf32, #tpu.memory_space<vmem>>, %arg4: memref<1024x64xf32, #tpu.memory_space<vmem>>, %arg5: memref<1x10xf32, #tpu.memory_space<vmem>>, %arg6: memref<1x1x10xf32, #tpu.memory_space<vmem>>, %arg7: memref<128x1024xf32, #tpu.memory_space<vmem>>) attributes {dimension_semantics = [#tpu.dimension_semantics<parallel>], iteration_bounds = array<i64: 2>, scalar_prefetch = 0 : i64, scratch_operands = 1 : i64, tpu.core_type = #tpu.core_type<tc>, window_params = [{transform_indices = @transform_0, window_bounds = array<i64: 1, 3, 1024>}, {pipeline_mode = #tpu.pipeline_mode<synchronous>, transform_indices = @transform_1, window_bounds = array<i64: 16, 128>}, {pipeline_mode = #tpu.pipeline_mode<synchronous>, transform_indices = @transform_2, window_bounds = array<i64: 16, 1>}, {pipeline_mode = #tpu.pipeline_mode<synchronous>, transform_indices = @transform_3, window_bounds = array<i64: 1024, 64>}, {pipeline_mode = #tpu.pipeline_mode<synchronous>, transform_indices = @transform_4, window_bounds = array<i64: 1, 10>}, {transform_indices = @transform_5, window_bounds = array<i64: 1, 1, 10>}]} {
    %c0 = arith.constant 0 : index
    %c0_0 = arith.constant 0 : index
    %c0_1 = arith.constant 0 : index
    %0 = vector.load %arg1[%c0, %c0_0, %c0_1] : memref<1x3x1024xf32, #tpu.memory_space<vmem>>, vector<1x3x1024xf32>
    %1 = vector.shape_cast %0 : vector<1x3x1024xf32> to vector<3x1024xf32>
    %c0_2 = arith.constant 0 : index
    %c0_3 = arith.constant 0 : index
    %2 = vector.load %arg7[%c0_2, %c0_3] : memref<128x1024xf32, #tpu.memory_space<vmem>>, vector<3x1024xf32>
    tpu.vector_store %arg7[%c0_2, %c0_3], %1 {strides = array<i32>} : memref<128x1024xf32, #tpu.memory_space<vmem>>, vector<3x1024xf32>,
    %c1023_i32 = arith.constant 1023 : i32
    %3 = tpu.dynamic_rotate %1 by %c1023_i32 dim 1 : vector<3x1024xf32>, i32 -> vector<3x1024xf32>
    %c3 = arith.constant 3 : index
    %c0_4 = arith.constant 0 : index
    %4 = vector.load %arg7[%c3, %c0_4] : memref<128x1024xf32, #tpu.memory_space<vmem>>, vector<3x1024xf32>
    tpu.vector_store %arg7[%c3, %c0_4], %3 {strides = array<i32>} : memref<128x1024xf32, #tpu.memory_space<vmem>>, vector<3x1024xf32>,
    %c1022_i32 = arith.constant 1022 : i32
    %5 = tpu.dynamic_rotate %1 by %c1022_i32 dim 1 : vector<3x1024xf32>, i32 -> vector<3x1024xf32>
    %c6 = arith.constant 6 : index
    %c0_5 = arith.constant 0 : index
    %6 = vector.load %arg7[%c6, %c0_5] : memref<128x1024xf32, #tpu.memory_space<vmem>>, vector<3x1024xf32>
    tpu.vector_store %arg7[%c6, %c0_5], %5 {strides = array<i32>} : memref<128x1024xf32, #tpu.memory_space<vmem>>, vector<3x1024xf32>,
    %c1021_i32 = arith.constant 1021 : i32
    %7 = tpu.dynamic_rotate %1 by %c1021_i32 dim 1 : vector<3x1024xf32>, i32 -> vector<3x1024xf32>
    %c9 = arith.constant 9 : index
    %c0_6 = arith.constant 0 : index
    %8 = vector.load %arg7[%c9, %c0_6] : memref<128x1024xf32, #tpu.memory_space<vmem>>, vector<3x1024xf32>
    tpu.vector_store %arg7[%c9, %c0_6], %7 {strides = array<i32>} : memref<128x1024xf32, #tpu.memory_space<vmem>>, vector<3x1024xf32>,
    %c1020_i32 = arith.constant 1020 : i32
    %9 = tpu.dynamic_rotate %1 by %c1020_i32 dim 1 : vector<3x1024xf32>, i32 -> vector<3x1024xf32>
    %c12 = arith.constant 12 : index
    %c0_7 = arith.constant 0 : index
    %10 = vector.load %arg7[%c12, %c0_7] : memref<128x1024xf32, #tpu.memory_space<vmem>>, vector<3x1024xf32>
    tpu.vector_store %arg7[%c12, %c0_7], %9 {strides = array<i32>} : memref<128x1024xf32, #tpu.memory_space<vmem>>, vector<3x1024xf32>,
    %c992_i32 = arith.constant 992 : i32
    %11 = tpu.dynamic_rotate %1 by %c992_i32 dim 1 : vector<3x1024xf32>, i32 -> vector<3x1024xf32>
    %c15 = arith.constant 15 : index
    %c0_8 = arith.constant 0 : index
    %12 = vector.load %arg7[%c15, %c0_8] : memref<128x1024xf32, #tpu.memory_space<vmem>>, vector<3x1024xf32>
    tpu.vector_store %arg7[%c15, %c0_8], %11 {strides = array<i32>} : memref<128x1024xf32, #tpu.memory_space<vmem>>, vector<3x1024xf32>,
    %c991_i32 = arith.constant 991 : i32
    %13 = tpu.dynamic_rotate %1 by %c991_i32 dim 1 : vector<3x1024xf32>, i32 -> vector<3x1024xf32>
    %c18 = arith.constant 18 : index
    %c0_9 = arith.constant 0 : index
    %14 = vector.load %arg7[%c18, %c0_9] : memref<128x1024xf32, #tpu.memory_space<vmem>>, vector<3x1024xf32>
    tpu.vector_store %arg7[%c18, %c0_9], %13 {strides = array<i32>} : memref<128x1024xf32, #tpu.memory_space<vmem>>, vector<3x1024xf32>,
    %c990_i32 = arith.constant 990 : i32
    %15 = tpu.dynamic_rotate %1 by %c990_i32 dim 1 : vector<3x1024xf32>, i32 -> vector<3x1024xf32>
    %c21 = arith.constant 21 : index
    %c0_10 = arith.constant 0 : index
    %16 = vector.load %arg7[%c21, %c0_10] : memref<128x1024xf32, #tpu.memory_space<vmem>>, vector<3x1024xf32>
    tpu.vector_store %arg7[%c21, %c0_10], %15 {strides = array<i32>} : memref<128x1024xf32, #tpu.memory_space<vmem>>, vector<3x1024xf32>,
    %c989_i32 = arith.constant 989 : i32
    %17 = tpu.dynamic_rotate %1 by %c989_i32 dim 1 : vector<3x1024xf32>, i32 -> vector<3x1024xf32>
    %c24 = arith.constant 24 : index
    %c0_11 = arith.constant 0 : index
    %18 = vector.load %arg7[%c24, %c0_11] : memref<128x1024xf32, #tpu.memory_space<vmem>>, vector<3x1024xf32>
    tpu.vector_store %arg7[%c24, %c0_11], %17 {strides = array<i32>} : memref<128x1024xf32, #tpu.memory_space<vmem>>, vector<3x1024xf32>,
    %c988_i32 = arith.constant 988 : i32
    %19 = tpu.dynamic_rotate %1 by %c988_i32 dim 1 : vector<3x1024xf32>, i32 -> vector<3x1024xf32>
    %c27 = arith.constant 27 : index
    %c0_12 = arith.constant 0 : index
    %20 = vector.load %arg7[%c27, %c0_12] : memref<128x1024xf32, #tpu.memory_space<vmem>>, vector<3x1024xf32>
    tpu.vector_store %arg7[%c27, %c0_12], %19 {strides = array<i32>} : memref<128x1024xf32, #tpu.memory_space<vmem>>, vector<3x1024xf32>,
    %c960_i32 = arith.constant 960 : i32
    %21 = tpu.dynamic_rotate %1 by %c960_i32 dim 1 : vector<3x1024xf32>, i32 -> vector<3x1024xf32>
    %c30 = arith.constant 30 : index
    %c0_13 = arith.constant 0 : index
    %22 = vector.load %arg7[%c30, %c0_13] : memref<128x1024xf32, #tpu.memory_space<vmem>>, vector<3x1024xf32>
    tpu.vector_store %arg7[%c30, %c0_13], %21 {strides = array<i32>} : memref<128x1024xf32, #tpu.memory_space<vmem>>, vector<3x1024xf32>,
    %c959_i32 = arith.constant 959 : i32
    %23 = tpu.dynamic_rotate %1 by %c959_i32 dim 1 : vector<3x1024xf32>, i32 -> vector<3x1024xf32>
    %c33 = arith.constant 33 : index
    %c0_14 = arith.constant 0 : index
    %24 = vector.load %arg7[%c33, %c0_14] : memref<128x1024xf32, #tpu.memory_space<vmem>>, vector<3x1024xf32>
    tpu.vector_store %arg7[%c33, %c0_14], %23 {strides = array<i32>} : memref<128x1024xf32, #tpu.memory_space<vmem>>, vector<3x1024xf32>,
    %c958_i32 = arith.constant 958 : i32
    %25 = tpu.dynamic_rotate %1 by %c958_i32 dim 1 : vector<3x1024xf32>, i32 -> vector<3x1024xf32>
    %c36 = arith.constant 36 : index
    %c0_15 = arith.constant 0 : index
    %26 = vector.load %arg7[%c36, %c0_15] : memref<128x1024xf32, #tpu.memory_space<vmem>>, vector<3x1024xf32>
    tpu.vector_store %arg7[%c36, %c0_15], %25 {strides = array<i32>} : memref<128x1024xf32, #tpu.memory_space<vmem>>, vector<3x1024xf32>,
    %c957_i32 = arith.constant 957 : i32
    %27 = tpu.dynamic_rotate %1 by %c957_i32 dim 1 : vector<3x1024xf32>, i32 -> vector<3x1024xf32>
    %c39 = arith.constant 39 : index
    %c0_16 = arith.constant 0 : index
    %28 = vector.load %arg7[%c39, %c0_16] : memref<128x1024xf32, #tpu.memory_space<vmem>>, vector<3x1024xf32>
    tpu.vector_store %arg7[%c39, %c0_16], %27 {strides = array<i32>} : memref<128x1024xf32, #tpu.memory_space<vmem>>, vector<3x1024xf32>,
    %c956_i32 = arith.constant 956 : i32
    %29 = tpu.dynamic_rotate %1 by %c956_i32 dim 1 : vector<3x1024xf32>, i32 -> vector<3x1024xf32>
    %c42 = arith.constant 42 : index
    %c0_17 = arith.constant 0 : index
    %30 = vector.load %arg7[%c42, %c0_17] : memref<128x1024xf32, #tpu.memory_space<vmem>>, vector<3x1024xf32>
    tpu.vector_store %arg7[%c42, %c0_17], %29 {strides = array<i32>} : memref<128x1024xf32, #tpu.memory_space<vmem>>, vector<3x1024xf32>,
    %c928_i32 = arith.constant 928 : i32
    %31 = tpu.dynamic_rotate %1 by %c928_i32 dim 1 : vector<3x1024xf32>, i32 -> vector<3x1024xf32>
    %c45 = arith.constant 45 : index
    %c0_18 = arith.constant 0 : index
    %32 = vector.load %arg7[%c45, %c0_18] : memref<128x1024xf32, #tpu.memory_space<vmem>>, vector<3x1024xf32>
    tpu.vector_store %arg7[%c45, %c0_18], %31 {strides = array<i32>} : memref<128x1024xf32, #tpu.memory_space<vmem>>, vector<3x1024xf32>,
    %c927_i32 = arith.constant 927 : i32
    %33 = tpu.dynamic_rotate %1 by %c927_i32 dim 1 : vector<3x1024xf32>, i32 -> vector<3x1024xf32>
    %c48 = arith.constant 48 : index
    %c0_19 = arith.constant 0 : index
    %34 = vector.load %arg7[%c48, %c0_19] : memref<128x1024xf32, #tpu.memory_space<vmem>>, vector<3x1024xf32>
    tpu.vector_store %arg7[%c48, %c0_19], %33 {strides = array<i32>} : memref<128x1024xf32, #tpu.memory_space<vmem>>, vector<3x1024xf32>,
    %c926_i32 = arith.constant 926 : i32
    %35 = tpu.dynamic_rotate %1 by %c926_i32 dim 1 : vector<3x1024xf32>, i32 -> vector<3x1024xf32>
    %c51 = arith.constant 51 : index
    %c0_20 = arith.constant 0 : index
    %36 = vector.load %arg7[%c51, %c0_20] : memref<128x1024xf32, #tpu.memory_space<vmem>>, vector<3x1024xf32>
    tpu.vector_store %arg7[%c51, %c0_20], %35 {strides = array<i32>} : memref<128x1024xf32, #tpu.memory_space<vmem>>, vector<3x1024xf32>,
    %c925_i32 = arith.constant 925 : i32
    %37 = tpu.dynamic_rotate %1 by %c925_i32 dim 1 : vector<3x1024xf32>, i32 -> vector<3x1024xf32>
    %c54 = arith.constant 54 : index
    %c0_21 = arith.constant 0 : index
    %38 = vector.load %arg7[%c54, %c0_21] : memref<128x1024xf32, #tpu.memory_space<vmem>>, vector<3x1024xf32>
    tpu.vector_store %arg7[%c54, %c0_21], %37 {strides = array<i32>} : memref<128x1024xf32, #tpu.memory_space<vmem>>, vector<3x1024xf32>,
    %c924_i32 = arith.constant 924 : i32
    %39 = tpu.dynamic_rotate %1 by %c924_i32 dim 1 : vector<3x1024xf32>, i32 -> vector<3x1024xf32>
    %c57 = arith.constant 57 : index
    %c0_22 = arith.constant 0 : index
    %40 = vector.load %arg7[%c57, %c0_22] : memref<128x1024xf32, #tpu.memory_space<vmem>>, vector<3x1024xf32>
    tpu.vector_store %arg7[%c57, %c0_22], %39 {strides = array<i32>} : memref<128x1024xf32, #tpu.memory_space<vmem>>, vector<3x1024xf32>,
    %c896_i32 = arith.constant 896 : i32
    %41 = tpu.dynamic_rotate %1 by %c896_i32 dim 1 : vector<3x1024xf32>, i32 -> vector<3x1024xf32>
    %c60 = arith.constant 60 : index
    %c0_23 = arith.constant 0 : index
    %42 = vector.load %arg7[%c60, %c0_23] : memref<128x1024xf32, #tpu.memory_space<vmem>>, vector<3x1024xf32>
    tpu.vector_store %arg7[%c60, %c0_23], %41 {strides = array<i32>} : memref<128x1024xf32, #tpu.memory_space<vmem>>, vector<3x1024xf32>,
    %c895_i32 = arith.constant 895 : i32
    %43 = tpu.dynamic_rotate %1 by %c895_i32 dim 1 : vector<3x1024xf32>, i32 -> vector<3x1024xf32>
    %c63 = arith.constant 63 : index
    %c0_24 = arith.constant 0 : index
    %44 = vector.load %arg7[%c63, %c0_24] : memref<128x1024xf32, #tpu.memory_space<vmem>>, vector<3x1024xf32>
    tpu.vector_store %arg7[%c63, %c0_24], %43 {strides = array<i32>} : memref<128x1024xf32, #tpu.memory_space<vmem>>, vector<3x1024xf32>,
    %c894_i32 = arith.constant 894 : i32
    %45 = tpu.dynamic_rotate %1 by %c894_i32 dim 1 : vector<3x1024xf32>, i32 -> vector<3x1024xf32>
    %c66 = arith.constant 66 : index
    %c0_25 = arith.constant 0 : index
    %46 = vector.load %arg7[%c66, %c0_25] : memref<128x1024xf32, #tpu.memory_space<vmem>>, vector<3x1024xf32>
    tpu.vector_store %arg7[%c66, %c0_25], %45 {strides = array<i32>} : memref<128x1024xf32, #tpu.memory_space<vmem>>, vector<3x1024xf32>,
    %c893_i32 = arith.constant 893 : i32
    %47 = tpu.dynamic_rotate %1 by %c893_i32 dim 1 : vector<3x1024xf32>, i32 -> vector<3x1024xf32>
    %c69 = arith.constant 69 : index
    %c0_26 = arith.constant 0 : index
    %48 = vector.load %arg7[%c69, %c0_26] : memref<128x1024xf32, #tpu.memory_space<vmem>>, vector<3x1024xf32>
    tpu.vector_store %arg7[%c69, %c0_26], %47 {strides = array<i32>} : memref<128x1024xf32, #tpu.memory_space<vmem>>, vector<3x1024xf32>,
    %c892_i32 = arith.constant 892 : i32
    %49 = tpu.dynamic_rotate %1 by %c892_i32 dim 1 : vector<3x1024xf32>, i32 -> vector<3x1024xf32>
    %c72 = arith.constant 72 : index
    %c0_27 = arith.constant 0 : index
    %50 = vector.load %arg7[%c72, %c0_27] : memref<128x1024xf32, #tpu.memory_space<vmem>>, vector<3x1024xf32>
    tpu.vector_store %arg7[%c72, %c0_27], %49 {strides = array<i32>} : memref<128x1024xf32, #tpu.memory_space<vmem>>, vector<3x1024xf32>,
    %cst = arith.constant 0.000000e+00 : f32
    %51 = vector.broadcast %cst : f32 to vector<53x1024xf32>
    %c75 = arith.constant 75 : index
    %c0_28 = arith.constant 0 : index
    %52 = vector.load %arg7[%c75, %c0_28] : memref<128x1024xf32, #tpu.memory_space<vmem>>, vector<53x1024xf32>
    tpu.vector_store %arg7[%c75, %c0_28], %51 {strides = array<i32>} : memref<128x1024xf32, #tpu.memory_space<vmem>>, vector<53x1024xf32>,
    %c0_29 = arith.constant 0 : index
    %c0_30 = arith.constant 0 : index
    %53 = vector.load %arg2[%c0_29, %c0_30] : memref<16x128xf32, #tpu.memory_space<vmem>>, vector<16x128xf32>
    %c0_31 = arith.constant 0 : index
    %c0_32 = arith.constant 0 : index
    %54 = vector.load %arg7[%c0_31, %c0_32] : memref<128x1024xf32, #tpu.memory_space<vmem>>, vector<128x1024xf32>
    %cst_33 = arith.constant dense<0.000000e+00> : vector<16x1024xf32>
    %55 = tpu.matmul %53, %54, %cst_33 {dimension_numbers = #tpu.dot_dimension_numbers<[1], [0], [0], [1], [0, 0, 1, 1], [], []>} : vector<16x128xf32>, vector<128x1024xf32>, vector<16x1024xf32> -> vector<16x1024xf32>
    %c0_34 = arith.constant 0 : index
    %c0_35 = arith.constant 0 : index
    %56 = vector.load %arg3[%c0_34, %c0_35] : memref<16x1xf32, #tpu.memory_space<vmem>>, vector<16x1xf32>
    %57 = vector.broadcast %56 : vector<16x1xf32> to vector<16x1024xf32>
    %58 = arith.addf %55, %57 : vector<16x1024xf32>
    %cst_36 = arith.constant 0.000000e+00 : f32
    %59 = vector.broadcast %cst_36 : f32 to vector<16x1024xf32>
    %60 = arith.maximumf %58, %59 : vector<16x1024xf32>
    %61 = vector.extract_strided_slice %60 {offsets = [0, 0], sizes = [8, 1024], strides = [1, 1]} : vector<16x1024xf32> to vector<8x1024xf32>
    %62 = vector.extract_strided_slice %60 {offsets = [8, 0], sizes = [8, 1024], strides = [1, 1]} : vector<16x1024xf32> to vector<8x1024xf32>
    %63 = arith.addf %61, %62 : vector<8x1024xf32>
    %c0_37 = arith.constant 0 : index
    %c0_38 = arith.constant 0 : index
    %64 = vector.load %arg4[%c0_37, %c0_38] : memref<1024x64xf32, #tpu.memory_space<vmem>>, vector<1024x64xf32>
    %cst_39 = arith.constant dense<0.000000e+00> : vector<8x64xf32>
    %65 = tpu.matmul %63, %64, %cst_39 {dimension_numbers = #tpu.dot_dimension_numbers<[1], [0], [0], [1], [0, 0, 1, 1], [], []>} : vector<8x1024xf32>, vector<1024x64xf32>, vector<8x64xf32> -> vector<8x64xf32>
    %66 = tpu.iota {dimensions = array<i32: 1>} : vector<8x64xi32>
    %67 = tpu.iota {dimensions = array<i32: 0>} : vector<8x64xi32>
    %c6_i32 = arith.constant 6 : i32
    %68 = vector.broadcast %c6_i32 : i32 to vector<8x64xi32>
    %69 = arith.cmpi slt, %67, %68 : vector<8x64xi32>
    %c10_i32 = arith.constant 10 : i32
    %70 = vector.broadcast %c10_i32 : i32 to vector<8x64xi32>
    %71 = arith.muli %67, %70 : vector<8x64xi32>
    %72 = arith.cmpi sge, %66, %71 : vector<8x64xi32>
    %73 = arith.andi %69, %72 : vector<8x64xi1>
    %c1_i32 = arith.constant 1 : i32
    %74 = vector.broadcast %c1_i32 : i32 to vector<8x64xi32>
    %75 = arith.addi %67, %74 : vector<8x64xi32>
    %c10_i32_40 = arith.constant 10 : i32
    %76 = vector.broadcast %c10_i32_40 : i32 to vector<8x64xi32>
    %77 = arith.muli %75, %76 : vector<8x64xi32>
    %78 = arith.cmpi slt, %66, %77 : vector<8x64xi32>
    %79 = arith.andi %73, %78 : vector<8x64xi1>
    %cst_41 = arith.constant 0.000000e+00 : f32
    %80 = vector.broadcast %cst_41 : f32 to vector<8x64xf32>
    %81 = arith.select %79, %65, %80 : vector<8x64xi1>, vector<8x64xf32>
    %cst_42 = arith.constant dense<0.000000e+00> : vector<64xf32>
    %82 = vector.multi_reduction <add>, %81, %cst_42 [0] : vector<8x64xf32> to vector<64xf32>
    %83 = vector.shape_cast %82 : vector<64xf32> to vector<1x64xf32>
    %c0_43 = arith.constant 0 : index
    %c0_44 = arith.constant 0 : index
    %84 = vector.load %arg5[%c0_43, %c0_44] : memref<1x10xf32, #tpu.memory_space<vmem>>, vector<1x10xf32>
    %85 = vector.extract_strided_slice %83 {offsets = [0, 0], sizes = [1, 10], strides = [1, 1]} : vector<1x64xf32> to vector<1x10xf32>
    %86 = arith.addf %84, %85 : vector<1x10xf32>
    %87 = vector.extract_strided_slice %83 {offsets = [0, 10], sizes = [1, 10], strides = [1, 1]} : vector<1x64xf32> to vector<1x10xf32>
    %88 = arith.addf %86, %87 : vector<1x10xf32>
    %89 = vector.extract_strided_slice %83 {offsets = [0, 20], sizes = [1, 10], strides = [1, 1]} : vector<1x64xf32> to vector<1x10xf32>
    %90 = arith.addf %88, %89 : vector<1x10xf32>
    %91 = vector.extract_strided_slice %83 {offsets = [0, 30], sizes = [1, 10], strides = [1, 1]} : vector<1x64xf32> to vector<1x10xf32>
    %92 = arith.addf %90, %91 : vector<1x10xf32>
    %93 = vector.extract_strided_slice %83 {offsets = [0, 40], sizes = [1, 10], strides = [1, 1]} : vector<1x64xf32> to vector<1x10xf32>
    %94 = arith.addf %92, %93 : vector<1x10xf32>
    %95 = vector.extract_strided_slice %83 {offsets = [0, 50], sizes = [1, 10], strides = [1, 1]} : vector<1x64xf32> to vector<1x10xf32>
    %96 = arith.addf %94, %95 : vector<1x10xf32>
    %c0_45 = arith.constant 0 : index
    %c0_46 = arith.constant 0 : index
    %c0_47 = arith.constant 0 : index
    %97 = vector.load %arg6[%c0_45, %c0_46, %c0_47] : memref<1x1x10xf32, #tpu.memory_space<vmem>>, vector<1x1x10xf32>
    %98 = vector.shape_cast %97 : vector<1x1x10xf32> to vector<1x10xf32>
    %99 = vector.shape_cast %96 : vector<1x10xf32> to vector<1x1x10xf32>
    tpu.vector_store %arg6[%c0_45, %c0_46, %c0_47], %99 {strides = array<i32>} : memref<1x1x10xf32, #tpu.memory_space<vmem>>, vector<1x1x10xf32>,
    return
  }
  func.func @transform_0(%arg0: i32) -> (i32, i32, i32) {
    %c0_i32 = arith.constant 0 : i32
    %c0_i32_0 = arith.constant 0 : i32
    %c0_i32_1 = arith.constant 0 : i32
    return %arg0, %c0_i32, %c0_i32_0 : i32, i32, i32
  }
  func.func @transform_1(%arg0: i32) -> (i32, i32) {
    %c0_i32 = arith.constant 0 : i32
    %c0_i32_0 = arith.constant 0 : i32
    %c0_i32_1 = arith.constant 0 : i32
    return %c0_i32, %c0_i32_0 : i32, i32
  }
  func.func @transform_2(%arg0: i32) -> (i32, i32) {
    %c0_i32 = arith.constant 0 : i32
    %c0_i32_0 = arith.constant 0 : i32
    %c0_i32_1 = arith.constant 0 : i32
    return %c0_i32, %c0_i32_0 : i32, i32
  }
  func.func @transform_3(%arg0: i32) -> (i32, i32) {
    %c0_i32 = arith.constant 0 : i32
    %c0_i32_0 = arith.constant 0 : i32
    %c0_i32_1 = arith.constant 0 : i32
    return %c0_i32, %c0_i32_0 : i32, i32
  }
  func.func @transform_4(%arg0: i32) -> (i32, i32) {
    %c0_i32 = arith.constant 0 : i32
    %c0_i32_0 = arith.constant 0 : i32
    %c0_i32_1 = arith.constant 0 : i32
    return %c0_i32, %c0_i32_0 : i32, i32
  }
  func.func @transform_5(%arg0: i32) -> (i32, i32, i32) {
    %c0_i32 = arith.constant 0 : i32
    %c0_i32_0 = arith.constant 0 : i32
    %c0_i32_1 = arith.constant 0 : i32
    return %arg0, %c0_i32, %c0_i32_0 : i32, i32, i32
  }
}

</mosaic_0001>

<llo_original>
// kernel: simple_net_forward.1
$region0: #{simple_net_forward.1}
  #allocation0 [shape = 'u32[]', space=smem, size = 0x4, offset = 0x4, fixed_abs, tag = 'smem constant byte address 0x4 - core index']
  #allocation1 [shape = 'u32[72,128]{1,0:T(1,128)}', space=vmem, size = 0x9000, scoped, tag = 'internal scratch']
  #allocation2 [shape = 'f32[128,1024]{1,0:T(8,128)}', space=vmem, size = 0x80000, scoped, tag = 'scratch operand']
  %s0 = inlined_call_operand.vmem [shape: f32[2,3,1024], index: 0, kind: input, shape index: {}]
  %s1 = inlined_call_operand.vmem [shape: f32[16,128], index: 1, kind: input, shape index: {}]
  %s2 = inlined_call_operand.vmem [shape: f32[16,1], index: 2, kind: input, shape index: {}]
  %s3 = inlined_call_operand.vmem [shape: f32[1024,64], index: 3, kind: input, shape index: {}]
  %s4 = inlined_call_operand.vmem [shape: f32[1,10], index: 4, kind: input, shape index: {}]
  %s5 = inlined_call_operand.hbm [shape: f32[2,1,10], index: 5, kind: output, shape index: {}]
  %s6 = sld [smem:[#allocation0]]
  $region53: #{simple_net_forward.1} parent=0
    _
  %s8 = ssub.s32 1, %s6
  %s9 = scalar_select 0, %s8, %s6
  $region1: #{simple_net_forward.1} parent=0
    #allocation3 [shape = 'u8[1024]{0}', space=vmem, size = 0x400, scoped, tag = 'output window, operand 0']
    #allocation4 [shape = 's32[2]{0}', space=sflag, size = 0x8, scoped, tag = 'scoped memory for simple_net_forward.1']
    %10 = vsyncpa [#allocation4], 0
    %s11 = scalar_lea.sflag [#allocation4], 1
    %12 = vsyncpa %s11, 0
    loop: start=0, step=1, limit=4
    $region2: #{simple_net_forward.1} parent=1 // loop_pre_header
      _
    $region3: #{simple_net_forward.1} parent=1 // loop_header
      %s14 = sphi 0, %s18
      %p15 = scmp.ge.s32.totalorder %s14, 4
      %s24 = sphi 0, %s26
      %s27 = sphi 0, %s24
      %s28 = sphi 0, %s27
      %s44 = sphi 0, %s28
      %s48 = sphi 0, %s48
      %s50 = sphi 0, %s48
      %s51 = sphi 0, %s50
      %s65 = sphi 0, %s51
      %s69 = sphi 0, %s69
      %s71 = sphi 0, %s69
      %s72 = sphi 0, %s71
      %s86 = sphi 0, %s72
      %s90 = sphi 0, %s90
      %s92 = sphi 0, %s90
      %s93 = sphi 0, %s92
      %s107 = sphi 0, %s93
      %s111 = sphi 0, %s111
      %s113 = sphi 0, %s111
      %s114 = sphi 0, %s113
      %s128 = sphi 0, %s114
      %s134 = sphi 0, %s136
      %s137 = sphi 0, %s134
      %s138 = sphi 0, %s137
      %s154 = sphi 0, %s138
    $region4: #{simple_net_forward.1} parent=1 // loop_header_branch
      %17 = sbr.rel (%p15) target = $region8
    $region5: #{simple_net_forward.1} parent=1 // loop_body
      %s19 = ssub.s32 %s14, 1
      %s20 = ssub.s32 %s14, 2
      %s21 = sadd.s32 %s14, 1
      %s22 = ssub.s32 %s14, %s21
      %p23 = scmp.eq.s32.totalorder %s22, 0
      %s25 = sadd.s32 %s24, 1
      %s26 = scalar_select %p23, %s24, %s25
      %p29 = pneg %p23
      %p30 = scmp.eq.s32.totalorder %s14, 1
      %p31 = por %p29, %p30
      %p32 = scmp.ne.s32.totalorder %s24, %s27
      %p33 = scmp.eq.s32.totalorder %s14, 0
      %p34 = por %p32, %p33
      %p35 = scmp.ne.s32.totalorder %s24, %s27
      %p36 = scmp.eq.s32.totalorder %s19, 1
      %p37 = por %p35, %p36
      %p38 = scmp.ne.s32.totalorder %s27, %s28
      %p39 = scmp.eq.s32.totalorder %s19, 0
      %p40 = por %p38, %p39
      %p41 = scmp.ne.s32.totalorder %s27, %s28
      %p42 = scmp.eq.s32.totalorder %s20, 1
      %p43 = por %p41, %p42
      %p45 = scmp.ne.s32.totalorder %s28, %s44
      %p46 = scmp.eq.s32.totalorder %s20, 0
      %p47 = por %p45, %p46
      %s49 = sadd.s32 %s48, 1
      %p52 = scmp.eq.s32.totalorder %s14, 1
      %p53 = scmp.ne.s32.totalorder %s48, %s50
      %p54 = scmp.eq.s32.totalorder %s14, 0
      %p55 = por %p53, %p54
      %p56 = scmp.ne.s32.totalorder %s48, %s50
      %p57 = scmp.eq.s32.totalorder %s19, 1
      %p58 = por %p56, %p57
      %p59 = scmp.ne.s32.totalorder %s50, %s51
      %p60 = scmp.eq.s32.totalorder %s19, 0
      %p61 = por %p59, %p60
      %p62 = scmp.ne.s32.totalorder %s50, %s51
      %p63 = scmp.eq.s32.totalorder %s20, 1
      %p64 = por %p62, %p63
      %p66 = scmp.ne.s32.totalorder %s51, %s65
      %p67 = scmp.eq.s32.totalorder %s20, 0
      %p68 = por %p66, %p67
      %s70 = sadd.s32 %s69, 1
      %p73 = scmp.eq.s32.totalorder %s14, 1
      %p74 = scmp.ne.s32.totalorder %s69, %s71
      %p75 = scmp.eq.s32.totalorder %s14, 0
      %p76 = por %p74, %p75
      %p77 = scmp.ne.s32.totalorder %s69, %s71
      %p78 = scmp.eq.s32.totalorder %s19, 1
      %p79 = por %p77, %p78
      %p80 = scmp.ne.s32.totalorder %s71, %s72
      %p81 = scmp.eq.s32.totalorder %s19, 0
      %p82 = por %p80, %p81
      %p83 = scmp.ne.s32.totalorder %s71, %s72
      %p84 = scmp.eq.s32.totalorder %s20, 1
      %p85 = por %p83, %p84
      %p87 = scmp.ne.s32.totalorder %s72, %s86
      %p88 = scmp.eq.s32.totalorder %s20, 0
      %p89 = por %p87, %p88
      %s91 = sadd.s32 %s90, 1
      %p94 = scmp.eq.s32.totalorder %s14, 1
      %p95 = scmp.ne.s32.totalorder %s90, %s92
      %p96 = scmp.eq.s32.totalorder %s14, 0
      %p97 = por %p95, %p96
      %p98 = scmp.ne.s32.totalorder %s90, %s92
      %p99 = scmp.eq.s32.totalorder %s19, 1
      %p100 = por %p98, %p99
      %p101 = scmp.ne.s32.totalorder %s92, %s93
      %p102 = scmp.eq.s32.totalorder %s19, 0
      %p103 = por %p101, %p102
      %p104 = scmp.ne.s32.totalorder %s92, %s93
      %p105 = scmp.eq.s32.totalorder %s20, 1
      %p106 = por %p104, %p105
      %p108 = scmp.ne.s32.totalorder %s93, %s107
      %p109 = scmp.eq.s32.totalorder %s20, 0
      %p110 = por %p108, %p109
      %s112 = sadd.s32 %s111, 1
      %p115 = scmp.eq.s32.totalorder %s14, 1
      %p116 = scmp.ne.s32.totalorder %s111, %s113
      %p117 = scmp.eq.s32.totalorder %s14, 0
      %p118 = por %p116, %p117
      %p119 = scmp.ne.s32.totalorder %s111, %s113
      %p120 = scmp.eq.s32.totalorder %s19, 1
      %p121 = por %p119, %p120
      %p122 = scmp.ne.s32.totalorder %s113, %s114
      %p123 = scmp.eq.s32.totalorder %s19, 0
      %p124 = por %p122, %p123
      %p125 = scmp.ne.s32.totalorder %s113, %s114
      %p126 = scmp.eq.s32.totalorder %s20, 1
      %p127 = por %p125, %p126
      %p129 = scmp.ne.s32.totalorder %s114, %s128
      %p130 = scmp.eq.s32.totalorder %s20, 0
      %p131 = por %p129, %p130
      %s132 = ssub.s32 %s14, %s21
      %p133 = scmp.eq.s32.totalorder %s132, 0
      %s135 = sadd.s32 %s134, 1
      %s136 = scalar_select %p133, %s134, %s135
      %p139 = pneg %p133
      %p140 = scmp.eq.s32.totalorder %s14, 1
      %p141 = por %p139, %p140
      %p142 = scmp.ne.s32.totalorder %s134, %s137
      %p143 = scmp.eq.s32.totalorder %s14, 0
      %p144 = por %p142, %p143
      %p145 = scmp.ne.s32.totalorder %s134, %s137
      %p146 = scmp.eq.s32.totalorder %s19, 1
      %p147 = por %p145, %p146
      %p148 = scmp.ne.s32.totalorder %s137, %s138
      %p149 = scmp.eq.s32.totalorder %s19, 0
      %p150 = por %p148, %p149
      %p151 = scmp.ne.s32.totalorder %s137, %s138
      %p152 = scmp.eq.s32.totalorder %s20, 1
      %p153 = por %p151, %p152
      %p155 = scmp.ne.s32.totalorder %s138, %s154
      %p156 = scmp.eq.s32.totalorder %s20, 0
      %p157 = por %p155, %p156
      %p158 = scmp.le.s32.totalorder 1, %s14
      %p159 = scmp.lt.s32.totalorder %s14, 3
      %p160 = pnand %p158, %p159
      %p161 = pneg %p160
      // Predicated region
      $region9: #{simple_net_forward.1} parent=5 // pred_check
        _
      $region10: #{simple_net_forward.1} parent=5 // pred_check_branch
        %163 = sbr.rel (%p160) target = $region12
      $region11: #{simple_net_forward.1} parent=5 // pred_region
        %s164 = ssub.s32 %s14, 1
        // Predicated region
        $region13: #{simple_net_forward.1} parent=11 // pred_check
          %p165 = pneg %p61
        $region14: #{simple_net_forward.1} parent=11 // pred_check_branch
          %167 = sbr.rel (%p165) target = $region16
        $region15: #{simple_net_forward.1} parent=11 // pred_region
          _
        $region16: #{simple_net_forward.1} parent=11 // pred_fallthru
          _
        // Predicated region
        $region17: #{simple_net_forward.1} parent=11 // pred_check
          %p168 = pneg %p82
        $region18: #{simple_net_forward.1} parent=11 // pred_check_branch
          %170 = sbr.rel (%p168) target = $region20
        $region19: #{simple_net_forward.1} parent=11 // pred_region
          _
        $region20: #{simple_net_forward.1} parent=11 // pred_fallthru
          _
        // Predicated region
        $region21: #{simple_net_forward.1} parent=11 // pred_check
          %p171 = pneg %p103
        $region22: #{simple_net_forward.1} parent=11 // pred_check_branch
          %173 = sbr.rel (%p171) target = $region24
        $region23: #{simple_net_forward.1} parent=11 // pred_region
          _
        $region24: #{simple_net_forward.1} parent=11 // pred_fallthru
          _
        // Predicated region
        $region25: #{simple_net_forward.1} parent=11 // pred_check
          %p174 = pneg %p124
        $region26: #{simple_net_forward.1} parent=11 // pred_check_branch
          %176 = sbr.rel (%p174) target = $region28
        $region27: #{simple_net_forward.1} parent=11 // pred_region
          _
        $region28: #{simple_net_forward.1} parent=11 // pred_fallthru
          _
      $region12: #{simple_net_forward.1} parent=5 // pred_fallthru
        _
      %p177 = scmp.lt.s32.totalorder %s14, 2
      // Predicated region
      $region29: #{simple_net_forward.1} parent=5 // pred_check
        %p178 = pneg %p177
      $region30: #{simple_net_forward.1} parent=5 // pred_check_branch
        %180 = sbr.rel (%p178) target = $region32
      $region31: #{simple_net_forward.1} parent=5 // pred_region
        // Predicated region
        $region33: #{simple_net_forward.1} parent=31 // pred_check
          %p181 = pneg %p34
        $region34: #{simple_net_forward.1} parent=31 // pred_check_branch
          %183 = sbr.rel (%p181) target = $region36
        $region35: #{simple_net_forward.1} parent=31 // pred_region
          %p184 = scmp.lt.s32.totalorder %s14, 1
          %s185 = scalar_select %p184, %s14, 1
          %s186 = smul.addr %s185, 8
          %s187 = smul.addr %s186, 4
          %s188 = scalar_lea.vmem %s0, %s187
        $region36: #{simple_net_forward.1} parent=31 // pred_fallthru
          _
      $region32: #{simple_net_forward.1} parent=5 // pred_fallthru
        _
      %p189 = scmp.le.s32.totalorder 1, %s14
      %p190 = scmp.lt.s32.totalorder %s14, 3
      %p191 = pnand %p189, %p190
      %p192 = pneg %p191
      // Predicated region
      $region37: #{simple_net_forward.1} parent=5 // pred_check
        _
      $region38: #{simple_net_forward.1} parent=5 // pred_check_branch
        %194 = sbr.rel (%p191) target = $region40
      $region39: #{simple_net_forward.1} parent=5 // pred_region
        %s195 = ssub.s32 %s14, 1
        %p196 = scmp.lt.s32.totalorder %s19, 1
        %s197 = scalar_select %p196, %s19, 1
        %s198 = smul.addr %s197, 8
        %s199 = smul.addr %s198, 4
        %s200 = scalar_lea.vmem %s0, %s199
        %p201 = pneg %p40
        %p202 = pneg %p37
        %p203 = pneg %p61
        %p204 = pneg %p58
        %p205 = pneg %p82
        %p206 = pneg %p79
        %p207 = pneg %p103
        %p208 = pneg %p100
        %p209 = pneg %p124
        %p210 = pneg %p121
        %p211 = pneg %p150
        %p212 = pneg %p147
        %s213 = sand.u32 %s137, 1
        %s214 = scalar_lea.sflag [#allocation4], %s213
        %s215 = sand.u32 %s137, 1
        %s216 = scalar_lea.vmem [#allocation3], %s215
        %p217 = scmp.lt.s32.totalorder %s19, 1
        %s218 = scalar_select %p217, %s19, 1
        %s219 = smul.addr %s218, 8
        %s220 = smul.addr %s219, 4
        %s221 = scalar_lea.vmem %s0, %s220
        %v222 = vld [vmem:[%s221] sm:$0x77]
        %v223 = vld [vmem:[%s221 + $0x8] sm:$0x77]
        %v224 = vld [vmem:[%s221 + $0x10] sm:$0x77]
        %v225 = vld [vmem:[%s221 + $0x18] sm:$0x77]
        %230 = vst [vmem:[#allocation1] ss:$2 sm:$0xff] %v222
        %s231 = scalar_lea.vmem [#allocation1], 16
        %232 = vst [vmem:[%s231] ss:$2 sm:$0xff] %v223
        %s233 = scalar_lea.vmem [#allocation1], 32
        %234 = vst [vmem:[%s233] ss:$2 sm:$0xff] %v224
        %s235 = scalar_lea.vmem [#allocation1], 48
        %236 = vst [vmem:[%s235] ss:$2 sm:$0xff] %v225
        %v237 = vld.sshfl [vmem:[#allocation1] sm:$0xff pattern:$0x75316420]
        %v238 = vld.sshfl [vmem:[#allocation1 + $0x8] sm:$0xff pattern:$0x75316420]
        %v239 = vld.sshfl [vmem:[#allocation1 + $0x10] sm:$0xff pattern:$0x75316420]
        %v240 = vld.sshfl [vmem:[#allocation1 + $0x18] sm:$0xff pattern:$0x75316420]
        %v241 = vld.sshfl [vmem:[#allocation1 + $0x20] sm:$0xff pattern:$0x75316420]
        %v242 = vld.sshfl [vmem:[#allocation1 + $0x28] sm:$0xff pattern:$0x75316420]
        %v243 = vld.sshfl [vmem:[#allocation1 + $0x30] sm:$0xff pattern:$0x75316420]
        %v244 = vld.sshfl [vmem:[#allocation1 + $0x38] sm:$0xff pattern:$0x75316420]
        %253 = vst [vmem:[#allocation2] sm:$0x7] %v237
        %254 = vst [vmem:[#allocation2 + $0x8] sm:$0x7] %v238
        %255 = vst [vmem:[#allocation2 + $0x10] sm:$0x7] %v239
        %256 = vst [vmem:[#allocation2 + $0x18] sm:$0x7] %v240
        %257 = vst [vmem:[#allocation2 + $0x20] sm:$0x7] %v241
        %258 = vst [vmem:[#allocation2 + $0x28] sm:$0x7] %v242
        %259 = vst [vmem:[#allocation2 + $0x30] sm:$0x7] %v243
        %260 = vst [vmem:[#allocation2 + $0x38] sm:$0x7] %v244
        %261 = vst [vmem:[#allocation1] ss:$2 sm:$0xff] %v222
        %s262 = scalar_lea.vmem [#allocation1], 16
        %263 = vst [vmem:[%s262] ss:$2 sm:$0xff] %v223
        %s264 = scalar_lea.vmem [#allocation1], 32
        %265 = vst [vmem:[%s264] ss:$2 sm:$0xff] %v224
        %s266 = scalar_lea.vmem [#allocation1], 48
        %267 = vst [vmem:[%s266] ss:$2 sm:$0xff] %v225
        %v268 = vld.sshfl [vmem:[#allocation1] sm:$0xff pattern:$0x75316420]
        %v269 = vld.sshfl [vmem:[#allocation1 + $0x8] sm:$0xff pattern:$0x75316420]
        %v270 = vld.sshfl [vmem:[#allocation1 + $0x10] sm:$0xff pattern:$0x75316420]
        %v271 = vld.sshfl [vmem:[#allocation1 + $0x18] sm:$0xff pattern:$0x75316420]
        %v272 = vld.sshfl [vmem:[#allocation1 + $0x20] sm:$0xff pattern:$0x75316420]
        %v273 = vld.sshfl [vmem:[#allocation1 + $0x28] sm:$0xff pattern:$0x75316420]
        %v274 = vld.sshfl [vmem:[#allocation1 + $0x30] sm:$0xff pattern:$0x75316420]
        %v275 = vld.sshfl [vmem:[#allocation1 + $0x38] sm:$0xff pattern:$0x75316420]
        %284 = vrot.lane.b32.xlu0 %v268, 127
        %v285 = vpop.permute.xlu0 %284
        %286 = vrot.lane.b32.xlu0 %v269, 127
        %v287 = vpop.permute.xlu0 %286
        %288 = vrot.lane.b32.xlu0 %v270, 127
        %v289 = vpop.permute.xlu0 %288
        %290 = vrot.lane.b32.xlu0 %v271, 127
        %v291 = vpop.permute.xlu0 %290
        %292 = vrot.lane.b32.xlu0 %v272, 127
        %v293 = vpop.permute.xlu0 %292
        %294 = vrot.lane.b32.xlu0 %v273, 127
        %v295 = vpop.permute.xlu0 %294
        %296 = vrot.lane.b32.xlu0 %v274, 127
        %v297 = vpop.permute.xlu0 %296
        %298 = vrot.lane.b32.xlu0 %v275, 127
        %v299 = vpop.permute.xlu0 %298
        %v300 = vlaneseq
        %v301 = vand.u32 %v300, 127
        %vm302 = vcmp.lt.s32.totalorder %v301, 127
        %v303 = vsel %vm302, %v297, %v299
        %v304 = vsel %vm302, %v295, %v297
        %v305 = vsel %vm302, %v293, %v295
        %v306 = vsel %vm302, %v291, %v293
        %v307 = vsel %vm302, %v289, %v291
        %v308 = vsel %vm302, %v287, %v289
        %v309 = vsel %vm302, %v285, %v287
        %v310 = vsel %vm302, %v299, %v285
        %v319 = vrot.slane %v309, 5
        %v320 = vrot.slane %v308, 5
        %v321 = vrot.slane %v307, 5
        %v322 = vrot.slane %v306, 5
        %v323 = vrot.slane %v305, 5
        %v324 = vrot.slane %v304, 5
        %v325 = vrot.slane %v303, 5
        %v326 = vrot.slane %v310, 5
        %335 = vst [vmem:[#allocation2] sm:$0x38] %v319
        %336 = vst [vmem:[#allocation2 + $0x8] sm:$0x38] %v320
        %337 = vst [vmem:[#allocation2 + $0x10] sm:$0x38] %v321
        %338 = vst [vmem:[#allocation2 + $0x18] sm:$0x38] %v322
        %339 = vst [vmem:[#allocation2 + $0x20] sm:$0x38] %v323
        %340 = vst [vmem:[#allocation2 + $0x28] sm:$0x38] %v324
        %341 = vst [vmem:[#allocation2 + $0x30] sm:$0x38] %v325
        %342 = vst [vmem:[#allocation2 + $0x38] sm:$0x38] %v326
        %343 = vst [vmem:[#allocation1] ss:$2 sm:$0xff] %v222
        %s344 = scalar_lea.vmem [#allocation1], 16
        %345 = vst [vmem:[%s344] ss:$2 sm:$0xff] %v223
        %s346 = scalar_lea.vmem [#allocation1], 32
        %347 = vst [vmem:[%s346] ss:$2 sm:$0xff] %v224
        %s348 = scalar_lea.vmem [#allocation1], 48
        %349 = vst [vmem:[%s348] ss:$2 sm:$0xff] %v225
        %v350 = vld.sshfl [vmem:[#allocation1] sm:$0xff pattern:$0x75316420]
        %v351 = vld.sshfl [vmem:[#allocation1 + $0x8] sm:$0xff pattern:$0x75316420]
        %v352 = vld.sshfl [vmem:[#allocation1 + $0x10] sm:$0xff pattern:$0x75316420]
        %v353 = vld.sshfl [vmem:[#allocation1 + $0x18] sm:$0xff pattern:$0x75316420]
        %v354 = vld.sshfl [vmem:[#allocation1 + $0x20] sm:$0xff pattern:$0x75316420]
        %v355 = vld.sshfl [vmem:[#allocation1 + $0x28] sm:$0xff pattern:$0x75316420]
        %v356 = vld.sshfl [vmem:[#allocation1 + $0x30] sm:$0xff pattern:$0x75316420]
        %v357 = vld.sshfl [vmem:[#allocation1 + $0x38] sm:$0xff pattern:$0x75316420]
        %366 = vrot.lane.b32.xlu0 %v350, 126
        %v367 = vpop.permute.xlu0 %366
        %368 = vrot.lane.b32.xlu0 %v351, 126
        %v369 = vpop.permute.xlu0 %368
        %370 = vrot.lane.b32.xlu0 %v352, 126
        %v371 = vpop.permute.xlu0 %370
        %372 = vrot.lane.b32.xlu0 %v353, 126
        %v373 = vpop.permute.xlu0 %372
        %374 = vrot.lane.b32.xlu0 %v354, 126
        %v375 = vpop.permute.xlu0 %374
        %376 = vrot.lane.b32.xlu0 %v355, 126
        %v377 = vpop.permute.xlu0 %376
        %378 = vrot.lane.b32.xlu0 %v356, 126
        %v379 = vpop.permute.xlu0 %378
        %380 = vrot.lane.b32.xlu0 %v357, 126
        %v381 = vpop.permute.xlu0 %380
        %vm382 = vcmp.lt.s32.totalorder %v301, 126
        %v383 = vsel %vm382, %v379, %v381
        %v384 = vsel %vm382, %v377, %v379
        %v385 = vsel %vm382, %v375, %v377
        %v386 = vsel %vm382, %v373, %v375
        %v387 = vsel %vm382, %v371, %v373
        %v388 = vsel %vm382, %v369, %v371
        %v389 = vsel %vm382, %v367, %v369
        %v390 = vsel %vm382, %v381, %v367
        %v399 = vrot.slane %v389, 2
        %v400 = vrot.slane %v388, 2
        %v401 = vrot.slane %v387, 2
        %v402 = vrot.slane %v386, 2
        %v403 = vrot.slane %v385, 2
        %v404 = vrot.slane %v384, 2
        %v405 = vrot.slane %v383, 2
        %v406 = vrot.slane %v390, 2
        %415 = vst [vmem:[#allocation2] sm:$0xc0] %v399
        %416 = vst [vmem:[#allocation2 + $0x8] sm:$0xc0] %v400
        %417 = vst [vmem:[#allocation2 + $0x10] sm:$0xc0] %v401
        %418 = vst [vmem:[#allocation2 + $0x18] sm:$0xc0] %v402
        %419 = vst [vmem:[#allocation2 + $0x20] sm:$0xc0] %v403
        %420 = vst [vmem:[#allocation2 + $0x28] sm:$0xc0] %v404
        %421 = vst [vmem:[#allocation2 + $0x30] sm:$0xc0] %v405
        %422 = vst [vmem:[#allocation2 + $0x38] sm:$0xc0] %v406
        %423 = vst [vmem:[#allocation2 + $0x40] sm:$0x1] %v399
        %424 = vst [vmem:[#allocation2 + $0x48] sm:$0x1] %v400
        %425 = vst [vmem:[#allocation2 + $0x50] sm:$0x1] %v401
        %426 = vst [vmem:[#allocation2 + $0x58] sm:$0x1] %v402
        %427 = vst [vmem:[#allocation2 + $0x60] sm:$0x1] %v403
        %428 = vst [vmem:[#allocation2 + $0x68] sm:$0x1] %v404
        %429 = vst [vmem:[#allocation2 + $0x70] sm:$0x1] %v405
        %430 = vst [vmem:[#allocation2 + $0x78] sm:$0x1] %v406
        %431 = vst [vmem:[#allocation1] ss:$2 sm:$0xff] %v222
        %s432 = scalar_lea.vmem [#allocation1], 16
        %433 = vst [vmem:[%s432] ss:$2 sm:$0xff] %v223
        %s434 = scalar_lea.vmem [#allocation1], 32
        %435 = vst [vmem:[%s434] ss:$2 sm:$0xff] %v224
        %s436 = scalar_lea.vmem [#allocation1], 48
        %437 = vst [vmem:[%s436] ss:$2 sm:$0xff] %v225
        %v438 = vld.sshfl [vmem:[#allocation1] sm:$0xff pattern:$0x75316420]
        %v439 = vld.sshfl [vmem:[#allocation1 + $0x8] sm:$0xff pattern:$0x75316420]
        %v440 = vld.sshfl [vmem:[#allocation1 + $0x10] sm:$0xff pattern:$0x75316420]
        %v441 = vld.sshfl [vmem:[#allocation1 + $0x18] sm:$0xff pattern:$0x75316420]
        %v442 = vld.sshfl [vmem:[#allocation1 + $0x20] sm:$0xff pattern:$0x75316420]
        %v443 = vld.sshfl [vmem:[#allocation1 + $0x28] sm:$0xff pattern:$0x75316420]
        %v444 = vld.sshfl [vmem:[#allocation1 + $0x30] sm:$0xff pattern:$0x75316420]
        %v445 = vld.sshfl [vmem:[#allocation1 + $0x38] sm:$0xff pattern:$0x75316420]
        %454 = vrot.lane.b32.xlu0 %v438, 125
        %v455 = vpop.permute.xlu0 %454
        %456 = vrot.lane.b32.xlu0 %v439, 125
        %v457 = vpop.permute.xlu0 %456
        %458 = vrot.lane.b32.xlu0 %v440, 125
        %v459 = vpop.permute.xlu0 %458
        %460 = vrot.lane.b32.xlu0 %v441, 125
        %v461 = vpop.permute.xlu0 %460
        %462 = vrot.lane.b32.xlu0 %v442, 125
        %v463 = vpop.permute.xlu0 %462
        %464 = vrot.lane.b32.xlu0 %v443, 125
        %v465 = vpop.permute.xlu0 %464
        %466 = vrot.lane.b32.xlu0 %v444, 125
        %v467 = vpop.permute.xlu0 %466
        %468 = vrot.lane.b32.xlu0 %v445, 125
        %v469 = vpop.permute.xlu0 %468
        %vm470 = vcmp.lt.s32.totalorder %v301, 125
        %v471 = vsel %vm470, %v467, %v469
        %v472 = vsel %vm470, %v465, %v467
        %v473 = vsel %vm470, %v463, %v465
        %v474 = vsel %vm470, %v461, %v463
        %v475 = vsel %vm470, %v459, %v461
        %v476 = vsel %vm470, %v457, %v459
        %v477 = vsel %vm470, %v455, %v457
        %v478 = vsel %vm470, %v469, %v455
        %v487 = vrot.slane %v477, 7
        %v488 = vrot.slane %v476, 7
        %v489 = vrot.slane %v475, 7
        %v490 = vrot.slane %v474, 7
        %v491 = vrot.slane %v473, 7
        %v492 = vrot.slane %v472, 7
        %v493 = vrot.slane %v471, 7
        %v494 = vrot.slane %v478, 7
        %503 = vst [vmem:[#allocation2 + $0x40] sm:$0xe] %v487
        %504 = vst [vmem:[#allocation2 + $0x48] sm:$0xe] %v488
        %505 = vst [vmem:[#allocation2 + $0x50] sm:$0xe] %v489
        %506 = vst [vmem:[#allocation2 + $0x58] sm:$0xe] %v490
        %507 = vst [vmem:[#allocation2 + $0x60] sm:$0xe] %v491
        %508 = vst [vmem:[#allocation2 + $0x68] sm:$0xe] %v492
        %509 = vst [vmem:[#allocation2 + $0x70] sm:$0xe] %v493
        %510 = vst [vmem:[#allocation2 + $0x78] sm:$0xe] %v494
        %511 = vst [vmem:[#allocation1] ss:$2 sm:$0xff] %v222
        %s512 = scalar_lea.vmem [#allocation1], 16
        %513 = vst [vmem:[%s512] ss:$2 sm:$0xff] %v223
        %s514 = scalar_lea.vmem [#allocation1], 32
        %515 = vst [vmem:[%s514] ss:$2 sm:$0xff] %v224
        %s516 = scalar_lea.vmem [#allocation1], 48
        %517 = vst [vmem:[%s516] ss:$2 sm:$0xff] %v225
        %v518 = vld.sshfl [vmem:[#allocation1] sm:$0xff pattern:$0x75316420]
        %v519 = vld.sshfl [vmem:[#allocation1 + $0x8] sm:$0xff pattern:$0x75316420]
        %v520 = vld.sshfl [vmem:[#allocation1 + $0x10] sm:$0xff pattern:$0x75316420]
        %v521 = vld.sshfl [vmem:[#allocation1 + $0x18] sm:$0xff pattern:$0x75316420]
        %v522 = vld.sshfl [vmem:[#allocation1 + $0x20] sm:$0xff pattern:$0x75316420]
        %v523 = vld.sshfl [vmem:[#allocation1 + $0x28] sm:$0xff pattern:$0x75316420]
        %v524 = vld.sshfl [vmem:[#allocation1 + $0x30] sm:$0xff pattern:$0x75316420]
        %v525 = vld.sshfl [vmem:[#allocation1 + $0x38] sm:$0xff pattern:$0x75316420]
        %534 = vrot.lane.b32.xlu0 %v518, 124
        %v535 = vpop.permute.xlu0 %534
        %536 = vrot.lane.b32.xlu0 %v519, 124
        %v537 = vpop.permute.xlu0 %536
        %538 = vrot.lane.b32.xlu0 %v520, 124
        %v539 = vpop.permute.xlu0 %538
        %540 = vrot.lane.b32.xlu0 %v521, 124
        %v541 = vpop.permute.xlu0 %540
        %542 = vrot.lane.b32.xlu0 %v522, 124
        %v543 = vpop.permute.xlu0 %542
        %544 = vrot.lane.b32.xlu0 %v523, 124
        %v545 = vpop.permute.xlu0 %544
        %546 = vrot.lane.b32.xlu0 %v524, 124
        %v547 = vpop.permute.xlu0 %546
        %548 = vrot.lane.b32.xlu0 %v525, 124
        %v549 = vpop.permute.xlu0 %548
        %vm550 = vcmp.lt.s32.totalorder %v301, 124
        %v551 = vsel %vm550, %v547, %v549
        %v552 = vsel %vm550, %v545, %v547
        %v553 = vsel %vm550, %v543, %v545
        %v554 = vsel %vm550, %v541, %v543
        %v555 = vsel %vm550, %v539, %v541
        %v556 = vsel %vm550, %v537, %v539
        %v557 = vsel %vm550, %v535, %v537
        %v558 = vsel %vm550, %v549, %v535
        %v567 = vrot.slane %v557, 4
        %v568 = vrot.slane %v556, 4
        %v569 = vrot.slane %v555, 4
        %v570 = vrot.slane %v554, 4
        %v571 = vrot.slane %v553, 4
        %v572 = vrot.slane %v552, 4
        %v573 = vrot.slane %v551, 4
        %v574 = vrot.slane %v558, 4
        %583 = vst [vmem:[#allocation2 + $0x40] sm:$0x70] %v567
        %584 = vst [vmem:[#allocation2 + $0x48] sm:$0x70] %v568
        %585 = vst [vmem:[#allocation2 + $0x50] sm:$0x70] %v569
        %586 = vst [vmem:[#allocation2 + $0x58] sm:$0x70] %v570
        %587 = vst [vmem:[#allocation2 + $0x60] sm:$0x70] %v571
        %588 = vst [vmem:[#allocation2 + $0x68] sm:$0x70] %v572
        %589 = vst [vmem:[#allocation2 + $0x70] sm:$0x70] %v573
        %590 = vst [vmem:[#allocation2 + $0x78] sm:$0x70] %v574
        %591 = vst [vmem:[#allocation1] ss:$2 sm:$0xff] %v222
        %s592 = scalar_lea.vmem [#allocation1], 16
        %593 = vst [vmem:[%s592] ss:$2 sm:$0xff] %v223
        %s594 = scalar_lea.vmem [#allocation1], 32
        %595 = vst [vmem:[%s594] ss:$2 sm:$0xff] %v224
        %s596 = scalar_lea.vmem [#allocation1], 48
        %597 = vst [vmem:[%s596] ss:$2 sm:$0xff] %v225
        %v598 = vld.sshfl [vmem:[#allocation1] sm:$0xff pattern:$0x75316420]
        %v599 = vld.sshfl [vmem:[#allocation1 + $0x8] sm:$0xff pattern:$0x75316420]
        %v600 = vld.sshfl [vmem:[#allocation1 + $0x10] sm:$0xff pattern:$0x75316420]
        %v601 = vld.sshfl [vmem:[#allocation1 + $0x18] sm:$0xff pattern:$0x75316420]
        %v602 = vld.sshfl [vmem:[#allocation1 + $0x20] sm:$0xff pattern:$0x75316420]
        %v603 = vld.sshfl [vmem:[#allocation1 + $0x28] sm:$0xff pattern:$0x75316420]
        %v604 = vld.sshfl [vmem:[#allocation1 + $0x30] sm:$0xff pattern:$0x75316420]
        %v605 = vld.sshfl [vmem:[#allocation1 + $0x38] sm:$0xff pattern:$0x75316420]
        %614 = vrot.lane.b32.xlu0 %v598, 96
        %v615 = vpop.permute.xlu0 %614
        %616 = vrot.lane.b32.xlu0 %v599, 96
        %v617 = vpop.permute.xlu0 %616
        %618 = vrot.lane.b32.xlu0 %v600, 96
        %v619 = vpop.permute.xlu0 %618
        %620 = vrot.lane.b32.xlu0 %v601, 96
        %v621 = vpop.permute.xlu0 %620
        %622 = vrot.lane.b32.xlu0 %v602, 96
        %v623 = vpop.permute.xlu0 %622
        %624 = vrot.lane.b32.xlu0 %v603, 96
        %v625 = vpop.permute.xlu0 %624
        %626 = vrot.lane.b32.xlu0 %v604, 96
        %v627 = vpop.permute.xlu0 %626
        %628 = vrot.lane.b32.xlu0 %v605, 96
        %v629 = vpop.permute.xlu0 %628
        %vm630 = vcmp.lt.s32.totalorder %v301, 96
        %v631 = vsel %vm630, %v627, %v629
        %v632 = vsel %vm630, %v625, %v627
        %v633 = vsel %vm630, %v623, %v625
        %v634 = vsel %vm630, %v621, %v623
        %v635 = vsel %vm630, %v619, %v621
        %v636 = vsel %vm630, %v617, %v619
        %v637 = vsel %vm630, %v615, %v617
        %v638 = vsel %vm630, %v629, %v615
        %v647 = vrot.slane %v637, 1
        %v648 = vrot.slane %v636, 1
        %v649 = vrot.slane %v635, 1
        %v650 = vrot.slane %v634, 1
        %v651 = vrot.slane %v633, 1
        %v652 = vrot.slane %v632, 1
        %v653 = vrot.slane %v631, 1
        %v654 = vrot.slane %v638, 1
        %663 = vst [vmem:[#allocation2 + $0x40] sm:$0x80] %v647
        %664 = vst [vmem:[#allocation2 + $0x48] sm:$0x80] %v648
        %665 = vst [vmem:[#allocation2 + $0x50] sm:$0x80] %v649
        %666 = vst [vmem:[#allocation2 + $0x58] sm:$0x80] %v650
        %667 = vst [vmem:[#allocation2 + $0x60] sm:$0x80] %v651
        %668 = vst [vmem:[#allocation2 + $0x68] sm:$0x80] %v652
        %669 = vst [vmem:[#allocation2 + $0x70] sm:$0x80] %v653
        %670 = vst [vmem:[#allocation2 + $0x78] sm:$0x80] %v654
        %671 = vst [vmem:[#allocation2 + $0x80] sm:$0x3] %v647
        %672 = vst [vmem:[#allocation2 + $0x88] sm:$0x3] %v648
        %673 = vst [vmem:[#allocation2 + $0x90] sm:$0x3] %v649
        %674 = vst [vmem:[#allocation2 + $0x98] sm:$0x3] %v650
        %675 = vst [vmem:[#allocation2 + $0xa0] sm:$0x3] %v651
        %676 = vst [vmem:[#allocation2 + $0xa8] sm:$0x3] %v652
        %677 = vst [vmem:[#allocation2 + $0xb0] sm:$0x3] %v653
        %678 = vst [vmem:[#allocation2 + $0xb8] sm:$0x3] %v654
        %679 = vst [vmem:[#allocation1] ss:$2 sm:$0xff] %v222
        %s680 = scalar_lea.vmem [#allocation1], 16
        %681 = vst [vmem:[%s680] ss:$2 sm:$0xff] %v223
        %s682 = scalar_lea.vmem [#allocation1], 32
        %683 = vst [vmem:[%s682] ss:$2 sm:$0xff] %v224
        %s684 = scalar_lea.vmem [#allocation1], 48
        %685 = vst [vmem:[%s684] ss:$2 sm:$0xff] %v225
        %v686 = vld.sshfl [vmem:[#allocation1] sm:$0xff pattern:$0x75316420]
        %v687 = vld.sshfl [vmem:[#allocation1 + $0x8] sm:$0xff pattern:$0x75316420]
        %v688 = vld.sshfl [vmem:[#allocation1 + $0x10] sm:$0xff pattern:$0x75316420]
        %v689 = vld.sshfl [vmem:[#allocation1 + $0x18] sm:$0xff pattern:$0x75316420]
        %v690 = vld.sshfl [vmem:[#allocation1 + $0x20] sm:$0xff pattern:$0x75316420]
        %v691 = vld.sshfl [vmem:[#allocation1 + $0x28] sm:$0xff pattern:$0x75316420]
        %v692 = vld.sshfl [vmem:[#allocation1 + $0x30] sm:$0xff pattern:$0x75316420]
        %v693 = vld.sshfl [vmem:[#allocation1 + $0x38] sm:$0xff pattern:$0x75316420]
        %702 = vrot.lane.b32.xlu0 %v686, 95
        %v703 = vpop.permute.xlu0 %702
        %704 = vrot.lane.b32.xlu0 %v687, 95
        %v705 = vpop.permute.xlu0 %704
        %706 = vrot.lane.b32.xlu0 %v688, 95
        %v707 = vpop.permute.xlu0 %706
        %708 = vrot.lane.b32.xlu0 %v689, 95
        %v709 = vpop.permute.xlu0 %708
        %710 = vrot.lane.b32.xlu0 %v690, 95
        %v711 = vpop.permute.xlu0 %710
        %712 = vrot.lane.b32.xlu0 %v691, 95
        %v713 = vpop.permute.xlu0 %712
        %714 = vrot.lane.b32.xlu0 %v692, 95
        %v715 = vpop.permute.xlu0 %714
        %716 = vrot.lane.b32.xlu0 %v693, 95
        %v717 = vpop.permute.xlu0 %716
        %vm718 = vcmp.lt.s32.totalorder %v301, 95
        %v719 = vsel %vm718, %v715, %v717
        %v720 = vsel %vm718, %v713, %v715
        %v721 = vsel %vm718, %v711, %v713
        %v722 = vsel %vm718, %v709, %v711
        %v723 = vsel %vm718, %v707, %v709
        %v724 = vsel %vm718, %v705, %v707
        %v725 = vsel %vm718, %v703, %v705
        %v726 = vsel %vm718, %v717, %v703
        %v735 = vrot.slane %v725, 6
        %v736 = vrot.slane %v724, 6
        %v737 = vrot.slane %v723, 6
        %v738 = vrot.slane %v722, 6
        %v739 = vrot.slane %v721, 6
        %v740 = vrot.slane %v720, 6
        %v741 = vrot.slane %v719, 6
        %v742 = vrot.slane %v726, 6
        %751 = vst [vmem:[#allocation2 + $0x80] sm:$0x1c] %v735
        %752 = vst [vmem:[#allocation2 + $0x88] sm:$0x1c] %v736
        %753 = vst [vmem:[#allocation2 + $0x90] sm:$0x1c] %v737
        %754 = vst [vmem:[#allocation2 + $0x98] sm:$0x1c] %v738
        %755 = vst [vmem:[#allocation2 + $0xa0] sm:$0x1c] %v739
        %756 = vst [vmem:[#allocation2 + $0xa8] sm:$0x1c] %v740
        %757 = vst [vmem:[#allocation2 + $0xb0] sm:$0x1c] %v741
        %758 = vst [vmem:[#allocation2 + $0xb8] sm:$0x1c] %v742
        %759 = vst [vmem:[#allocation1] ss:$2 sm:$0xff] %v222
        %s760 = scalar_lea.vmem [#allocation1], 16
        %761 = vst [vmem:[%s760] ss:$2 sm:$0xff] %v223
        %s762 = scalar_lea.vmem [#allocation1], 32
        %763 = vst [vmem:[%s762] ss:$2 sm:$0xff] %v224
        %s764 = scalar_lea.vmem [#allocation1], 48
        %765 = vst [vmem:[%s764] ss:$2 sm:$0xff] %v225
        %v766 = vld.sshfl [vmem:[#allocation1] sm:$0xff pattern:$0x75316420]
        %v767 = vld.sshfl [vmem:[#allocation1 + $0x8] sm:$0xff pattern:$0x75316420]
        %v768 = vld.sshfl [vmem:[#allocation1 + $0x10] sm:$0xff pattern:$0x75316420]
        %v769 = vld.sshfl [vmem:[#allocation1 + $0x18] sm:$0xff pattern:$0x75316420]
        %v770 = vld.sshfl [vmem:[#allocation1 + $0x20] sm:$0xff pattern:$0x75316420]
        %v771 = vld.sshfl [vmem:[#allocation1 + $0x28] sm:$0xff pattern:$0x75316420]
        %v772 = vld.sshfl [vmem:[#allocation1 + $0x30] sm:$0xff pattern:$0x75316420]
        %v773 = vld.sshfl [vmem:[#allocation1 + $0x38] sm:$0xff pattern:$0x75316420]
        %782 = vrot.lane.b32.xlu0 %v766, 94
        %v783 = vpop.permute.xlu0 %782
        %784 = vrot.lane.b32.xlu0 %v767, 94
        %v785 = vpop.permute.xlu0 %784
        %786 = vrot.lane.b32.xlu0 %v768, 94
        %v787 = vpop.permute.xlu0 %786
        %788 = vrot.lane.b32.xlu0 %v769, 94
        %v789 = vpop.permute.xlu0 %788
        %790 = vrot.lane.b32.xlu0 %v770, 94
        %v791 = vpop.permute.xlu0 %790
        %792 = vrot.lane.b32.xlu0 %v771, 94
        %v793 = vpop.permute.xlu0 %792
        %794 = vrot.lane.b32.xlu0 %v772, 94
        %v795 = vpop.permute.xlu0 %794
        %796 = vrot.lane.b32.xlu0 %v773, 94
        %v797 = vpop.permute.xlu0 %796
        %vm798 = vcmp.lt.s32.totalorder %v301, 94
        %v799 = vsel %vm798, %v795, %v797
        %v800 = vsel %vm798, %v793, %v795
        %v801 = vsel %vm798, %v791, %v793
        %v802 = vsel %vm798, %v789, %v791
        %v803 = vsel %vm798, %v787, %v789
        %v804 = vsel %vm798, %v785, %v787
        %v805 = vsel %vm798, %v783, %v785
        %v806 = vsel %vm798, %v797, %v783
        %v815 = vrot.slane %v805, 3
        %v816 = vrot.slane %v804, 3
        %v817 = vrot.slane %v803, 3
        %v818 = vrot.slane %v802, 3
        %v819 = vrot.slane %v801, 3
        %v820 = vrot.slane %v800, 3
        %v821 = vrot.slane %v799, 3
        %v822 = vrot.slane %v806, 3
        %831 = vst [vmem:[#allocation2 + $0x80] sm:$0xe0] %v815
        %832 = vst [vmem:[#allocation2 + $0x88] sm:$0xe0] %v816
        %833 = vst [vmem:[#allocation2 + $0x90] sm:$0xe0] %v817
        %834 = vst [vmem:[#allocation2 + $0x98] sm:$0xe0] %v818
        %835 = vst [vmem:[#allocation2 + $0xa0] sm:$0xe0] %v819
        %836 = vst [vmem:[#allocation2 + $0xa8] sm:$0xe0] %v820
        %837 = vst [vmem:[#allocation2 + $0xb0] sm:$0xe0] %v821
        %838 = vst [vmem:[#allocation2 + $0xb8] sm:$0xe0] %v822
        %839 = vst [vmem:[#allocation1] ss:$2 sm:$0xff] %v222
        %s840 = scalar_lea.vmem [#allocation1], 16
        %841 = vst [vmem:[%s840] ss:$2 sm:$0xff] %v223
        %s842 = scalar_lea.vmem [#allocation1], 32
        %843 = vst [vmem:[%s842] ss:$2 sm:$0xff] %v224
        %s844 = scalar_lea.vmem [#allocation1], 48
        %845 = vst [vmem:[%s844] ss:$2 sm:$0xff] %v225
        %v846 = vld.sshfl [vmem:[#allocation1] sm:$0xff pattern:$0x75316420]
        %v847 = vld.sshfl [vmem:[#allocation1 + $0x8] sm:$0xff pattern:$0x75316420]
        %v848 = vld.sshfl [vmem:[#allocation1 + $0x10] sm:$0xff pattern:$0x75316420]
        %v849 = vld.sshfl [vmem:[#allocation1 + $0x18] sm:$0xff pattern:$0x75316420]
        %v850 = vld.sshfl [vmem:[#allocation1 + $0x20] sm:$0xff pattern:$0x75316420]
        %v851 = vld.sshfl [vmem:[#allocation1 + $0x28] sm:$0xff pattern:$0x75316420]
        %v852 = vld.sshfl [vmem:[#allocation1 + $0x30] sm:$0xff pattern:$0x75316420]
        %v853 = vld.sshfl [vmem:[#allocation1 + $0x38] sm:$0xff pattern:$0x75316420]
        %862 = vrot.lane.b32.xlu0 %v846, 93
        %v863 = vpop.permute.xlu0 %862
        %864 = vrot.lane.b32.xlu0 %v847, 93
        %v865 = vpop.permute.xlu0 %864
        %866 = vrot.lane.b32.xlu0 %v848, 93
        %v867 = vpop.permute.xlu0 %866
        %868 = vrot.lane.b32.xlu0 %v849, 93
        %v869 = vpop.permute.xlu0 %868
        %870 = vrot.lane.b32.xlu0 %v850, 93
        %v871 = vpop.permute.xlu0 %870
        %872 = vrot.lane.b32.xlu0 %v851, 93
        %v873 = vpop.permute.xlu0 %872
        %874 = vrot.lane.b32.xlu0 %v852, 93
        %v875 = vpop.permute.xlu0 %874
        %876 = vrot.lane.b32.xlu0 %v853, 93
        %v877 = vpop.permute.xlu0 %876
        %vm878 = vcmp.lt.s32.totalorder %v301, 93
        %v879 = vsel %vm878, %v875, %v877
        %v880 = vsel %vm878, %v873, %v875
        %v881 = vsel %vm878, %v871, %v873
        %v882 = vsel %vm878, %v869, %v871
        %v883 = vsel %vm878, %v867, %v869
        %v884 = vsel %vm878, %v865, %v867
        %v885 = vsel %vm878, %v863, %v865
        %v886 = vsel %vm878, %v877, %v863
        %887 = vst [vmem:[#allocation2 + $0xc0] sm:$0x7] %v885
        %888 = vst [vmem:[#allocation2 + $0xc8] sm:$0x7] %v884
        %889 = vst [vmem:[#allocation2 + $0xd0] sm:$0x7] %v883
        %890 = vst [vmem:[#allocation2 + $0xd8] sm:$0x7] %v882
        %891 = vst [vmem:[#allocation2 + $0xe0] sm:$0x7] %v881
        %892 = vst [vmem:[#allocation2 + $0xe8] sm:$0x7] %v880
        %893 = vst [vmem:[#allocation2 + $0xf0] sm:$0x7] %v879
        %894 = vst [vmem:[#allocation2 + $0xf8] sm:$0x7] %v886
        %895 = vst [vmem:[#allocation1] ss:$2 sm:$0xff] %v222
        %s896 = scalar_lea.vmem [#allocation1], 16
        %897 = vst [vmem:[%s896] ss:$2 sm:$0xff] %v223
        %s898 = scalar_lea.vmem [#allocation1], 32
        %899 = vst [vmem:[%s898] ss:$2 sm:$0xff] %v224
        %s900 = scalar_lea.vmem [#allocation1], 48
        %901 = vst [vmem:[%s900] ss:$2 sm:$0xff] %v225
        %v902 = vld.sshfl [vmem:[#allocation1] sm:$0xff pattern:$0x75316420]
        %v903 = vld.sshfl [vmem:[#allocation1 + $0x8] sm:$0xff pattern:$0x75316420]
        %v904 = vld.sshfl [vmem:[#allocation1 + $0x10] sm:$0xff pattern:$0x75316420]
        %v905 = vld.sshfl [vmem:[#allocation1 + $0x18] sm:$0xff pattern:$0x75316420]
        %v906 = vld.sshfl [vmem:[#allocation1 + $0x20] sm:$0xff pattern:$0x75316420]
        %v907 = vld.sshfl [vmem:[#allocation1 + $0x28] sm:$0xff pattern:$0x75316420]
        %v908 = vld.sshfl [vmem:[#allocation1 + $0x30] sm:$0xff pattern:$0x75316420]
        %v909 = vld.sshfl [vmem:[#allocation1 + $0x38] sm:$0xff pattern:$0x75316420]
        %918 = vrot.lane.b32.xlu0 %v902, 92
        %v919 = vpop.permute.xlu0 %918
        %920 = vrot.lane.b32.xlu0 %v903, 92
        %v921 = vpop.permute.xlu0 %920
        %922 = vrot.lane.b32.xlu0 %v904, 92
        %v923 = vpop.permute.xlu0 %922
        %924 = vrot.lane.b32.xlu0 %v905, 92
        %v925 = vpop.permute.xlu0 %924
        %926 = vrot.lane.b32.xlu0 %v906, 92
        %v927 = vpop.permute.xlu0 %926
        %928 = vrot.lane.b32.xlu0 %v907, 92
        %v929 = vpop.permute.xlu0 %928
        %930 = vrot.lane.b32.xlu0 %v908, 92
        %v931 = vpop.permute.xlu0 %930
        %932 = vrot.lane.b32.xlu0 %v909, 92
        %v933 = vpop.permute.xlu0 %932
        %vm934 = vcmp.lt.s32.totalorder %v301, 92
        %v935 = vsel %vm934, %v931, %v933
        %v936 = vsel %vm934, %v929, %v931
        %v937 = vsel %vm934, %v927, %v929
        %v938 = vsel %vm934, %v925, %v927
        %v939 = vsel %vm934, %v923, %v925
        %v940 = vsel %vm934, %v921, %v923
        %v941 = vsel %vm934, %v919, %v921
        %v942 = vsel %vm934, %v933, %v919
        %v951 = vrot.slane %v941, 5
        %v952 = vrot.slane %v940, 5
        %v953 = vrot.slane %v939, 5
        %v954 = vrot.slane %v938, 5
        %v955 = vrot.slane %v937, 5
        %v956 = vrot.slane %v936, 5
        %v957 = vrot.slane %v935, 5
        %v958 = vrot.slane %v942, 5
        %967 = vst [vmem:[#allocation2 + $0xc0] sm:$0x38] %v951
        %968 = vst [vmem:[#allocation2 + $0xc8] sm:$0x38] %v952
        %969 = vst [vmem:[#allocation2 + $0xd0] sm:$0x38] %v953
        %970 = vst [vmem:[#allocation2 + $0xd8] sm:$0x38] %v954
        %971 = vst [vmem:[#allocation2 + $0xe0] sm:$0x38] %v955
        %972 = vst [vmem:[#allocation2 + $0xe8] sm:$0x38] %v956
        %973 = vst [vmem:[#allocation2 + $0xf0] sm:$0x38] %v957
        %974 = vst [vmem:[#allocation2 + $0xf8] sm:$0x38] %v958
        %975 = vst [vmem:[#allocation1] ss:$2 sm:$0xff] %v222
        %s976 = scalar_lea.vmem [#allocation1], 16
        %977 = vst [vmem:[%s976] ss:$2 sm:$0xff] %v223
        %s978 = scalar_lea.vmem [#allocation1], 32
        %979 = vst [vmem:[%s978] ss:$2 sm:$0xff] %v224
        %s980 = scalar_lea.vmem [#allocation1], 48
        %981 = vst [vmem:[%s980] ss:$2 sm:$0xff] %v225
        %v982 = vld.sshfl [vmem:[#allocation1] sm:$0xff pattern:$0x75316420]
        %v983 = vld.sshfl [vmem:[#allocation1 + $0x8] sm:$0xff pattern:$0x75316420]
        %v984 = vld.sshfl [vmem:[#allocation1 + $0x10] sm:$0xff pattern:$0x75316420]
        %v985 = vld.sshfl [vmem:[#allocation1 + $0x18] sm:$0xff pattern:$0x75316420]
        %v986 = vld.sshfl [vmem:[#allocation1 + $0x20] sm:$0xff pattern:$0x75316420]
        %v987 = vld.sshfl [vmem:[#allocation1 + $0x28] sm:$0xff pattern:$0x75316420]
        %v988 = vld.sshfl [vmem:[#allocation1 + $0x30] sm:$0xff pattern:$0x75316420]
        %v989 = vld.sshfl [vmem:[#allocation1 + $0x38] sm:$0xff pattern:$0x75316420]
        %998 = vrot.lane.b32.xlu0 %v982, 64
        %v999 = vpop.permute.xlu0 %998
        %1000 = vrot.lane.b32.xlu0 %v983, 64
        %v1001 = vpop.permute.xlu0 %1000
        %1002 = vrot.lane.b32.xlu0 %v984, 64
        %v1003 = vpop.permute.xlu0 %1002
        %1004 = vrot.lane.b32.xlu0 %v985, 64
        %v1005 = vpop.permute.xlu0 %1004
        %1006 = vrot.lane.b32.xlu0 %v986, 64
        %v1007 = vpop.permute.xlu0 %1006
        %1008 = vrot.lane.b32.xlu0 %v987, 64
        %v1009 = vpop.permute.xlu0 %1008
        %1010 = vrot.lane.b32.xlu0 %v988, 64
        %v1011 = vpop.permute.xlu0 %1010
        %1012 = vrot.lane.b32.xlu0 %v989, 64
        %v1013 = vpop.permute.xlu0 %1012
        %vm1014 = vcmp.lt.s32.totalorder %v301, 64
        %v1015 = vsel %vm1014, %v1011, %v1013
        %v1016 = vsel %vm1014, %v1009, %v1011
        %v1017 = vsel %vm1014, %v1007, %v1009
        %v1018 = vsel %vm1014, %v1005, %v1007
        %v1019 = vsel %vm1014, %v1003, %v1005
        %v1020 = vsel %vm1014, %v1001, %v1003
        %v1021 = vsel %vm1014, %v999, %v1001
        %v1022 = vsel %vm1014, %v1013, %v999
        %v1031 = vrot.slane %v1021, 2
        %v1032 = vrot.slane %v1020, 2
        %v1033 = vrot.slane %v1019, 2
        %v1034 = vrot.slane %v1018, 2
        %v1035 = vrot.slane %v1017, 2
        %v1036 = vrot.slane %v1016, 2
        %v1037 = vrot.slane %v1015, 2
        %v1038 = vrot.slane %v1022, 2
        %1047 = vst [vmem:[#allocation2 + $0xc0] sm:$0xc0] %v1031
        %1048 = vst [vmem:[#allocation2 + $0xc8] sm:$0xc0] %v1032
        %1049 = vst [vmem:[#allocation2 + $0xd0] sm:$0xc0] %v1033
        %1050 = vst [vmem:[#allocation2 + $0xd8] sm:$0xc0] %v1034
        %1051 = vst [vmem:[#allocation2 + $0xe0] sm:$0xc0] %v1035
        %1052 = vst [vmem:[#allocation2 + $0xe8] sm:$0xc0] %v1036
        %1053 = vst [vmem:[#allocation2 + $0xf0] sm:$0xc0] %v1037
        %1054 = vst [vmem:[#allocation2 + $0xf8] sm:$0xc0] %v1038
        %1055 = vst [vmem:[#allocation2 + $0x100] sm:$0x1] %v1031
        %1056 = vst [vmem:[#allocation2 + $0x108] sm:$0x1] %v1032
        %1057 = vst [vmem:[#allocation2 + $0x110] sm:$0x1] %v1033
        %1058 = vst [vmem:[#allocation2 + $0x118] sm:$0x1] %v1034
        %1059 = vst [vmem:[#allocation2 + $0x120] sm:$0x1] %v1035
        %1060 = vst [vmem:[#allocation2 + $0x128] sm:$0x1] %v1036
        %1061 = vst [vmem:[#allocation2 + $0x130] sm:$0x1] %v1037
        %1062 = vst [vmem:[#allocation2 + $0x138] sm:$0x1] %v1038
        %1063 = vst [vmem:[#allocation1] ss:$2 sm:$0xff] %v222
        %s1064 = scalar_lea.vmem [#allocation1], 16
        %1065 = vst [vmem:[%s1064] ss:$2 sm:$0xff] %v223
        %s1066 = scalar_lea.vmem [#allocation1], 32
        %1067 = vst [vmem:[%s1066] ss:$2 sm:$0xff] %v224
        %s1068 = scalar_lea.vmem [#allocation1], 48
        %1069 = vst [vmem:[%s1068] ss:$2 sm:$0xff] %v225
        %v1070 = vld.sshfl [vmem:[#allocation1] sm:$0xff pattern:$0x75316420]
        %v1071 = vld.sshfl [vmem:[#allocation1 + $0x8] sm:$0xff pattern:$0x75316420]
        %v1072 = vld.sshfl [vmem:[#allocation1 + $0x10] sm:$0xff pattern:$0x75316420]
        %v1073 = vld.sshfl [vmem:[#allocation1 + $0x18] sm:$0xff pattern:$0x75316420]
        %v1074 = vld.sshfl [vmem:[#allocation1 + $0x20] sm:$0xff pattern:$0x75316420]
        %v1075 = vld.sshfl [vmem:[#allocation1 + $0x28] sm:$0xff pattern:$0x75316420]
        %v1076 = vld.sshfl [vmem:[#allocation1 + $0x30] sm:$0xff pattern:$0x75316420]
        %v1077 = vld.sshfl [vmem:[#allocation1 + $0x38] sm:$0xff pattern:$0x75316420]
        %1086 = vrot.lane.b32.xlu0 %v1070, 63
        %v1087 = vpop.permute.xlu0 %1086
        %1088 = vrot.lane.b32.xlu0 %v1071, 63
        %v1089 = vpop.permute.xlu0 %1088
        %1090 = vrot.lane.b32.xlu0 %v1072, 63
        %v1091 = vpop.permute.xlu0 %1090
        %1092 = vrot.lane.b32.xlu0 %v1073, 63
        %v1093 = vpop.permute.xlu0 %1092
        %1094 = vrot.lane.b32.xlu0 %v1074, 63
        %v1095 = vpop.permute.xlu0 %1094
        %1096 = vrot.lane.b32.xlu0 %v1075, 63
        %v1097 = vpop.permute.xlu0 %1096
        %1098 = vrot.lane.b32.xlu0 %v1076, 63
        %v1099 = vpop.permute.xlu0 %1098
        %1100 = vrot.lane.b32.xlu0 %v1077, 63
        %v1101 = vpop.permute.xlu0 %1100
        %vm1102 = vcmp.lt.s32.totalorder %v301, 63
        %v1103 = vsel %vm1102, %v1099, %v1101
        %v1104 = vsel %vm1102, %v1097, %v1099
        %v1105 = vsel %vm1102, %v1095, %v1097
        %v1106 = vsel %vm1102, %v1093, %v1095
        %v1107 = vsel %vm1102, %v1091, %v1093
        %v1108 = vsel %vm1102, %v1089, %v1091
        %v1109 = vsel %vm1102, %v1087, %v1089
        %v1110 = vsel %vm1102, %v1101, %v1087
        %v1119 = vrot.slane %v1109, 7
        %v1120 = vrot.slane %v1108, 7
        %v1121 = vrot.slane %v1107, 7
        %v1122 = vrot.slane %v1106, 7
        %v1123 = vrot.slane %v1105, 7
        %v1124 = vrot.slane %v1104, 7
        %v1125 = vrot.slane %v1103, 7
        %v1126 = vrot.slane %v1110, 7
        %1135 = vst [vmem:[#allocation2 + $0x100] sm:$0xe] %v1119
        %1136 = vst [vmem:[#allocation2 + $0x108] sm:$0xe] %v1120
        %1137 = vst [vmem:[#allocation2 + $0x110] sm:$0xe] %v1121
        %1138 = vst [vmem:[#allocation2 + $0x118] sm:$0xe] %v1122
        %1139 = vst [vmem:[#allocation2 + $0x120] sm:$0xe] %v1123
        %1140 = vst [vmem:[#allocation2 + $0x128] sm:$0xe] %v1124
        %1141 = vst [vmem:[#allocation2 + $0x130] sm:$0xe] %v1125
        %1142 = vst [vmem:[#allocation2 + $0x138] sm:$0xe] %v1126
        %1143 = vst [vmem:[#allocation1] ss:$2 sm:$0xff] %v222
        %s1144 = scalar_lea.vmem [#allocation1], 16
        %1145 = vst [vmem:[%s1144] ss:$2 sm:$0xff] %v223
        %s1146 = scalar_lea.vmem [#allocation1], 32
        %1147 = vst [vmem:[%s1146] ss:$2 sm:$0xff] %v224
        %s1148 = scalar_lea.vmem [#allocation1], 48
        %1149 = vst [vmem:[%s1148] ss:$2 sm:$0xff] %v225
        %v1150 = vld.sshfl [vmem:[#allocation1] sm:$0xff pattern:$0x75316420]
        %v1151 = vld.sshfl [vmem:[#allocation1 + $0x8] sm:$0xff pattern:$0x75316420]
        %v1152 = vld.sshfl [vmem:[#allocation1 + $0x10] sm:$0xff pattern:$0x75316420]
        %v1153 = vld.sshfl [vmem:[#allocation1 + $0x18] sm:$0xff pattern:$0x75316420]
        %v1154 = vld.sshfl [vmem:[#allocation1 + $0x20] sm:$0xff pattern:$0x75316420]
        %v1155 = vld.sshfl [vmem:[#allocation1 + $0x28] sm:$0xff pattern:$0x75316420]
        %v1156 = vld.sshfl [vmem:[#allocation1 + $0x30] sm:$0xff pattern:$0x75316420]
        %v1157 = vld.sshfl [vmem:[#allocation1 + $0x38] sm:$0xff pattern:$0x75316420]
        %1166 = vrot.lane.b32.xlu0 %v1150, 62
        %v1167 = vpop.permute.xlu0 %1166
        %1168 = vrot.lane.b32.xlu0 %v1151, 62
        %v1169 = vpop.permute.xlu0 %1168
        %1170 = vrot.lane.b32.xlu0 %v1152, 62
        %v1171 = vpop.permute.xlu0 %1170
        %1172 = vrot.lane.b32.xlu0 %v1153, 62
        %v1173 = vpop.permute.xlu0 %1172
        %1174 = vrot.lane.b32.xlu0 %v1154, 62
        %v1175 = vpop.permute.xlu0 %1174
        %1176 = vrot.lane.b32.xlu0 %v1155, 62
        %v1177 = vpop.permute.xlu0 %1176
        %1178 = vrot.lane.b32.xlu0 %v1156, 62
        %v1179 = vpop.permute.xlu0 %1178
        %1180 = vrot.lane.b32.xlu0 %v1157, 62
        %v1181 = vpop.permute.xlu0 %1180
        %vm1182 = vcmp.lt.s32.totalorder %v301, 62
        %v1183 = vsel %vm1182, %v1179, %v1181
        %v1184 = vsel %vm1182, %v1177, %v1179
        %v1185 = vsel %vm1182, %v1175, %v1177
        %v1186 = vsel %vm1182, %v1173, %v1175
        %v1187 = vsel %vm1182, %v1171, %v1173
        %v1188 = vsel %vm1182, %v1169, %v1171
        %v1189 = vsel %vm1182, %v1167, %v1169
        %v1190 = vsel %vm1182, %v1181, %v1167
        %v1199 = vrot.slane %v1189, 4
        %v1200 = vrot.slane %v1188, 4
        %v1201 = vrot.slane %v1187, 4
        %v1202 = vrot.slane %v1186, 4
        %v1203 = vrot.slane %v1185, 4
        %v1204 = vrot.slane %v1184, 4
        %v1205 = vrot.slane %v1183, 4
        %v1206 = vrot.slane %v1190, 4
        %1215 = vst [vmem:[#allocation2 + $0x100] sm:$0x70] %v1199
        %1216 = vst [vmem:[#allocation2 + $0x108] sm:$0x70] %v1200
        %1217 = vst [vmem:[#allocation2 + $0x110] sm:$0x70] %v1201
        %1218 = vst [vmem:[#allocation2 + $0x118] sm:$0x70] %v1202
        %1219 = vst [vmem:[#allocation2 + $0x120] sm:$0x70] %v1203
        %1220 = vst [vmem:[#allocation2 + $0x128] sm:$0x70] %v1204
        %1221 = vst [vmem:[#allocation2 + $0x130] sm:$0x70] %v1205
        %1222 = vst [vmem:[#allocation2 + $0x138] sm:$0x70] %v1206
        %1223 = vst [vmem:[#allocation1] ss:$2 sm:$0xff] %v222
        %s1224 = scalar_lea.vmem [#allocation1], 16
        %1225 = vst [vmem:[%s1224] ss:$2 sm:$0xff] %v223
        %s1226 = scalar_lea.vmem [#allocation1], 32
        %1227 = vst [vmem:[%s1226] ss:$2 sm:$0xff] %v224
        %s1228 = scalar_lea.vmem [#allocation1], 48
        %1229 = vst [vmem:[%s1228] ss:$2 sm:$0xff] %v225
        %v1230 = vld.sshfl [vmem:[#allocation1] sm:$0xff pattern:$0x75316420]
        %v1231 = vld.sshfl [vmem:[#allocation1 + $0x8] sm:$0xff pattern:$0x75316420]
        %v1232 = vld.sshfl [vmem:[#allocation1 + $0x10] sm:$0xff pattern:$0x75316420]
        %v1233 = vld.sshfl [vmem:[#allocation1 + $0x18] sm:$0xff pattern:$0x75316420]
        %v1234 = vld.sshfl [vmem:[#allocation1 + $0x20] sm:$0xff pattern:$0x75316420]
        %v1235 = vld.sshfl [vmem:[#allocation1 + $0x28] sm:$0xff pattern:$0x75316420]
        %v1236 = vld.sshfl [vmem:[#allocation1 + $0x30] sm:$0xff pattern:$0x75316420]
        %v1237 = vld.sshfl [vmem:[#allocation1 + $0x38] sm:$0xff pattern:$0x75316420]
        %1246 = vrot.lane.b32.xlu0 %v1230, 61
        %v1247 = vpop.permute.xlu0 %1246
        %1248 = vrot.lane.b32.xlu0 %v1231, 61
        %v1249 = vpop.permute.xlu0 %1248
        %1250 = vrot.lane.b32.xlu0 %v1232, 61
        %v1251 = vpop.permute.xlu0 %1250
        %1252 = vrot.lane.b32.xlu0 %v1233, 61
        %v1253 = vpop.permute.xlu0 %1252
        %1254 = vrot.lane.b32.xlu0 %v1234, 61
        %v1255 = vpop.permute.xlu0 %1254
        %1256 = vrot.lane.b32.xlu0 %v1235, 61
        %v1257 = vpop.permute.xlu0 %1256
        %1258 = vrot.lane.b32.xlu0 %v1236, 61
        %v1259 = vpop.permute.xlu0 %1258
        %1260 = vrot.lane.b32.xlu0 %v1237, 61
        %v1261 = vpop.permute.xlu0 %1260
        %vm1262 = vcmp.lt.s32.totalorder %v301, 61
        %v1263 = vsel %vm1262, %v1259, %v1261
        %v1264 = vsel %vm1262, %v1257, %v1259
        %v1265 = vsel %vm1262, %v1255, %v1257
        %v1266 = vsel %vm1262, %v1253, %v1255
        %v1267 = vsel %vm1262, %v1251, %v1253
        %v1268 = vsel %vm1262, %v1249, %v1251
        %v1269 = vsel %vm1262, %v1247, %v1249
        %v1270 = vsel %vm1262, %v1261, %v1247
        %v1279 = vrot.slane %v1269, 1
        %v1280 = vrot.slane %v1268, 1
        %v1281 = vrot.slane %v1267, 1
        %v1282 = vrot.slane %v1266, 1
        %v1283 = vrot.slane %v1265, 1
        %v1284 = vrot.slane %v1264, 1
        %v1285 = vrot.slane %v1263, 1
        %v1286 = vrot.slane %v1270, 1
        %1295 = vst [vmem:[#allocation2 + $0x100] sm:$0x80] %v1279
        %1296 = vst [vmem:[#allocation2 + $0x108] sm:$0x80] %v1280
        %1297 = vst [vmem:[#allocation2 + $0x110] sm:$0x80] %v1281
        %1298 = vst [vmem:[#allocation2 + $0x118] sm:$0x80] %v1282
        %1299 = vst [vmem:[#allocation2 + $0x120] sm:$0x80] %v1283
        %1300 = vst [vmem:[#allocation2 + $0x128] sm:$0x80] %v1284
        %1301 = vst [vmem:[#allocation2 + $0x130] sm:$0x80] %v1285
        %1302 = vst [vmem:[#allocation2 + $0x138] sm:$0x80] %v1286
        %1303 = vst [vmem:[#allocation2 + $0x140] sm:$0x3] %v1279
        %1304 = vst [vmem:[#allocation2 + $0x148] sm:$0x3] %v1280
        %1305 = vst [vmem:[#allocation2 + $0x150] sm:$0x3] %v1281
        %1306 = vst [vmem:[#allocation2 + $0x158] sm:$0x3] %v1282
        %1307 = vst [vmem:[#allocation2 + $0x160] sm:$0x3] %v1283
        %1308 = vst [vmem:[#allocation2 + $0x168] sm:$0x3] %v1284
        %1309 = vst [vmem:[#allocation2 + $0x170] sm:$0x3] %v1285
        %1310 = vst [vmem:[#allocation2 + $0x178] sm:$0x3] %v1286
        %1311 = vst [vmem:[#allocation1] ss:$2 sm:$0xff] %v222
        %s1312 = scalar_lea.vmem [#allocation1], 16
        %1313 = vst [vmem:[%s1312] ss:$2 sm:$0xff] %v223
        %s1314 = scalar_lea.vmem [#allocation1], 32
        %1315 = vst [vmem:[%s1314] ss:$2 sm:$0xff] %v224
        %s1316 = scalar_lea.vmem [#allocation1], 48
        %1317 = vst [vmem:[%s1316] ss:$2 sm:$0xff] %v225
        %v1318 = vld.sshfl [vmem:[#allocation1] sm:$0xff pattern:$0x75316420]
        %v1319 = vld.sshfl [vmem:[#allocation1 + $0x8] sm:$0xff pattern:$0x75316420]
        %v1320 = vld.sshfl [vmem:[#allocation1 + $0x10] sm:$0xff pattern:$0x75316420]
        %v1321 = vld.sshfl [vmem:[#allocation1 + $0x18] sm:$0xff pattern:$0x75316420]
        %v1322 = vld.sshfl [vmem:[#allocation1 + $0x20] sm:$0xff pattern:$0x75316420]
        %v1323 = vld.sshfl [vmem:[#allocation1 + $0x28] sm:$0xff pattern:$0x75316420]
        %v1324 = vld.sshfl [vmem:[#allocation1 + $0x30] sm:$0xff pattern:$0x75316420]
        %v1325 = vld.sshfl [vmem:[#allocation1 + $0x38] sm:$0xff pattern:$0x75316420]
        %1334 = vrot.lane.b32.xlu0 %v1318, 60
        %v1335 = vpop.permute.xlu0 %1334
        %1336 = vrot.lane.b32.xlu0 %v1319, 60
        %v1337 = vpop.permute.xlu0 %1336
        %1338 = vrot.lane.b32.xlu0 %v1320, 60
        %v1339 = vpop.permute.xlu0 %1338
        %1340 = vrot.lane.b32.xlu0 %v1321, 60
        %v1341 = vpop.permute.xlu0 %1340
        %1342 = vrot.lane.b32.xlu0 %v1322, 60
        %v1343 = vpop.permute.xlu0 %1342
        %1344 = vrot.lane.b32.xlu0 %v1323, 60
        %v1345 = vpop.permute.xlu0 %1344
        %1346 = vrot.lane.b32.xlu0 %v1324, 60
        %v1347 = vpop.permute.xlu0 %1346
        %1348 = vrot.lane.b32.xlu0 %v1325, 60
        %v1349 = vpop.permute.xlu0 %1348
        %vm1350 = vcmp.lt.s32.totalorder %v301, 60
        %v1351 = vsel %vm1350, %v1347, %v1349
        %v1352 = vsel %vm1350, %v1345, %v1347
        %v1353 = vsel %vm1350, %v1343, %v1345
        %v1354 = vsel %vm1350, %v1341, %v1343
        %v1355 = vsel %vm1350, %v1339, %v1341
        %v1356 = vsel %vm1350, %v1337, %v1339
        %v1357 = vsel %vm1350, %v1335, %v1337
        %v1358 = vsel %vm1350, %v1349, %v1335
        %v1367 = vrot.slane %v1357, 6
        %v1368 = vrot.slane %v1356, 6
        %v1369 = vrot.slane %v1355, 6
        %v1370 = vrot.slane %v1354, 6
        %v1371 = vrot.slane %v1353, 6
        %v1372 = vrot.slane %v1352, 6
        %v1373 = vrot.slane %v1351, 6
        %v1374 = vrot.slane %v1358, 6
        %1383 = vst [vmem:[#allocation2 + $0x140] sm:$0x1c] %v1367
        %1384 = vst [vmem:[#allocation2 + $0x148] sm:$0x1c] %v1368
        %1385 = vst [vmem:[#allocation2 + $0x150] sm:$0x1c] %v1369
        %1386 = vst [vmem:[#allocation2 + $0x158] sm:$0x1c] %v1370
        %1387 = vst [vmem:[#allocation2 + $0x160] sm:$0x1c] %v1371
        %1388 = vst [vmem:[#allocation2 + $0x168] sm:$0x1c] %v1372
        %1389 = vst [vmem:[#allocation2 + $0x170] sm:$0x1c] %v1373
        %1390 = vst [vmem:[#allocation2 + $0x178] sm:$0x1c] %v1374
        %1391 = vst [vmem:[#allocation1] ss:$2 sm:$0xff] %v222
        %s1392 = scalar_lea.vmem [#allocation1], 16
        %1393 = vst [vmem:[%s1392] ss:$2 sm:$0xff] %v223
        %s1394 = scalar_lea.vmem [#allocation1], 32
        %1395 = vst [vmem:[%s1394] ss:$2 sm:$0xff] %v224
        %s1396 = scalar_lea.vmem [#allocation1], 48
        %1397 = vst [vmem:[%s1396] ss:$2 sm:$0xff] %v225
        %v1398 = vld.sshfl [vmem:[#allocation1] sm:$0xff pattern:$0x75316420]
        %v1399 = vld.sshfl [vmem:[#allocation1 + $0x8] sm:$0xff pattern:$0x75316420]
        %v1400 = vld.sshfl [vmem:[#allocation1 + $0x10] sm:$0xff pattern:$0x75316420]
        %v1401 = vld.sshfl [vmem:[#allocation1 + $0x18] sm:$0xff pattern:$0x75316420]
        %v1402 = vld.sshfl [vmem:[#allocation1 + $0x20] sm:$0xff pattern:$0x75316420]
        %v1403 = vld.sshfl [vmem:[#allocation1 + $0x28] sm:$0xff pattern:$0x75316420]
        %v1404 = vld.sshfl [vmem:[#allocation1 + $0x30] sm:$0xff pattern:$0x75316420]
        %v1405 = vld.sshfl [vmem:[#allocation1 + $0x38] sm:$0xff pattern:$0x75316420]
        %1414 = vrot.lane.b32.xlu0 %v1398, 32
        %v1415 = vpop.permute.xlu0 %1414
        %1416 = vrot.lane.b32.xlu0 %v1399, 32
        %v1417 = vpop.permute.xlu0 %1416
        %1418 = vrot.lane.b32.xlu0 %v1400, 32
        %v1419 = vpop.permute.xlu0 %1418
        %1420 = vrot.lane.b32.xlu0 %v1401, 32
        %v1421 = vpop.permute.xlu0 %1420
        %1422 = vrot.lane.b32.xlu0 %v1402, 32
        %v1423 = vpop.permute.xlu0 %1422
        %1424 = vrot.lane.b32.xlu0 %v1403, 32
        %v1425 = vpop.permute.xlu0 %1424
        %1426 = vrot.lane.b32.xlu0 %v1404, 32
        %v1427 = vpop.permute.xlu0 %1426
        %1428 = vrot.lane.b32.xlu0 %v1405, 32
        %v1429 = vpop.permute.xlu0 %1428
        %vm1430 = vcmp.lt.s32.totalorder %v301, 32
        %v1431 = vsel %vm1430, %v1427, %v1429
        %v1432 = vsel %vm1430, %v1425, %v1427
        %v1433 = vsel %vm1430, %v1423, %v1425
        %v1434 = vsel %vm1430, %v1421, %v1423
        %v1435 = vsel %vm1430, %v1419, %v1421
        %v1436 = vsel %vm1430, %v1417, %v1419
        %v1437 = vsel %vm1430, %v1415, %v1417
        %v1438 = vsel %vm1430, %v1429, %v1415
        %v1447 = vrot.slane %v1437, 3
        %v1448 = vrot.slane %v1436, 3
        %v1449 = vrot.slane %v1435, 3
        %v1450 = vrot.slane %v1434, 3
        %v1451 = vrot.slane %v1433, 3
        %v1452 = vrot.slane %v1432, 3
        %v1453 = vrot.slane %v1431, 3
        %v1454 = vrot.slane %v1438, 3
        %1463 = vst [vmem:[#allocation2 + $0x140] sm:$0xe0] %v1447
        %1464 = vst [vmem:[#allocation2 + $0x148] sm:$0xe0] %v1448
        %1465 = vst [vmem:[#allocation2 + $0x150] sm:$0xe0] %v1449
        %1466 = vst [vmem:[#allocation2 + $0x158] sm:$0xe0] %v1450
        %1467 = vst [vmem:[#allocation2 + $0x160] sm:$0xe0] %v1451
        %1468 = vst [vmem:[#allocation2 + $0x168] sm:$0xe0] %v1452
        %1469 = vst [vmem:[#allocation2 + $0x170] sm:$0xe0] %v1453
        %1470 = vst [vmem:[#allocation2 + $0x178] sm:$0xe0] %v1454
        %1471 = vst [vmem:[#allocation1] ss:$2 sm:$0xff] %v222
        %s1472 = scalar_lea.vmem [#allocation1], 16
        %1473 = vst [vmem:[%s1472] ss:$2 sm:$0xff] %v223
        %s1474 = scalar_lea.vmem [#allocation1], 32
        %1475 = vst [vmem:[%s1474] ss:$2 sm:$0xff] %v224
        %s1476 = scalar_lea.vmem [#allocation1], 48
        %1477 = vst [vmem:[%s1476] ss:$2 sm:$0xff] %v225
        %v1478 = vld.sshfl [vmem:[#allocation1] sm:$0xff pattern:$0x75316420]
        %v1479 = vld.sshfl [vmem:[#allocation1 + $0x8] sm:$0xff pattern:$0x75316420]
        %v1480 = vld.sshfl [vmem:[#allocation1 + $0x10] sm:$0xff pattern:$0x75316420]
        %v1481 = vld.sshfl [vmem:[#allocation1 + $0x18] sm:$0xff pattern:$0x75316420]
        %v1482 = vld.sshfl [vmem:[#allocation1 + $0x20] sm:$0xff pattern:$0x75316420]
        %v1483 = vld.sshfl [vmem:[#allocation1 + $0x28] sm:$0xff pattern:$0x75316420]
        %v1484 = vld.sshfl [vmem:[#allocation1 + $0x30] sm:$0xff pattern:$0x75316420]
        %v1485 = vld.sshfl [vmem:[#allocation1 + $0x38] sm:$0xff pattern:$0x75316420]
        %1494 = vrot.lane.b32.xlu0 %v1478, 31
        %v1495 = vpop.permute.xlu0 %1494
        %1496 = vrot.lane.b32.xlu0 %v1479, 31
        %v1497 = vpop.permute.xlu0 %1496
        %1498 = vrot.lane.b32.xlu0 %v1480, 31
        %v1499 = vpop.permute.xlu0 %1498
        %1500 = vrot.lane.b32.xlu0 %v1481, 31
        %v1501 = vpop.permute.xlu0 %1500
        %1502 = vrot.lane.b32.xlu0 %v1482, 31
        %v1503 = vpop.permute.xlu0 %1502
        %1504 = vrot.lane.b32.xlu0 %v1483, 31
        %v1505 = vpop.permute.xlu0 %1504
        %1506 = vrot.lane.b32.xlu0 %v1484, 31
        %v1507 = vpop.permute.xlu0 %1506
        %1508 = vrot.lane.b32.xlu0 %v1485, 31
        %v1509 = vpop.permute.xlu0 %1508
        %vm1510 = vcmp.lt.s32.totalorder %v301, 31
        %v1511 = vsel %vm1510, %v1507, %v1509
        %v1512 = vsel %vm1510, %v1505, %v1507
        %v1513 = vsel %vm1510, %v1503, %v1505
        %v1514 = vsel %vm1510, %v1501, %v1503
        %v1515 = vsel %vm1510, %v1499, %v1501
        %v1516 = vsel %vm1510, %v1497, %v1499
        %v1517 = vsel %vm1510, %v1495, %v1497
        %v1518 = vsel %vm1510, %v1509, %v1495
        %1519 = vst [vmem:[#allocation2 + $0x180] sm:$0x7] %v1517
        %1520 = vst [vmem:[#allocation2 + $0x188] sm:$0x7] %v1516
        %1521 = vst [vmem:[#allocation2 + $0x190] sm:$0x7] %v1515
        %1522 = vst [vmem:[#allocation2 + $0x198] sm:$0x7] %v1514
        %1523 = vst [vmem:[#allocation2 + $0x1a0] sm:$0x7] %v1513
        %1524 = vst [vmem:[#allocation2 + $0x1a8] sm:$0x7] %v1512
        %1525 = vst [vmem:[#allocation2 + $0x1b0] sm:$0x7] %v1511
        %1526 = vst [vmem:[#allocation2 + $0x1b8] sm:$0x7] %v1518
        %1527 = vst [vmem:[#allocation1] ss:$2 sm:$0xff] %v222
        %s1528 = scalar_lea.vmem [#allocation1], 16
        %1529 = vst [vmem:[%s1528] ss:$2 sm:$0xff] %v223
        %s1530 = scalar_lea.vmem [#allocation1], 32
        %1531 = vst [vmem:[%s1530] ss:$2 sm:$0xff] %v224
        %s1532 = scalar_lea.vmem [#allocation1], 48
        %1533 = vst [vmem:[%s1532] ss:$2 sm:$0xff] %v225
        %v1534 = vld.sshfl [vmem:[#allocation1] sm:$0xff pattern:$0x75316420]
        %v1535 = vld.sshfl [vmem:[#allocation1 + $0x8] sm:$0xff pattern:$0x75316420]
        %v1536 = vld.sshfl [vmem:[#allocation1 + $0x10] sm:$0xff pattern:$0x75316420]
        %v1537 = vld.sshfl [vmem:[#allocation1 + $0x18] sm:$0xff pattern:$0x75316420]
        %v1538 = vld.sshfl [vmem:[#allocation1 + $0x20] sm:$0xff pattern:$0x75316420]
        %v1539 = vld.sshfl [vmem:[#allocation1 + $0x28] sm:$0xff pattern:$0x75316420]
        %v1540 = vld.sshfl [vmem:[#allocation1 + $0x30] sm:$0xff pattern:$0x75316420]
        %v1541 = vld.sshfl [vmem:[#allocation1 + $0x38] sm:$0xff pattern:$0x75316420]
        %1550 = vrot.lane.b32.xlu0 %v1534, 30
        %v1551 = vpop.permute.xlu0 %1550
        %1552 = vrot.lane.b32.xlu0 %v1535, 30
        %v1553 = vpop.permute.xlu0 %1552
        %1554 = vrot.lane.b32.xlu0 %v1536, 30
        %v1555 = vpop.permute.xlu0 %1554
        %1556 = vrot.lane.b32.xlu0 %v1537, 30
        %v1557 = vpop.permute.xlu0 %1556
        %1558 = vrot.lane.b32.xlu0 %v1538, 30
        %v1559 = vpop.permute.xlu0 %1558
        %1560 = vrot.lane.b32.xlu0 %v1539, 30
        %v1561 = vpop.permute.xlu0 %1560
        %1562 = vrot.lane.b32.xlu0 %v1540, 30
        %v1563 = vpop.permute.xlu0 %1562
        %1564 = vrot.lane.b32.xlu0 %v1541, 30
        %v1565 = vpop.permute.xlu0 %1564
        %vm1566 = vcmp.lt.s32.totalorder %v301, 30
        %v1567 = vsel %vm1566, %v1563, %v1565
        %v1568 = vsel %vm1566, %v1561, %v1563
        %v1569 = vsel %vm1566, %v1559, %v1561
        %v1570 = vsel %vm1566, %v1557, %v1559
        %v1571 = vsel %vm1566, %v1555, %v1557
        %v1572 = vsel %vm1566, %v1553, %v1555
        %v1573 = vsel %vm1566, %v1551, %v1553
        %v1574 = vsel %vm1566, %v1565, %v1551
        %v1583 = vrot.slane %v1573, 5
        %v1584 = vrot.slane %v1572, 5
        %v1585 = vrot.slane %v1571, 5
        %v1586 = vrot.slane %v1570, 5
        %v1587 = vrot.slane %v1569, 5
        %v1588 = vrot.slane %v1568, 5
        %v1589 = vrot.slane %v1567, 5
        %v1590 = vrot.slane %v1574, 5
        %1599 = vst [vmem:[#allocation2 + $0x180] sm:$0x38] %v1583
        %1600 = vst [vmem:[#allocation2 + $0x188] sm:$0x38] %v1584
        %1601 = vst [vmem:[#allocation2 + $0x190] sm:$0x38] %v1585
        %1602 = vst [vmem:[#allocation2 + $0x198] sm:$0x38] %v1586
        %1603 = vst [vmem:[#allocation2 + $0x1a0] sm:$0x38] %v1587
        %1604 = vst [vmem:[#allocation2 + $0x1a8] sm:$0x38] %v1588
        %1605 = vst [vmem:[#allocation2 + $0x1b0] sm:$0x38] %v1589
        %1606 = vst [vmem:[#allocation2 + $0x1b8] sm:$0x38] %v1590
        %1607 = vst [vmem:[#allocation1] ss:$2 sm:$0xff] %v222
        %s1608 = scalar_lea.vmem [#allocation1], 16
        %1609 = vst [vmem:[%s1608] ss:$2 sm:$0xff] %v223
        %s1610 = scalar_lea.vmem [#allocation1], 32
        %1611 = vst [vmem:[%s1610] ss:$2 sm:$0xff] %v224
        %s1612 = scalar_lea.vmem [#allocation1], 48
        %1613 = vst [vmem:[%s1612] ss:$2 sm:$0xff] %v225
        %v1614 = vld.sshfl [vmem:[#allocation1] sm:$0xff pattern:$0x75316420]
        %v1615 = vld.sshfl [vmem:[#allocation1 + $0x8] sm:$0xff pattern:$0x75316420]
        %v1616 = vld.sshfl [vmem:[#allocation1 + $0x10] sm:$0xff pattern:$0x75316420]
        %v1617 = vld.sshfl [vmem:[#allocation1 + $0x18] sm:$0xff pattern:$0x75316420]
        %v1618 = vld.sshfl [vmem:[#allocation1 + $0x20] sm:$0xff pattern:$0x75316420]
        %v1619 = vld.sshfl [vmem:[#allocation1 + $0x28] sm:$0xff pattern:$0x75316420]
        %v1620 = vld.sshfl [vmem:[#allocation1 + $0x30] sm:$0xff pattern:$0x75316420]
        %v1621 = vld.sshfl [vmem:[#allocation1 + $0x38] sm:$0xff pattern:$0x75316420]
        %1630 = vrot.lane.b32.xlu0 %v1614, 29
        %v1631 = vpop.permute.xlu0 %1630
        %1632 = vrot.lane.b32.xlu0 %v1615, 29
        %v1633 = vpop.permute.xlu0 %1632
        %1634 = vrot.lane.b32.xlu0 %v1616, 29
        %v1635 = vpop.permute.xlu0 %1634
        %1636 = vrot.lane.b32.xlu0 %v1617, 29
        %v1637 = vpop.permute.xlu0 %1636
        %1638 = vrot.lane.b32.xlu0 %v1618, 29
        %v1639 = vpop.permute.xlu0 %1638
        %1640 = vrot.lane.b32.xlu0 %v1619, 29
        %v1641 = vpop.permute.xlu0 %1640
        %1642 = vrot.lane.b32.xlu0 %v1620, 29
        %v1643 = vpop.permute.xlu0 %1642
        %1644 = vrot.lane.b32.xlu0 %v1621, 29
        %v1645 = vpop.permute.xlu0 %1644
        %vm1646 = vcmp.lt.s32.totalorder %v301, 29
        %v1647 = vsel %vm1646, %v1643, %v1645
        %v1648 = vsel %vm1646, %v1641, %v1643
        %v1649 = vsel %vm1646, %v1639, %v1641
        %v1650 = vsel %vm1646, %v1637, %v1639
        %v1651 = vsel %vm1646, %v1635, %v1637
        %v1652 = vsel %vm1646, %v1633, %v1635
        %v1653 = vsel %vm1646, %v1631, %v1633
        %v1654 = vsel %vm1646, %v1645, %v1631
        %v1663 = vrot.slane %v1653, 2
        %v1664 = vrot.slane %v1652, 2
        %v1665 = vrot.slane %v1651, 2
        %v1666 = vrot.slane %v1650, 2
        %v1667 = vrot.slane %v1649, 2
        %v1668 = vrot.slane %v1648, 2
        %v1669 = vrot.slane %v1647, 2
        %v1670 = vrot.slane %v1654, 2
        %1679 = vst [vmem:[#allocation2 + $0x180] sm:$0xc0] %v1663
        %1680 = vst [vmem:[#allocation2 + $0x188] sm:$0xc0] %v1664
        %1681 = vst [vmem:[#allocation2 + $0x190] sm:$0xc0] %v1665
        %1682 = vst [vmem:[#allocation2 + $0x198] sm:$0xc0] %v1666
        %1683 = vst [vmem:[#allocation2 + $0x1a0] sm:$0xc0] %v1667
        %1684 = vst [vmem:[#allocation2 + $0x1a8] sm:$0xc0] %v1668
        %1685 = vst [vmem:[#allocation2 + $0x1b0] sm:$0xc0] %v1669
        %1686 = vst [vmem:[#allocation2 + $0x1b8] sm:$0xc0] %v1670
        %1687 = vst [vmem:[#allocation2 + $0x1c0] sm:$0x1] %v1663
        %1688 = vst [vmem:[#allocation2 + $0x1c8] sm:$0x1] %v1664
        %1689 = vst [vmem:[#allocation2 + $0x1d0] sm:$0x1] %v1665
        %1690 = vst [vmem:[#allocation2 + $0x1d8] sm:$0x1] %v1666
        %1691 = vst [vmem:[#allocation2 + $0x1e0] sm:$0x1] %v1667
        %1692 = vst [vmem:[#allocation2 + $0x1e8] sm:$0x1] %v1668
        %1693 = vst [vmem:[#allocation2 + $0x1f0] sm:$0x1] %v1669
        %1694 = vst [vmem:[#allocation2 + $0x1f8] sm:$0x1] %v1670
        %1695 = vst [vmem:[#allocation1] ss:$2 sm:$0xff] %v222
        %s1696 = scalar_lea.vmem [#allocation1], 16
        %1697 = vst [vmem:[%s1696] ss:$2 sm:$0xff] %v223
        %s1698 = scalar_lea.vmem [#allocation1], 32
        %1699 = vst [vmem:[%s1698] ss:$2 sm:$0xff] %v224
        %s1700 = scalar_lea.vmem [#allocation1], 48
        %1701 = vst [vmem:[%s1700] ss:$2 sm:$0xff] %v225
        %v1702 = vld.sshfl [vmem:[#allocation1] sm:$0xff pattern:$0x75316420]
        %v1703 = vld.sshfl [vmem:[#allocation1 + $0x8] sm:$0xff pattern:$0x75316420]
        %v1704 = vld.sshfl [vmem:[#allocation1 + $0x10] sm:$0xff pattern:$0x75316420]
        %v1705 = vld.sshfl [vmem:[#allocation1 + $0x18] sm:$0xff pattern:$0x75316420]
        %v1706 = vld.sshfl [vmem:[#allocation1 + $0x20] sm:$0xff pattern:$0x75316420]
        %v1707 = vld.sshfl [vmem:[#allocation1 + $0x28] sm:$0xff pattern:$0x75316420]
        %v1708 = vld.sshfl [vmem:[#allocation1 + $0x30] sm:$0xff pattern:$0x75316420]
        %v1709 = vld.sshfl [vmem:[#allocation1 + $0x38] sm:$0xff pattern:$0x75316420]
        %1718 = vrot.lane.b32.xlu0 %v1702, 28
        %v1719 = vpop.permute.xlu0 %1718
        %1720 = vrot.lane.b32.xlu0 %v1703, 28
        %v1721 = vpop.permute.xlu0 %1720
        %1722 = vrot.lane.b32.xlu0 %v1704, 28
        %v1723 = vpop.permute.xlu0 %1722
        %1724 = vrot.lane.b32.xlu0 %v1705, 28
        %v1725 = vpop.permute.xlu0 %1724
        %1726 = vrot.lane.b32.xlu0 %v1706, 28
        %v1727 = vpop.permute.xlu0 %1726
        %1728 = vrot.lane.b32.xlu0 %v1707, 28
        %v1729 = vpop.permute.xlu0 %1728
        %1730 = vrot.lane.b32.xlu0 %v1708, 28
        %v1731 = vpop.permute.xlu0 %1730
        %1732 = vrot.lane.b32.xlu0 %v1709, 28
        %v1733 = vpop.permute.xlu0 %1732
        %vm1734 = vcmp.lt.s32.totalorder %v301, 28
        %v1735 = vsel %vm1734, %v1731, %v1733
        %v1736 = vsel %vm1734, %v1729, %v1731
        %v1737 = vsel %vm1734, %v1727, %v1729
        %v1738 = vsel %vm1734, %v1725, %v1727
        %v1739 = vsel %vm1734, %v1723, %v1725
        %v1740 = vsel %vm1734, %v1721, %v1723
        %v1741 = vsel %vm1734, %v1719, %v1721
        %v1742 = vsel %vm1734, %v1733, %v1719
        %v1751 = vrot.slane %v1741, 7
        %v1752 = vrot.slane %v1740, 7
        %v1753 = vrot.slane %v1739, 7
        %v1754 = vrot.slane %v1738, 7
        %v1755 = vrot.slane %v1737, 7
        %v1756 = vrot.slane %v1736, 7
        %v1757 = vrot.slane %v1735, 7
        %v1758 = vrot.slane %v1742, 7
        %1767 = vst [vmem:[#allocation2 + $0x1c0] sm:$0xe] %v1751
        %1768 = vst [vmem:[#allocation2 + $0x1c8] sm:$0xe] %v1752
        %1769 = vst [vmem:[#allocation2 + $0x1d0] sm:$0xe] %v1753
        %1770 = vst [vmem:[#allocation2 + $0x1d8] sm:$0xe] %v1754
        %1771 = vst [vmem:[#allocation2 + $0x1e0] sm:$0xe] %v1755
        %1772 = vst [vmem:[#allocation2 + $0x1e8] sm:$0xe] %v1756
        %1773 = vst [vmem:[#allocation2 + $0x1f0] sm:$0xe] %v1757
        %1774 = vst [vmem:[#allocation2 + $0x1f8] sm:$0xe] %v1758
        %1775 = vst [vmem:[#allocation1] ss:$2 sm:$0xff] %v222
        %s1776 = scalar_lea.vmem [#allocation1], 16
        %1777 = vst [vmem:[%s1776] ss:$2 sm:$0xff] %v223
        %s1778 = scalar_lea.vmem [#allocation1], 32
        %1779 = vst [vmem:[%s1778] ss:$2 sm:$0xff] %v224
        %s1780 = scalar_lea.vmem [#allocation1], 48
        %1781 = vst [vmem:[%s1780] ss:$2 sm:$0xff] %v225
        %v1782 = vld.sshfl [vmem:[#allocation1] sm:$0xff pattern:$0x75316420]
        %v1783 = vld.sshfl [vmem:[#allocation1 + $0x8] sm:$0xff pattern:$0x75316420]
        %v1784 = vld.sshfl [vmem:[#allocation1 + $0x10] sm:$0xff pattern:$0x75316420]
        %v1785 = vld.sshfl [vmem:[#allocation1 + $0x18] sm:$0xff pattern:$0x75316420]
        %v1786 = vld.sshfl [vmem:[#allocation1 + $0x20] sm:$0xff pattern:$0x75316420]
        %v1787 = vld.sshfl [vmem:[#allocation1 + $0x28] sm:$0xff pattern:$0x75316420]
        %v1788 = vld.sshfl [vmem:[#allocation1 + $0x30] sm:$0xff pattern:$0x75316420]
        %v1789 = vld.sshfl [vmem:[#allocation1 + $0x38] sm:$0xff pattern:$0x75316420]
        %v1790 = vrot.slane %v1783, 4
        %v1791 = vrot.slane %v1784, 4
        %v1792 = vrot.slane %v1785, 4
        %v1793 = vrot.slane %v1786, 4
        %v1794 = vrot.slane %v1787, 4
        %v1795 = vrot.slane %v1788, 4
        %v1796 = vrot.slane %v1789, 4
        %v1797 = vrot.slane %v1782, 4
        %1806 = vst [vmem:[#allocation2 + $0x1c0] sm:$0x70] %v1790
        %1807 = vst [vmem:[#allocation2 + $0x1c8] sm:$0x70] %v1791
        %1808 = vst [vmem:[#allocation2 + $0x1d0] sm:$0x70] %v1792
        %1809 = vst [vmem:[#allocation2 + $0x1d8] sm:$0x70] %v1793
        %1810 = vst [vmem:[#allocation2 + $0x1e0] sm:$0x70] %v1794
        %1811 = vst [vmem:[#allocation2 + $0x1e8] sm:$0x70] %v1795
        %1812 = vst [vmem:[#allocation2 + $0x1f0] sm:$0x70] %v1796
        %1813 = vst [vmem:[#allocation2 + $0x1f8] sm:$0x70] %v1797
        %1814 = vst [vmem:[#allocation1] ss:$2 sm:$0xff] %v222
        %s1815 = scalar_lea.vmem [#allocation1], 16
        %1816 = vst [vmem:[%s1815] ss:$2 sm:$0xff] %v223
        %s1817 = scalar_lea.vmem [#allocation1], 32
        %1818 = vst [vmem:[%s1817] ss:$2 sm:$0xff] %v224
        %s1819 = scalar_lea.vmem [#allocation1], 48
        %1820 = vst [vmem:[%s1819] ss:$2 sm:$0xff] %v225
        %v1821 = vld.sshfl [vmem:[#allocation1] sm:$0xff pattern:$0x75316420]
        %v1822 = vld.sshfl [vmem:[#allocation1 + $0x8] sm:$0xff pattern:$0x75316420]
        %v1823 = vld.sshfl [vmem:[#allocation1 + $0x10] sm:$0xff pattern:$0x75316420]
        %v1824 = vld.sshfl [vmem:[#allocation1 + $0x18] sm:$0xff pattern:$0x75316420]
        %v1825 = vld.sshfl [vmem:[#allocation1 + $0x20] sm:$0xff pattern:$0x75316420]
        %v1826 = vld.sshfl [vmem:[#allocation1 + $0x28] sm:$0xff pattern:$0x75316420]
        %v1827 = vld.sshfl [vmem:[#allocation1 + $0x30] sm:$0xff pattern:$0x75316420]
        %v1828 = vld.sshfl [vmem:[#allocation1 + $0x38] sm:$0xff pattern:$0x75316420]
        %1837 = vrot.lane.b32.xlu0 %v1821, 127
        %v1838 = vpop.permute.xlu0 %1837
        %1839 = vrot.lane.b32.xlu0 %v1822, 127
        %v1840 = vpop.permute.xlu0 %1839
        %1841 = vrot.lane.b32.xlu0 %v1823, 127
        %v1842 = vpop.permute.xlu0 %1841
        %1843 = vrot.lane.b32.xlu0 %v1824, 127
        %v1844 = vpop.permute.xlu0 %1843
        %1845 = vrot.lane.b32.xlu0 %v1825, 127
        %v1846 = vpop.permute.xlu0 %1845
        %1847 = vrot.lane.b32.xlu0 %v1826, 127
        %v1848 = vpop.permute.xlu0 %1847
        %1849 = vrot.lane.b32.xlu0 %v1827, 127
        %v1850 = vpop.permute.xlu0 %1849
        %1851 = vrot.lane.b32.xlu0 %v1828, 127
        %v1852 = vpop.permute.xlu0 %1851
        %v1853 = vsel %vm302, %v1850, %v1852
        %v1854 = vsel %vm302, %v1848, %v1850
        %v1855 = vsel %vm302, %v1846, %v1848
        %v1856 = vsel %vm302, %v1844, %v1846
        %v1857 = vsel %vm302, %v1842, %v1844
        %v1858 = vsel %vm302, %v1840, %v1842
        %v1859 = vsel %vm302, %v1838, %v1840
        %v1860 = vsel %vm302, %v1852, %v1838
        %v1869 = vrot.slane %v1858, 1
        %v1870 = vrot.slane %v1857, 1
        %v1871 = vrot.slane %v1856, 1
        %v1872 = vrot.slane %v1855, 1
        %v1873 = vrot.slane %v1854, 1
        %v1874 = vrot.slane %v1853, 1
        %v1875 = vrot.slane %v1860, 1
        %v1876 = vrot.slane %v1859, 1
        %1885 = vst [vmem:[#allocation2 + $0x1c0] sm:$0x80] %v1869
        %1886 = vst [vmem:[#allocation2 + $0x1c8] sm:$0x80] %v1870
        %1887 = vst [vmem:[#allocation2 + $0x1d0] sm:$0x80] %v1871
        %1888 = vst [vmem:[#allocation2 + $0x1d8] sm:$0x80] %v1872
        %1889 = vst [vmem:[#allocation2 + $0x1e0] sm:$0x80] %v1873
        %1890 = vst [vmem:[#allocation2 + $0x1e8] sm:$0x80] %v1874
        %1891 = vst [vmem:[#allocation2 + $0x1f0] sm:$0x80] %v1875
        %1892 = vst [vmem:[#allocation2 + $0x1f8] sm:$0x80] %v1876
        %1893 = vst [vmem:[#allocation2 + $0x200] sm:$0x3] %v1869
        %1894 = vst [vmem:[#allocation2 + $0x208] sm:$0x3] %v1870
        %1895 = vst [vmem:[#allocation2 + $0x210] sm:$0x3] %v1871
        %1896 = vst [vmem:[#allocation2 + $0x218] sm:$0x3] %v1872
        %1897 = vst [vmem:[#allocation2 + $0x220] sm:$0x3] %v1873
        %1898 = vst [vmem:[#allocation2 + $0x228] sm:$0x3] %v1874
        %1899 = vst [vmem:[#allocation2 + $0x230] sm:$0x3] %v1875
        %1900 = vst [vmem:[#allocation2 + $0x238] sm:$0x3] %v1876
        %1901 = vst [vmem:[#allocation1] ss:$2 sm:$0xff] %v222
        %s1902 = scalar_lea.vmem [#allocation1], 16
        %1903 = vst [vmem:[%s1902] ss:$2 sm:$0xff] %v223
        %s1904 = scalar_lea.vmem [#allocation1], 32
        %1905 = vst [vmem:[%s1904] ss:$2 sm:$0xff] %v224
        %s1906 = scalar_lea.vmem [#allocation1], 48
        %1907 = vst [vmem:[%s1906] ss:$2 sm:$0xff] %v225
        %v1908 = vld.sshfl [vmem:[#allocation1] sm:$0xff pattern:$0x75316420]
        %v1909 = vld.sshfl [vmem:[#allocation1 + $0x8] sm:$0xff pattern:$0x75316420]
        %v1910 = vld.sshfl [vmem:[#allocation1 + $0x10] sm:$0xff pattern:$0x75316420]
        %v1911 = vld.sshfl [vmem:[#allocation1 + $0x18] sm:$0xff pattern:$0x75316420]
        %v1912 = vld.sshfl [vmem:[#allocation1 + $0x20] sm:$0xff pattern:$0x75316420]
        %v1913 = vld.sshfl [vmem:[#allocation1 + $0x28] sm:$0xff pattern:$0x75316420]
        %v1914 = vld.sshfl [vmem:[#allocation1 + $0x30] sm:$0xff pattern:$0x75316420]
        %v1915 = vld.sshfl [vmem:[#allocation1 + $0x38] sm:$0xff pattern:$0x75316420]
        %1924 = vrot.lane.b32.xlu0 %v1908, 126
        %v1925 = vpop.permute.xlu0 %1924
        %1926 = vrot.lane.b32.xlu0 %v1909, 126
        %v1927 = vpop.permute.xlu0 %1926
        %1928 = vrot.lane.b32.xlu0 %v1910, 126
        %v1929 = vpop.permute.xlu0 %1928
        %1930 = vrot.lane.b32.xlu0 %v1911, 126
        %v1931 = vpop.permute.xlu0 %1930
        %1932 = vrot.lane.b32.xlu0 %v1912, 126
        %v1933 = vpop.permute.xlu0 %1932
        %1934 = vrot.lane.b32.xlu0 %v1913, 126
        %v1935 = vpop.permute.xlu0 %1934
        %1936 = vrot.lane.b32.xlu0 %v1914, 126
        %v1937 = vpop.permute.xlu0 %1936
        %1938 = vrot.lane.b32.xlu0 %v1915, 126
        %v1939 = vpop.permute.xlu0 %1938
        %v1940 = vsel %vm382, %v1937, %v1939
        %v1941 = vsel %vm382, %v1935, %v1937
        %v1942 = vsel %vm382, %v1933, %v1935
        %v1943 = vsel %vm382, %v1931, %v1933
        %v1944 = vsel %vm382, %v1929, %v1931
        %v1945 = vsel %vm382, %v1927, %v1929
        %v1946 = vsel %vm382, %v1925, %v1927
        %v1947 = vsel %vm382, %v1939, %v1925
        %v1956 = vrot.slane %v1945, 6
        %v1957 = vrot.slane %v1944, 6
        %v1958 = vrot.slane %v1943, 6
        %v1959 = vrot.slane %v1942, 6
        %v1960 = vrot.slane %v1941, 6
        %v1961 = vrot.slane %v1940, 6
        %v1962 = vrot.slane %v1947, 6
        %v1963 = vrot.slane %v1946, 6
        %1972 = vst [vmem:[#allocation2 + $0x200] sm:$0x1c] %v1956
        %1973 = vst [vmem:[#allocation2 + $0x208] sm:$0x1c] %v1957
        %1974 = vst [vmem:[#allocation2 + $0x210] sm:$0x1c] %v1958
        %1975 = vst [vmem:[#allocation2 + $0x218] sm:$0x1c] %v1959
        %1976 = vst [vmem:[#allocation2 + $0x220] sm:$0x1c] %v1960
        %1977 = vst [vmem:[#allocation2 + $0x228] sm:$0x1c] %v1961
        %1978 = vst [vmem:[#allocation2 + $0x230] sm:$0x1c] %v1962
        %1979 = vst [vmem:[#allocation2 + $0x238] sm:$0x1c] %v1963
        %1980 = vst [vmem:[#allocation1] ss:$2 sm:$0xff] %v222
        %s1981 = scalar_lea.vmem [#allocation1], 16
        %1982 = vst [vmem:[%s1981] ss:$2 sm:$0xff] %v223
        %s1983 = scalar_lea.vmem [#allocation1], 32
        %1984 = vst [vmem:[%s1983] ss:$2 sm:$0xff] %v224
        %s1985 = scalar_lea.vmem [#allocation1], 48
        %1986 = vst [vmem:[%s1985] ss:$2 sm:$0xff] %v225
        %v1987 = vld.sshfl [vmem:[#allocation1] sm:$0xff pattern:$0x75316420]
        %v1988 = vld.sshfl [vmem:[#allocation1 + $0x8] sm:$0xff pattern:$0x75316420]
        %v1989 = vld.sshfl [vmem:[#allocation1 + $0x10] sm:$0xff pattern:$0x75316420]
        %v1990 = vld.sshfl [vmem:[#allocation1 + $0x18] sm:$0xff pattern:$0x75316420]
        %v1991 = vld.sshfl [vmem:[#allocation1 + $0x20] sm:$0xff pattern:$0x75316420]
        %v1992 = vld.sshfl [vmem:[#allocation1 + $0x28] sm:$0xff pattern:$0x75316420]
        %v1993 = vld.sshfl [vmem:[#allocation1 + $0x30] sm:$0xff pattern:$0x75316420]
        %v1994 = vld.sshfl [vmem:[#allocation1 + $0x38] sm:$0xff pattern:$0x75316420]
        %2003 = vrot.lane.b32.xlu0 %v1987, 125
        %v2004 = vpop.permute.xlu0 %2003
        %2005 = vrot.lane.b32.xlu0 %v1988, 125
        %v2006 = vpop.permute.xlu0 %2005
        %2007 = vrot.lane.b32.xlu0 %v1989, 125
        %v2008 = vpop.permute.xlu0 %2007
        %2009 = vrot.lane.b32.xlu0 %v1990, 125
        %v2010 = vpop.permute.xlu0 %2009
        %2011 = vrot.lane.b32.xlu0 %v1991, 125
        %v2012 = vpop.permute.xlu0 %2011
        %2013 = vrot.lane.b32.xlu0 %v1992, 125
        %v2014 = vpop.permute.xlu0 %2013
        %2015 = vrot.lane.b32.xlu0 %v1993, 125
        %v2016 = vpop.permute.xlu0 %2015
        %2017 = vrot.lane.b32.xlu0 %v1994, 125
        %v2018 = vpop.permute.xlu0 %2017
        %v2019 = vsel %vm470, %v2016, %v2018
        %v2020 = vsel %vm470, %v2014, %v2016
        %v2021 = vsel %vm470, %v2012, %v2014
        %v2022 = vsel %vm470, %v2010, %v2012
        %v2023 = vsel %vm470, %v2008, %v2010
        %v2024 = vsel %vm470, %v2006, %v2008
        %v2025 = vsel %vm470, %v2004, %v2006
        %v2026 = vsel %vm470, %v2018, %v2004
        %v2035 = vrot.slane %v2024, 3
        %v2036 = vrot.slane %v2023, 3
        %v2037 = vrot.slane %v2022, 3
        %v2038 = vrot.slane %v2021, 3
        %v2039 = vrot.slane %v2020, 3
        %v2040 = vrot.slane %v2019, 3
        %v2041 = vrot.slane %v2026, 3
        %v2042 = vrot.slane %v2025, 3
        %2051 = vst [vmem:[#allocation2 + $0x200] sm:$0xe0] %v2035
        %2052 = vst [vmem:[#allocation2 + $0x208] sm:$0xe0] %v2036
        %2053 = vst [vmem:[#allocation2 + $0x210] sm:$0xe0] %v2037
        %2054 = vst [vmem:[#allocation2 + $0x218] sm:$0xe0] %v2038
        %2055 = vst [vmem:[#allocation2 + $0x220] sm:$0xe0] %v2039
        %2056 = vst [vmem:[#allocation2 + $0x228] sm:$0xe0] %v2040
        %2057 = vst [vmem:[#allocation2 + $0x230] sm:$0xe0] %v2041
        %2058 = vst [vmem:[#allocation2 + $0x238] sm:$0xe0] %v2042
        %2059 = vst [vmem:[#allocation1] ss:$2 sm:$0xff] %v222
        %s2060 = scalar_lea.vmem [#allocation1], 16
        %2061 = vst [vmem:[%s2060] ss:$2 sm:$0xff] %v223
        %s2062 = scalar_lea.vmem [#allocation1], 32
        %2063 = vst [vmem:[%s2062] ss:$2 sm:$0xff] %v224
        %s2064 = scalar_lea.vmem [#allocation1], 48
        %2065 = vst [vmem:[%s2064] ss:$2 sm:$0xff] %v225
        %v2066 = vld.sshfl [vmem:[#allocation1] sm:$0xff pattern:$0x75316420]
        %v2067 = vld.sshfl [vmem:[#allocation1 + $0x8] sm:$0xff pattern:$0x75316420]
        %v2068 = vld.sshfl [vmem:[#allocation1 + $0x10] sm:$0xff pattern:$0x75316420]
        %v2069 = vld.sshfl [vmem:[#allocation1 + $0x18] sm:$0xff pattern:$0x75316420]
        %v2070 = vld.sshfl [vmem:[#allocation1 + $0x20] sm:$0xff pattern:$0x75316420]
        %v2071 = vld.sshfl [vmem:[#allocation1 + $0x28] sm:$0xff pattern:$0x75316420]
        %v2072 = vld.sshfl [vmem:[#allocation1 + $0x30] sm:$0xff pattern:$0x75316420]
        %v2073 = vld.sshfl [vmem:[#allocation1 + $0x38] sm:$0xff pattern:$0x75316420]
        %2082 = vrot.lane.b32.xlu0 %v2066, 124
        %v2083 = vpop.permute.xlu0 %2082
        %2084 = vrot.lane.b32.xlu0 %v2067, 124
        %v2085 = vpop.permute.xlu0 %2084
        %2086 = vrot.lane.b32.xlu0 %v2068, 124
        %v2087 = vpop.permute.xlu0 %2086
        %2088 = vrot.lane.b32.xlu0 %v2069, 124
        %v2089 = vpop.permute.xlu0 %2088
        %2090 = vrot.lane.b32.xlu0 %v2070, 124
        %v2091 = vpop.permute.xlu0 %2090
        %2092 = vrot.lane.b32.xlu0 %v2071, 124
        %v2093 = vpop.permute.xlu0 %2092
        %2094 = vrot.lane.b32.xlu0 %v2072, 124
        %v2095 = vpop.permute.xlu0 %2094
        %2096 = vrot.lane.b32.xlu0 %v2073, 124
        %v2097 = vpop.permute.xlu0 %2096
        %v2098 = vsel %vm550, %v2095, %v2097
        %v2099 = vsel %vm550, %v2093, %v2095
        %v2100 = vsel %vm550, %v2091, %v2093
        %v2101 = vsel %vm550, %v2089, %v2091
        %v2102 = vsel %vm550, %v2087, %v2089
        %v2103 = vsel %vm550, %v2085, %v2087
        %v2104 = vsel %vm550, %v2083, %v2085
        %v2105 = vsel %vm550, %v2097, %v2083
        %2106 = vst [vmem:[#allocation2 + $0x240] sm:$0x7] %v2103
        %2107 = vst [vmem:[#allocation2 + $0x248] sm:$0x7] %v2102
        %2108 = vst [vmem:[#allocation2 + $0x250] sm:$0x7] %v2101
        %2109 = vst [vmem:[#allocation2 + $0x258] sm:$0x7] %v2100
        %2110 = vst [vmem:[#allocation2 + $0x260] sm:$0x7] %v2099
        %2111 = vst [vmem:[#allocation2 + $0x268] sm:$0x7] %v2098
        %2112 = vst [vmem:[#allocation2 + $0x270] sm:$0x7] %v2105
        %2113 = vst [vmem:[#allocation2 + $0x278] sm:$0x7] %v2104
        %2114 = vst [vmem:[#allocation2 + $0x240] sm:$0xf8] 0.0
        %2115 = vst [vmem:[#allocation2 + $0x248] sm:$0xf8] 0.0
        %2116 = vst [vmem:[#allocation2 + $0x250] sm:$0xf8] 0.0
        %2117 = vst [vmem:[#allocation2 + $0x258] sm:$0xf8] 0.0
        %2118 = vst [vmem:[#allocation2 + $0x260] sm:$0xf8] 0.0
        %2119 = vst [vmem:[#allocation2 + $0x268] sm:$0xf8] 0.0
        %2120 = vst [vmem:[#allocation2 + $0x270] sm:$0xf8] 0.0
        %2121 = vst [vmem:[#allocation2 + $0x278] sm:$0xf8] 0.0
        %2122 = vst [vmem:[#allocation2 + $0x280] sm:$0xff] 0.0
        %2123 = vst [vmem:[#allocation2 + $0x288] sm:$0xff] 0.0
        %2124 = vst [vmem:[#allocation2 + $0x290] sm:$0xff] 0.0
        %2125 = vst [vmem:[#allocation2 + $0x298] sm:$0xff] 0.0
        %2126 = vst [vmem:[#allocation2 + $0x2a0] sm:$0xff] 0.0
        %2127 = vst [vmem:[#allocation2 + $0x2a8] sm:$0xff] 0.0
        %2128 = vst [vmem:[#allocation2 + $0x2b0] sm:$0xff] 0.0
        %2129 = vst [vmem:[#allocation2 + $0x2b8] sm:$0xff] 0.0
        %2130 = vst [vmem:[#allocation2 + $0x2c0] sm:$0xff] 0.0
        %2131 = vst [vmem:[#allocation2 + $0x2c8] sm:$0xff] 0.0
        %2132 = vst [vmem:[#allocation2 + $0x2d0] sm:$0xff] 0.0
        %2133 = vst [vmem:[#allocation2 + $0x2d8] sm:$0xff] 0.0
        %2134 = vst [vmem:[#allocation2 + $0x2e0] sm:$0xff] 0.0
        %2135 = vst [vmem:[#allocation2 + $0x2e8] sm:$0xff] 0.0
        %2136 = vst [vmem:[#allocation2 + $0x2f0] sm:$0xff] 0.0
        %2137 = vst [vmem:[#allocation2 + $0x2f8] sm:$0xff] 0.0
        %2138 = vst [vmem:[#allocation2 + $0x300] sm:$0xff] 0.0
        %2139 = vst [vmem:[#allocation2 + $0x308] sm:$0xff] 0.0
        %2140 = vst [vmem:[#allocation2 + $0x310] sm:$0xff] 0.0
        %2141 = vst [vmem:[#allocation2 + $0x318] sm:$0xff] 0.0
        %2142 = vst [vmem:[#allocation2 + $0x320] sm:$0xff] 0.0
        %2143 = vst [vmem:[#allocation2 + $0x328] sm:$0xff] 0.0
        %2144 = vst [vmem:[#allocation2 + $0x330] sm:$0xff] 0.0
        %2145 = vst [vmem:[#allocation2 + $0x338] sm:$0xff] 0.0
        %2146 = vst [vmem:[#allocation2 + $0x340] sm:$0xff] 0.0
        %2147 = vst [vmem:[#allocation2 + $0x348] sm:$0xff] 0.0
        %2148 = vst [vmem:[#allocation2 + $0x350] sm:$0xff] 0.0
        %2149 = vst [vmem:[#allocation2 + $0x358] sm:$0xff] 0.0
        %2150 = vst [vmem:[#allocation2 + $0x360] sm:$0xff] 0.0
        %2151 = vst [vmem:[#allocation2 + $0x368] sm:$0xff] 0.0
        %2152 = vst [vmem:[#allocation2 + $0x370] sm:$0xff] 0.0
        %2153 = vst [vmem:[#allocation2 + $0x378] sm:$0xff] 0.0
        %2154 = vst [vmem:[#allocation2 + $0x380] sm:$0xff] 0.0
        %2155 = vst [vmem:[#allocation2 + $0x388] sm:$0xff] 0.0
        %2156 = vst [vmem:[#allocation2 + $0x390] sm:$0xff] 0.0
        %2157 = vst [vmem:[#allocation2 + $0x398] sm:$0xff] 0.0
        %2158 = vst [vmem:[#allocation2 + $0x3a0] sm:$0xff] 0.0
        %2159 = vst [vmem:[#allocation2 + $0x3a8] sm:$0xff] 0.0
        %2160 = vst [vmem:[#allocation2 + $0x3b0] sm:$0xff] 0.0
        %2161 = vst [vmem:[#allocation2 + $0x3b8] sm:$0xff] 0.0
        %2162 = vst [vmem:[#allocation2 + $0x3c0] sm:$0xff] 0.0
        %2163 = vst [vmem:[#allocation2 + $0x3c8] sm:$0xff] 0.0
        %2164 = vst [vmem:[#allocation2 + $0x3d0] sm:$0xff] 0.0
        %2165 = vst [vmem:[#allocation2 + $0x3d8] sm:$0xff] 0.0
        %2166 = vst [vmem:[#allocation2 + $0x3e0] sm:$0xff] 0.0
        %2167 = vst [vmem:[#allocation2 + $0x3e8] sm:$0xff] 0.0
        %2168 = vst [vmem:[#allocation2 + $0x3f0] sm:$0xff] 0.0
        %2169 = vst [vmem:[#allocation2 + $0x3f8] sm:$0xff] 0.0
        %v2170 = vld [vmem:[%s1] sm:$0xff]
        %v2171 = vld [vmem:[%s1 + $0x8] sm:$0xff]
        %v2172 = vld [vmem:[#allocation2] sm:$0xff]
        %v2173 = vld [vmem:[#allocation2 + $0x8] sm:$0xff]
        %v2174 = vld [vmem:[#allocation2 + $0x10] sm:$0xff]
        %v2175 = vld [vmem:[#allocation2 + $0x18] sm:$0xff]
        %v2176 = vld [vmem:[#allocation2 + $0x20] sm:$0xff]
        %v2177 = vld [vmem:[#allocation2 + $0x28] sm:$0xff]
        %v2178 = vld [vmem:[#allocation2 + $0x30] sm:$0xff]
        %v2179 = vld [vmem:[#allocation2 + $0x38] sm:$0xff]
        %v2180 = vld [vmem:[#allocation2 + $0x40] sm:$0xff]
        %v2181 = vld [vmem:[#allocation2 + $0x48] sm:$0xff]
        %v2182 = vld [vmem:[#allocation2 + $0x50] sm:$0xff]
        %v2183 = vld [vmem:[#allocation2 + $0x58] sm:$0xff]
        %v2184 = vld [vmem:[#allocation2 + $0x60] sm:$0xff]
        %v2185 = vld [vmem:[#allocation2 + $0x68] sm:$0xff]
        %v2186 = vld [vmem:[#allocation2 + $0x70] sm:$0xff]
        %v2187 = vld [vmem:[#allocation2 + $0x78] sm:$0xff]
        %v2188 = vld [vmem:[#allocation2 + $0x80] sm:$0xff]
        %v2189 = vld [vmem:[#allocation2 + $0x88] sm:$0xff]
        %v2190 = vld [vmem:[#allocation2 + $0x90] sm:$0xff]
        %v2191 = vld [vmem:[#allocation2 + $0x98] sm:$0xff]
        %v2192 = vld [vmem:[#allocation2 + $0xa0] sm:$0xff]
        %v2193 = vld [vmem:[#allocation2 + $0xa8] sm:$0xff]
        %v2194 = vld [vmem:[#allocation2 + $0xb0] sm:$0xff]
        %v2195 = vld [vmem:[#allocation2 + $0xb8] sm:$0xff]
        %v2196 = vld [vmem:[#allocation2 + $0xc0] sm:$0xff]
        %v2197 = vld [vmem:[#allocation2 + $0xc8] sm:$0xff]
        %v2198 = vld [vmem:[#allocation2 + $0xd0] sm:$0xff]
        %v2199 = vld [vmem:[#allocation2 + $0xd8] sm:$0xff]
        %v2200 = vld [vmem:[#allocation2 + $0xe0] sm:$0xff]
        %v2201 = vld [vmem:[#allocation2 + $0xe8] sm:$0xff]
        %v2202 = vld [vmem:[#allocation2 + $0xf0] sm:$0xff]
        %v2203 = vld [vmem:[#allocation2 + $0xf8] sm:$0xff]
        %v2204 = vld [vmem:[#allocation2 + $0x100] sm:$0xff]
        %v2205 = vld [vmem:[#allocation2 + $0x108] sm:$0xff]
        %v2206 = vld [vmem:[#allocation2 + $0x110] sm:$0xff]
        %v2207 = vld [vmem:[#allocation2 + $0x118] sm:$0xff]
        %v2208 = vld [vmem:[#allocation2 + $0x120] sm:$0xff]
        %v2209 = vld [vmem:[#allocation2 + $0x128] sm:$0xff]
        %v2210 = vld [vmem:[#allocation2 + $0x130] sm:$0xff]
        %v2211 = vld [vmem:[#allocation2 + $0x138] sm:$0xff]
        %v2212 = vld [vmem:[#allocation2 + $0x140] sm:$0xff]
        %v2213 = vld [vmem:[#allocation2 + $0x148] sm:$0xff]
        %v2214 = vld [vmem:[#allocation2 + $0x150] sm:$0xff]
        %v2215 = vld [vmem:[#allocation2 + $0x158] sm:$0xff]
        %v2216 = vld [vmem:[#allocation2 + $0x160] sm:$0xff]
        %v2217 = vld [vmem:[#allocation2 + $0x168] sm:$0xff]
        %v2218 = vld [vmem:[#allocation2 + $0x170] sm:$0xff]
        %v2219 = vld [vmem:[#allocation2 + $0x178] sm:$0xff]
        %v2220 = vld [vmem:[#allocation2 + $0x180] sm:$0xff]
        %v2221 = vld [vmem:[#allocation2 + $0x188] sm:$0xff]
        %v2222 = vld [vmem:[#allocation2 + $0x190] sm:$0xff]
        %v2223 = vld [vmem:[#allocation2 + $0x198] sm:$0xff]
        %v2224 = vld [vmem:[#allocation2 + $0x1a0] sm:$0xff]
        %v2225 = vld [vmem:[#allocation2 + $0x1a8] sm:$0xff]
        %v2226 = vld [vmem:[#allocation2 + $0x1b0] sm:$0xff]
        %v2227 = vld [vmem:[#allocation2 + $0x1b8] sm:$0xff]
        %v2228 = vld [vmem:[#allocation2 + $0x1c0] sm:$0xff]
        %v2229 = vld [vmem:[#allocation2 + $0x1c8] sm:$0xff]
        %v2230 = vld [vmem:[#allocation2 + $0x1d0] sm:$0xff]
        %v2231 = vld [vmem:[#allocation2 + $0x1d8] sm:$0xff]
        %v2232 = vld [vmem:[#allocation2 + $0x1e0] sm:$0xff]
        %v2233 = vld [vmem:[#allocation2 + $0x1e8] sm:$0xff]
        %v2234 = vld [vmem:[#allocation2 + $0x1f0] sm:$0xff]
        %v2235 = vld [vmem:[#allocation2 + $0x1f8] sm:$0xff]
        %v2236 = vld [vmem:[#allocation2 + $0x200] sm:$0xff]
        %v2237 = vld [vmem:[#allocation2 + $0x208] sm:$0xff]
        %v2238 = vld [vmem:[#allocation2 + $0x210] sm:$0xff]
        %v2239 = vld [vmem:[#allocation2 + $0x218] sm:$0xff]
        %v2240 = vld [vmem:[#allocation2 + $0x220] sm:$0xff]
        %v2241 = vld [vmem:[#allocation2 + $0x228] sm:$0xff]
        %v2242 = vld [vmem:[#allocation2 + $0x230] sm:$0xff]
        %v2243 = vld [vmem:[#allocation2 + $0x238] sm:$0xff]
        %v2244 = vld [vmem:[#allocation2 + $0x240] sm:$0xff]
        %v2245 = vld [vmem:[#allocation2 + $0x248] sm:$0xff]
        %v2246 = vld [vmem:[#allocation2 + $0x250] sm:$0xff]
        %v2247 = vld [vmem:[#allocation2 + $0x258] sm:$0xff]
        %v2248 = vld [vmem:[#allocation2 + $0x260] sm:$0xff]
        %v2249 = vld [vmem:[#allocation2 + $0x268] sm:$0xff]
        %v2250 = vld [vmem:[#allocation2 + $0x270] sm:$0xff]
        %v2251 = vld [vmem:[#allocation2 + $0x278] sm:$0xff]
        %v2252 = vld [vmem:[#allocation2 + $0x280] sm:$0xff]
        %v2253 = vld [vmem:[#allocation2 + $0x288] sm:$0xff]
        %v2254 = vld [vmem:[#allocation2 + $0x290] sm:$0xff]
        %v2255 = vld [vmem:[#allocation2 + $0x298] sm:$0xff]
        %v2256 = vld [vmem:[#allocation2 + $0x2a0] sm:$0xff]
        %v2257 = vld [vmem:[#allocation2 + $0x2a8] sm:$0xff]
        %v2258 = vld [vmem:[#allocation2 + $0x2b0] sm:$0xff]
        %v2259 = vld [vmem:[#allocation2 + $0x2b8] sm:$0xff]
        %v2260 = vld [vmem:[#allocation2 + $0x2c0] sm:$0xff]
        %v2261 = vld [vmem:[#allocation2 + $0x2c8] sm:$0xff]
        %v2262 = vld [vmem:[#allocation2 + $0x2d0] sm:$0xff]
        %v2263 = vld [vmem:[#allocation2 + $0x2d8] sm:$0xff]
        %v2264 = vld [vmem:[#allocation2 + $0x2e0] sm:$0xff]
        %v2265 = vld [vmem:[#allocation2 + $0x2e8] sm:$0xff]
        %v2266 = vld [vmem:[#allocation2 + $0x2f0] sm:$0xff]
        %v2267 = vld [vmem:[#allocation2 + $0x2f8] sm:$0xff]
        %v2268 = vld [vmem:[#allocation2 + $0x300] sm:$0xff]
        %v2269 = vld [vmem:[#allocation2 + $0x308] sm:$0xff]
        %v2270 = vld [vmem:[#allocation2 + $0x310] sm:$0xff]
        %v2271 = vld [vmem:[#allocation2 + $0x318] sm:$0xff]
        %v2272 = vld [vmem:[#allocation2 + $0x320] sm:$0xff]
        %v2273 = vld [vmem:[#allocation2 + $0x328] sm:$0xff]
        %v2274 = vld [vmem:[#allocation2 + $0x330] sm:$0xff]
        %v2275 = vld [vmem:[#allocation2 + $0x338] sm:$0xff]
        %v2276 = vld [vmem:[#allocation2 + $0x340] sm:$0xff]
        %v2277 = vld [vmem:[#allocation2 + $0x348] sm:$0xff]
        %v2278 = vld [vmem:[#allocation2 + $0x350] sm:$0xff]
        %v2279 = vld [vmem:[#allocation2 + $0x358] sm:$0xff]
        %v2280 = vld [vmem:[#allocation2 + $0x360] sm:$0xff]
        %v2281 = vld [vmem:[#allocation2 + $0x368] sm:$0xff]
        %v2282 = vld [vmem:[#allocation2 + $0x370] sm:$0xff]
        %v2283 = vld [vmem:[#allocation2 + $0x378] sm:$0xff]
        %v2284 = vld [vmem:[#allocation2 + $0x380] sm:$0xff]
        %v2285 = vld [vmem:[#allocation2 + $0x388] sm:$0xff]
        %v2286 = vld [vmem:[#allocation2 + $0x390] sm:$0xff]
        %v2287 = vld [vmem:[#allocation2 + $0x398] sm:$0xff]
        %v2288 = vld [vmem:[#allocation2 + $0x3a0] sm:$0xff]
        %v2289 = vld [vmem:[#allocation2 + $0x3a8] sm:$0xff]
        %v2290 = vld [vmem:[#allocation2 + $0x3b0] sm:$0xff]
        %v2291 = vld [vmem:[#allocation2 + $0x3b8] sm:$0xff]
        %v2292 = vld [vmem:[#allocation2 + $0x3c0] sm:$0xff]
        %v2293 = vld [vmem:[#allocation2 + $0x3c8] sm:$0xff]
        %v2294 = vld [vmem:[#allocation2 + $0x3d0] sm:$0xff]
        %v2295 = vld [vmem:[#allocation2 + $0x3d8] sm:$0xff]
        %v2296 = vld [vmem:[#allocation2 + $0x3e0] sm:$0xff]
        %v2297 = vld [vmem:[#allocation2 + $0x3e8] sm:$0xff]
        %v2298 = vld [vmem:[#allocation2 + $0x3f0] sm:$0xff]
        %v2299 = vld [vmem:[#allocation2 + $0x3f8] sm:$0xff]
        %v2300 = vld [vmem:[%s2] sm:$0xff]
        %v2301 = vld [vmem:[%s2 + $0x8] sm:$0xff]
        %2303 = vset.pattern.permute.xlu0 0
        %2304 = vperm.xlu0 %2303, %v2300
        %v2305 = vpop.permute.xlu0 %2304
        %2308 = vset.pattern.permute.xlu0 0
        %2309 = vperm.xlu0 %2308, %v2301
        %v2310 = vpop.permute.xlu0 %2309
        %2312 = vmatpush.msra.mxu0 %v2292
        %2313 = vmatpush.msra.mxu0 %v2284
        %2314 = vmatpush.msra.mxu0 %v2276
        %2315 = vmatpush.msra.mxu0 %v2268
        %2316 = vmatpush.msra.mxu0 %v2260
        %2317 = vmatpush.msra.mxu0 %v2252
        %2318 = vmatpush.msra.mxu0 %v2244
        %2319 = vmatpush.msra.mxu0 %v2236
        %2320 = vmatpush.msra.mxu0 %v2228
        %2321 = vmatpush.msra.mxu0 %v2220
        %2322 = vmatpush.msra.mxu0 %v2212
        %2323 = vmatpush.msra.mxu0 %v2204
        %2324 = vmatpush.msra.mxu0 %v2196
        %2325 = vmatpush.msra.mxu0 %v2188
        %2326 = vmatpush.msra.mxu0 %v2180
        %2327 = vmatpush.msra.mxu0 %v2172
        %2328 = vmatmul.f32.gmra.mxu0 %v2170
        %v2329 = vpop.f32.mrf.mxu0
        %v2330 = vadd.f32 %v2305, %v2329
        %2331 = vmatmul.f32.gmra.mxu0 %v2171
        %v2332 = vpop.f32.mrf.mxu0
        %v2333 = vadd.f32 %v2310, %v2332
        %2334 = vdwg.mxu0
        %2335 = vmatpush.msra.mxu0 %v2293
        %2336 = vmatpush.msra.mxu0 %v2285
        %2337 = vmatpush.msra.mxu0 %v2277
        %2338 = vmatpush.msra.mxu0 %v2269
        %2339 = vmatpush.msra.mxu0 %v2261
        %2340 = vmatpush.msra.mxu0 %v2253
        %2341 = vmatpush.msra.mxu0 %v2245
        %2342 = vmatpush.msra.mxu0 %v2237
        %2343 = vmatpush.msra.mxu0 %v2229
        %2344 = vmatpush.msra.mxu0 %v2221
        %2345 = vmatpush.msra.mxu0 %v2213
        %2346 = vmatpush.msra.mxu0 %v2205
        %2347 = vmatpush.msra.mxu0 %v2197
        %2348 = vmatpush.msra.mxu0 %v2189
        %2349 = vmatpush.msra.mxu0 %v2181
        %2350 = vmatpush.msra.mxu0 %v2173
        %2351 = vmatmul.f32.gmra.mxu0 %v2170
        %v2352 = vpop.f32.mrf.mxu0
        %v2353 = vadd.f32 %v2305, %v2352
        %2354 = vmatmul.f32.gmra.mxu0 %v2171
        %v2355 = vpop.f32.mrf.mxu0
        %v2356 = vadd.f32 %v2310, %v2355
        %2357 = vdwg.mxu0
        %2358 = vmatpush.msra.mxu0 %v2294
        %2359 = vmatpush.msra.mxu0 %v2286
        %2360 = vmatpush.msra.mxu0 %v2278
        %2361 = vmatpush.msra.mxu0 %v2270
        %2362 = vmatpush.msra.mxu0 %v2262
        %2363 = vmatpush.msra.mxu0 %v2254
        %2364 = vmatpush.msra.mxu0 %v2246
        %2365 = vmatpush.msra.mxu0 %v2238
        %2366 = vmatpush.msra.mxu0 %v2230
        %2367 = vmatpush.msra.mxu0 %v2222
        %2368 = vmatpush.msra.mxu0 %v2214
        %2369 = vmatpush.msra.mxu0 %v2206
        %2370 = vmatpush.msra.mxu0 %v2198
        %2371 = vmatpush.msra.mxu0 %v2190
        %2372 = vmatpush.msra.mxu0 %v2182
        %2373 = vmatpush.msra.mxu0 %v2174
        %2374 = vmatmul.f32.gmra.mxu0 %v2170
        %v2375 = vpop.f32.mrf.mxu0
        %v2376 = vadd.f32 %v2305, %v2375
        %2377 = vmatmul.f32.gmra.mxu0 %v2171
        %v2378 = vpop.f32.mrf.mxu0
        %v2379 = vadd.f32 %v2310, %v2378
        %2380 = vdwg.mxu0
        %2381 = vmatpush.msra.mxu0 %v2295
        %2382 = vmatpush.msra.mxu0 %v2287
        %2383 = vmatpush.msra.mxu0 %v2279
        %2384 = vmatpush.msra.mxu0 %v2271
        %2385 = vmatpush.msra.mxu0 %v2263
        %2386 = vmatpush.msra.mxu0 %v2255
        %2387 = vmatpush.msra.mxu0 %v2247
        %2388 = vmatpush.msra.mxu0 %v2239
        %2389 = vmatpush.msra.mxu0 %v2231
        %2390 = vmatpush.msra.mxu0 %v2223
        %2391 = vmatpush.msra.mxu0 %v2215
        %2392 = vmatpush.msra.mxu0 %v2207
        %2393 = vmatpush.msra.mxu0 %v2199
        %2394 = vmatpush.msra.mxu0 %v2191
        %2395 = vmatpush.msra.mxu0 %v2183
        %2396 = vmatpush.msra.mxu0 %v2175
        %2397 = vmatmul.f32.gmra.mxu0 %v2170
        %v2398 = vpop.f32.mrf.mxu0
        %v2399 = vadd.f32 %v2305, %v2398
        %2400 = vmatmul.f32.gmra.mxu0 %v2171
        %v2401 = vpop.f32.mrf.mxu0
        %v2402 = vadd.f32 %v2310, %v2401
        %2403 = vdwg.mxu0
        %2404 = vmatpush.msra.mxu0 %v2296
        %2405 = vmatpush.msra.mxu0 %v2288
        %2406 = vmatpush.msra.mxu0 %v2280
        %2407 = vmatpush.msra.mxu0 %v2272
        %2408 = vmatpush.msra.mxu0 %v2264
        %2409 = vmatpush.msra.mxu0 %v2256
        %2410 = vmatpush.msra.mxu0 %v2248
        %2411 = vmatpush.msra.mxu0 %v2240
        %2412 = vmatpush.msra.mxu0 %v2232
        %2413 = vmatpush.msra.mxu0 %v2224
        %2414 = vmatpush.msra.mxu0 %v2216
        %2415 = vmatpush.msra.mxu0 %v2208
        %2416 = vmatpush.msra.mxu0 %v2200
        %2417 = vmatpush.msra.mxu0 %v2192
        %2418 = vmatpush.msra.mxu0 %v2184
        %2419 = vmatpush.msra.mxu0 %v2176
        %2420 = vmatmul.f32.gmra.mxu0 %v2170
        %v2421 = vpop.f32.mrf.mxu0
        %v2422 = vadd.f32 %v2305, %v2421
        %2423 = vmatmul.f32.gmra.mxu0 %v2171
        %v2424 = vpop.f32.mrf.mxu0
        %v2425 = vadd.f32 %v2310, %v2424
        %2426 = vdwg.mxu0
        %2427 = vmatpush.msra.mxu0 %v2297
        %2428 = vmatpush.msra.mxu0 %v2289
        %2429 = vmatpush.msra.mxu0 %v2281
        %2430 = vmatpush.msra.mxu0 %v2273
        %2431 = vmatpush.msra.mxu0 %v2265
        %2432 = vmatpush.msra.mxu0 %v2257
        %2433 = vmatpush.msra.mxu0 %v2249
        %2434 = vmatpush.msra.mxu0 %v2241
        %2435 = vmatpush.msra.mxu0 %v2233
        %2436 = vmatpush.msra.mxu0 %v2225
        %2437 = vmatpush.msra.mxu0 %v2217
        %2438 = vmatpush.msra.mxu0 %v2209
        %2439 = vmatpush.msra.mxu0 %v2201
        %2440 = vmatpush.msra.mxu0 %v2193
        %2441 = vmatpush.msra.mxu0 %v2185
        %2442 = vmatpush.msra.mxu0 %v2177
        %2443 = vmatmul.f32.gmra.mxu0 %v2170
        %v2444 = vpop.f32.mrf.mxu0
        %v2445 = vadd.f32 %v2305, %v2444
        %2446 = vmatmul.f32.gmra.mxu0 %v2171
        %v2447 = vpop.f32.mrf.mxu0
        %v2448 = vadd.f32 %v2310, %v2447
        %2449 = vdwg.mxu0
        %2450 = vmatpush.msra.mxu0 %v2298
        %2451 = vmatpush.msra.mxu0 %v2290
        %2452 = vmatpush.msra.mxu0 %v2282
        %2453 = vmatpush.msra.mxu0 %v2274
        %2454 = vmatpush.msra.mxu0 %v2266
        %2455 = vmatpush.msra.mxu0 %v2258
        %2456 = vmatpush.msra.mxu0 %v2250
        %2457 = vmatpush.msra.mxu0 %v2242
        %2458 = vmatpush.msra.mxu0 %v2234
        %2459 = vmatpush.msra.mxu0 %v2226
        %2460 = vmatpush.msra.mxu0 %v2218
        %2461 = vmatpush.msra.mxu0 %v2210
        %2462 = vmatpush.msra.mxu0 %v2202
        %2463 = vmatpush.msra.mxu0 %v2194
        %2464 = vmatpush.msra.mxu0 %v2186
        %2465 = vmatpush.msra.mxu0 %v2178
        %2466 = vmatmul.f32.gmra.mxu0 %v2170
        %v2467 = vpop.f32.mrf.mxu0
        %v2468 = vadd.f32 %v2305, %v2467
        %2469 = vmatmul.f32.gmra.mxu0 %v2171
        %v2470 = vpop.f32.mrf.mxu0
        %v2471 = vadd.f32 %v2310, %v2470
        %2472 = vdwg.mxu0
        %2473 = vmatpush.msra.mxu0 %v2299
        %2474 = vmatpush.msra.mxu0 %v2291
        %2475 = vmatpush.msra.mxu0 %v2283
        %2476 = vmatpush.msra.mxu0 %v2275
        %2477 = vmatpush.msra.mxu0 %v2267
        %2478 = vmatpush.msra.mxu0 %v2259
        %2479 = vmatpush.msra.mxu0 %v2251
        %2480 = vmatpush.msra.mxu0 %v2243
        %2481 = vmatpush.msra.mxu0 %v2235
        %2482 = vmatpush.msra.mxu0 %v2227
        %2483 = vmatpush.msra.mxu0 %v2219
        %2484 = vmatpush.msra.mxu0 %v2211
        %2485 = vmatpush.msra.mxu0 %v2203
        %2486 = vmatpush.msra.mxu0 %v2195
        %2487 = vmatpush.msra.mxu0 %v2187
        %2488 = vmatpush.msra.mxu0 %v2179
        %2489 = vmatmul.f32.gmra.mxu0 %v2170
        %v2490 = vpop.f32.mrf.mxu0
        %v2491 = vadd.f32 %v2305, %v2490
        %2492 = vmatmul.f32.gmra.mxu0 %v2171
        %v2493 = vpop.f32.mrf.mxu0
        %v2494 = vadd.f32 %v2310, %v2493
        %2495 = vdwg.mxu0
        %v2496 = vmax.f32 %v2330, 0.0
        %v2497 = vmax.f32 %v2353, 0.0
        %v2498 = vmax.f32 %v2376, 0.0
        %v2499 = vmax.f32 %v2399, 0.0
        %v2500 = vmax.f32 %v2422, 0.0
        %v2501 = vmax.f32 %v2445, 0.0
        %v2502 = vmax.f32 %v2468, 0.0
        %v2503 = vmax.f32 %v2491, 0.0
        %v2504 = vmax.f32 %v2333, 0.0
        %v2505 = vmax.f32 %v2356, 0.0
        %v2506 = vmax.f32 %v2379, 0.0
        %v2507 = vmax.f32 %v2402, 0.0
        %v2508 = vmax.f32 %v2425, 0.0
        %v2509 = vmax.f32 %v2448, 0.0
        %v2510 = vmax.f32 %v2471, 0.0
        %v2511 = vmax.f32 %v2494, 0.0
        %v2512 = vadd.f32 %v2496, %v2504
        %v2513 = vadd.f32 %v2497, %v2505
        %v2514 = vadd.f32 %v2498, %v2506
        %v2515 = vadd.f32 %v2499, %v2507
        %v2516 = vadd.f32 %v2500, %v2508
        %v2517 = vadd.f32 %v2501, %v2509
        %v2518 = vadd.f32 %v2502, %v2510
        %v2519 = vadd.f32 %v2503, %v2511
        %v2520 = vld [vmem:[%s3] sm:$0xff]
        %v2521 = vld [vmem:[%s3 + $0x8] sm:$0xff]
        %v2522 = vld [vmem:[%s3 + $0x10] sm:$0xff]
        %v2523 = vld [vmem:[%s3 + $0x18] sm:$0xff]
        %v2524 = vld [vmem:[%s3 + $0x20] sm:$0xff]
        %v2525 = vld [vmem:[%s3 + $0x28] sm:$0xff]
        %v2526 = vld [vmem:[%s3 + $0x30] sm:$0xff]
        %v2527 = vld [vmem:[%s3 + $0x38] sm:$0xff]
        %v2528 = vld [vmem:[%s3 + $0x40] sm:$0xff]
        %v2529 = vld [vmem:[%s3 + $0x48] sm:$0xff]
        %v2530 = vld [vmem:[%s3 + $0x50] sm:$0xff]
        %v2531 = vld [vmem:[%s3 + $0x58] sm:$0xff]
        %v2532 = vld [vmem:[%s3 + $0x60] sm:$0xff]
        %v2533 = vld [vmem:[%s3 + $0x68] sm:$0xff]
        %v2534 = vld [vmem:[%s3 + $0x70] sm:$0xff]
        %v2535 = vld [vmem:[%s3 + $0x78] sm:$0xff]
        %v2536 = vld [vmem:[%s3 + $0x80] sm:$0xff]
        %v2537 = vld [vmem:[%s3 + $0x88] sm:$0xff]
        %v2538 = vld [vmem:[%s3 + $0x90] sm:$0xff]
        %v2539 = vld [vmem:[%s3 + $0x98] sm:$0xff]
        %v2540 = vld [vmem:[%s3 + $0xa0] sm:$0xff]
        %v2541 = vld [vmem:[%s3 + $0xa8] sm:$0xff]
        %v2542 = vld [vmem:[%s3 + $0xb0] sm:$0xff]
        %v2543 = vld [vmem:[%s3 + $0xb8] sm:$0xff]
        %v2544 = vld [vmem:[%s3 + $0xc0] sm:$0xff]
        %v2545 = vld [vmem:[%s3 + $0xc8] sm:$0xff]
        %v2546 = vld [vmem:[%s3 + $0xd0] sm:$0xff]
        %v2547 = vld [vmem:[%s3 + $0xd8] sm:$0xff]
        %v2548 = vld [vmem:[%s3 + $0xe0] sm:$0xff]
        %v2549 = vld [vmem:[%s3 + $0xe8] sm:$0xff]
        %v2550 = vld [vmem:[%s3 + $0xf0] sm:$0xff]
        %v2551 = vld [vmem:[%s3 + $0xf8] sm:$0xff]
        %v2552 = vld [vmem:[%s3 + $0x100] sm:$0xff]
        %v2553 = vld [vmem:[%s3 + $0x108] sm:$0xff]
        %v2554 = vld [vmem:[%s3 + $0x110] sm:$0xff]
        %v2555 = vld [vmem:[%s3 + $0x118] sm:$0xff]
        %v2556 = vld [vmem:[%s3 + $0x120] sm:$0xff]
        %v2557 = vld [vmem:[%s3 + $0x128] sm:$0xff]
        %v2558 = vld [vmem:[%s3 + $0x130] sm:$0xff]
        %v2559 = vld [vmem:[%s3 + $0x138] sm:$0xff]
        %v2560 = vld [vmem:[%s3 + $0x140] sm:$0xff]
        %v2561 = vld [vmem:[%s3 + $0x148] sm:$0xff]
        %v2562 = vld [vmem:[%s3 + $0x150] sm:$0xff]
        %v2563 = vld [vmem:[%s3 + $0x158] sm:$0xff]
        %v2564 = vld [vmem:[%s3 + $0x160] sm:$0xff]
        %v2565 = vld [vmem:[%s3 + $0x168] sm:$0xff]
        %v2566 = vld [vmem:[%s3 + $0x170] sm:$0xff]
        %v2567 = vld [vmem:[%s3 + $0x178] sm:$0xff]
        %v2568 = vld [vmem:[%s3 + $0x180] sm:$0xff]
        %v2569 = vld [vmem:[%s3 + $0x188] sm:$0xff]
        %v2570 = vld [vmem:[%s3 + $0x190] sm:$0xff]
        %v2571 = vld [vmem:[%s3 + $0x198] sm:$0xff]
        %v2572 = vld [vmem:[%s3 + $0x1a0] sm:$0xff]
        %v2573 = vld [vmem:[%s3 + $0x1a8] sm:$0xff]
        %v2574 = vld [vmem:[%s3 + $0x1b0] sm:$0xff]
        %v2575 = vld [vmem:[%s3 + $0x1b8] sm:$0xff]
        %v2576 = vld [vmem:[%s3 + $0x1c0] sm:$0xff]
        %v2577 = vld [vmem:[%s3 + $0x1c8] sm:$0xff]
        %v2578 = vld [vmem:[%s3 + $0x1d0] sm:$0xff]
        %v2579 = vld [vmem:[%s3 + $0x1d8] sm:$0xff]
        %v2580 = vld [vmem:[%s3 + $0x1e0] sm:$0xff]
        %v2581 = vld [vmem:[%s3 + $0x1e8] sm:$0xff]
        %v2582 = vld [vmem:[%s3 + $0x1f0] sm:$0xff]
        %v2583 = vld [vmem:[%s3 + $0x1f8] sm:$0xff]
        %v2584 = vld [vmem:[%s3 + $0x200] sm:$0xff]
        %v2585 = vld [vmem:[%s3 + $0x208] sm:$0xff]
        %v2586 = vld [vmem:[%s3 + $0x210] sm:$0xff]
        %v2587 = vld [vmem:[%s3 + $0x218] sm:$0xff]
        %v2588 = vld [vmem:[%s3 + $0x220] sm:$0xff]
        %v2589 = vld [vmem:[%s3 + $0x228] sm:$0xff]
        %v2590 = vld [vmem:[%s3 + $0x230] sm:$0xff]
        %v2591 = vld [vmem:[%s3 + $0x238] sm:$0xff]
        %v2592 = vld [vmem:[%s3 + $0x240] sm:$0xff]
        %v2593 = vld [vmem:[%s3 + $0x248] sm:$0xff]
        %v2594 = vld [vmem:[%s3 + $0x250] sm:$0xff]
        %v2595 = vld [vmem:[%s3 + $0x258] sm:$0xff]
        %v2596 = vld [vmem:[%s3 + $0x260] sm:$0xff]
        %v2597 = vld [vmem:[%s3 + $0x268] sm:$0xff]
        %v2598 = vld [vmem:[%s3 + $0x270] sm:$0xff]
        %v2599 = vld [vmem:[%s3 + $0x278] sm:$0xff]
        %v2600 = vld [vmem:[%s3 + $0x280] sm:$0xff]
        %v2601 = vld [vmem:[%s3 + $0x288] sm:$0xff]
        %v2602 = vld [vmem:[%s3 + $0x290] sm:$0xff]
        %v2603 = vld [vmem:[%s3 + $0x298] sm:$0xff]
        %v2604 = vld [vmem:[%s3 + $0x2a0] sm:$0xff]
        %v2605 = vld [vmem:[%s3 + $0x2a8] sm:$0xff]
        %v2606 = vld [vmem:[%s3 + $0x2b0] sm:$0xff]
        %v2607 = vld [vmem:[%s3 + $0x2b8] sm:$0xff]
        %v2608 = vld [vmem:[%s3 + $0x2c0] sm:$0xff]
        %v2609 = vld [vmem:[%s3 + $0x2c8] sm:$0xff]
        %v2610 = vld [vmem:[%s3 + $0x2d0] sm:$0xff]
        %v2611 = vld [vmem:[%s3 + $0x2d8] sm:$0xff]
        %v2612 = vld [vmem:[%s3 + $0x2e0] sm:$0xff]
        %v2613 = vld [vmem:[%s3 + $0x2e8] sm:$0xff]
        %v2614 = vld [vmem:[%s3 + $0x2f0] sm:$0xff]
        %v2615 = vld [vmem:[%s3 + $0x2f8] sm:$0xff]
        %v2616 = vld [vmem:[%s3 + $0x300] sm:$0xff]
        %v2617 = vld [vmem:[%s3 + $0x308] sm:$0xff]
        %v2618 = vld [vmem:[%s3 + $0x310] sm:$0xff]
        %v2619 = vld [vmem:[%s3 + $0x318] sm:$0xff]
        %v2620 = vld [vmem:[%s3 + $0x320] sm:$0xff]
        %v2621 = vld [vmem:[%s3 + $0x328] sm:$0xff]
        %v2622 = vld [vmem:[%s3 + $0x330] sm:$0xff]
        %v2623 = vld [vmem:[%s3 + $0x338] sm:$0xff]
        %v2624 = vld [vmem:[%s3 + $0x340] sm:$0xff]
        %v2625 = vld [vmem:[%s3 + $0x348] sm:$0xff]
        %v2626 = vld [vmem:[%s3 + $0x350] sm:$0xff]
        %v2627 = vld [vmem:[%s3 + $0x358] sm:$0xff]
        %v2628 = vld [vmem:[%s3 + $0x360] sm:$0xff]
        %v2629 = vld [vmem:[%s3 + $0x368] sm:$0xff]
        %v2630 = vld [vmem:[%s3 + $0x370] sm:$0xff]
        %v2631 = vld [vmem:[%s3 + $0x378] sm:$0xff]
        %v2632 = vld [vmem:[%s3 + $0x380] sm:$0xff]
        %v2633 = vld [vmem:[%s3 + $0x388] sm:$0xff]
        %v2634 = vld [vmem:[%s3 + $0x390] sm:$0xff]
        %v2635 = vld [vmem:[%s3 + $0x398] sm:$0xff]
        %v2636 = vld [vmem:[%s3 + $0x3a0] sm:$0xff]
        %v2637 = vld [vmem:[%s3 + $0x3a8] sm:$0xff]
        %v2638 = vld [vmem:[%s3 + $0x3b0] sm:$0xff]
        %v2639 = vld [vmem:[%s3 + $0x3b8] sm:$0xff]
        %v2640 = vld [vmem:[%s3 + $0x3c0] sm:$0xff]
        %v2641 = vld [vmem:[%s3 + $0x3c8] sm:$0xff]
        %v2642 = vld [vmem:[%s3 + $0x3d0] sm:$0xff]
        %v2643 = vld [vmem:[%s3 + $0x3d8] sm:$0xff]
        %v2644 = vld [vmem:[%s3 + $0x3e0] sm:$0xff]
        %v2645 = vld [vmem:[%s3 + $0x3e8] sm:$0xff]
        %v2646 = vld [vmem:[%s3 + $0x3f0] sm:$0xff]
        %v2647 = vld [vmem:[%s3 + $0x3f8] sm:$0xff]
        %2648 = vmatpush.msra.mxu0 %v2535
        %2649 = vmatpush.msra.mxu0 %v2534
        %2650 = vmatpush.msra.mxu0 %v2533
        %2651 = vmatpush.msra.mxu0 %v2532
        %2652 = vmatpush.msra.mxu0 %v2531
        %2653 = vmatpush.msra.mxu0 %v2530
        %2654 = vmatpush.msra.mxu0 %v2529
        %2655 = vmatpush.msra.mxu0 %v2528
        %2656 = vmatpush.msra.mxu0 %v2527
        %2657 = vmatpush.msra.mxu0 %v2526
        %2658 = vmatpush.msra.mxu0 %v2525
        %2659 = vmatpush.msra.mxu0 %v2524
        %2660 = vmatpush.msra.mxu0 %v2523
        %2661 = vmatpush.msra.mxu0 %v2522
        %2662 = vmatpush.msra.mxu0 %v2521
        %2663 = vmatpush.msra.mxu0 %v2520
        %2664 = vmatmul.f32.gmra.mxu0 %v2512
        %v2665 = vpop.f32.mrf.mxu0
        %v2666 = vadd.f32 0.0, %v2665
        %2667 = vdwg.mxu0
        %2668 = vmatpush.msra.mxu0 %v2551
        %2669 = vmatpush.msra.mxu0 %v2550
        %2670 = vmatpush.msra.mxu0 %v2549
        %2671 = vmatpush.msra.mxu0 %v2548
        %2672 = vmatpush.msra.mxu0 %v2547
        %2673 = vmatpush.msra.mxu0 %v2546
        %2674 = vmatpush.msra.mxu0 %v2545
        %2675 = vmatpush.msra.mxu0 %v2544
        %2676 = vmatpush.msra.mxu0 %v2543
        %2677 = vmatpush.msra.mxu0 %v2542
        %2678 = vmatpush.msra.mxu0 %v2541
        %2679 = vmatpush.msra.mxu0 %v2540
        %2680 = vmatpush.msra.mxu0 %v2539
        %2681 = vmatpush.msra.mxu0 %v2538
        %2682 = vmatpush.msra.mxu0 %v2537
        %2683 = vmatpush.msra.mxu0 %v2536
        %2684 = vmatmul.f32.gmra.mxu0 %v2513
        %v2685 = vpop.f32.mrf.mxu0
        %v2686 = vadd.f32 %v2666, %v2685
        %2687 = vdwg.mxu0
        %2688 = vmatpush.msra.mxu0 %v2567
        %2689 = vmatpush.msra.mxu0 %v2566
        %2690 = vmatpush.msra.mxu0 %v2565
        %2691 = vmatpush.msra.mxu0 %v2564
        %2692 = vmatpush.msra.mxu0 %v2563
        %2693 = vmatpush.msra.mxu0 %v2562
        %2694 = vmatpush.msra.mxu0 %v2561
        %2695 = vmatpush.msra.mxu0 %v2560
        %2696 = vmatpush.msra.mxu0 %v2559
        %2697 = vmatpush.msra.mxu0 %v2558
        %2698 = vmatpush.msra.mxu0 %v2557
        %2699 = vmatpush.msra.mxu0 %v2556
        %2700 = vmatpush.msra.mxu0 %v2555
        %2701 = vmatpush.msra.mxu0 %v2554
        %2702 = vmatpush.msra.mxu0 %v2553
        %2703 = vmatpush.msra.mxu0 %v2552
        %2704 = vmatmul.f32.gmra.mxu0 %v2514
        %v2705 = vpop.f32.mrf.mxu0
        %v2706 = vadd.f32 %v2686, %v2705
        %2707 = vdwg.mxu0
        %2708 = vmatpush.msra.mxu0 %v2583
        %2709 = vmatpush.msra.mxu0 %v2582
        %2710 = vmatpush.msra.mxu0 %v2581
        %2711 = vmatpush.msra.mxu0 %v2580
        %2712 = vmatpush.msra.mxu0 %v2579
        %2713 = vmatpush.msra.mxu0 %v2578
        %2714 = vmatpush.msra.mxu0 %v2577
        %2715 = vmatpush.msra.mxu0 %v2576
        %2716 = vmatpush.msra.mxu0 %v2575
        %2717 = vmatpush.msra.mxu0 %v2574
        %2718 = vmatpush.msra.mxu0 %v2573
        %2719 = vmatpush.msra.mxu0 %v2572
        %2720 = vmatpush.msra.mxu0 %v2571
        %2721 = vmatpush.msra.mxu0 %v2570
        %2722 = vmatpush.msra.mxu0 %v2569
        %2723 = vmatpush.msra.mxu0 %v2568
        %2724 = vmatmul.f32.gmra.mxu0 %v2515
        %v2725 = vpop.f32.mrf.mxu0
        %v2726 = vadd.f32 %v2706, %v2725
        %2727 = vdwg.mxu0
        %2728 = vmatpush.msra.mxu0 %v2599
        %2729 = vmatpush.msra.mxu0 %v2598
        %2730 = vmatpush.msra.mxu0 %v2597
        %2731 = vmatpush.msra.mxu0 %v2596
        %2732 = vmatpush.msra.mxu0 %v2595
        %2733 = vmatpush.msra.mxu0 %v2594
        %2734 = vmatpush.msra.mxu0 %v2593
        %2735 = vmatpush.msra.mxu0 %v2592
        %2736 = vmatpush.msra.mxu0 %v2591
        %2737 = vmatpush.msra.mxu0 %v2590
        %2738 = vmatpush.msra.mxu0 %v2589
        %2739 = vmatpush.msra.mxu0 %v2588
        %2740 = vmatpush.msra.mxu0 %v2587
        %2741 = vmatpush.msra.mxu0 %v2586
        %2742 = vmatpush.msra.mxu0 %v2585
        %2743 = vmatpush.msra.mxu0 %v2584
        %2744 = vmatmul.f32.gmra.mxu0 %v2516
        %v2745 = vpop.f32.mrf.mxu0
        %v2746 = vadd.f32 %v2726, %v2745
        %2747 = vdwg.mxu0
        %2748 = vmatpush.msra.mxu0 %v2615
        %2749 = vmatpush.msra.mxu0 %v2614
        %2750 = vmatpush.msra.mxu0 %v2613
        %2751 = vmatpush.msra.mxu0 %v2612
        %2752 = vmatpush.msra.mxu0 %v2611
        %2753 = vmatpush.msra.mxu0 %v2610
        %2754 = vmatpush.msra.mxu0 %v2609
        %2755 = vmatpush.msra.mxu0 %v2608
        %2756 = vmatpush.msra.mxu0 %v2607
        %2757 = vmatpush.msra.mxu0 %v2606
        %2758 = vmatpush.msra.mxu0 %v2605
        %2759 = vmatpush.msra.mxu0 %v2604
        %2760 = vmatpush.msra.mxu0 %v2603
        %2761 = vmatpush.msra.mxu0 %v2602
        %2762 = vmatpush.msra.mxu0 %v2601
        %2763 = vmatpush.msra.mxu0 %v2600
        %2764 = vmatmul.f32.gmra.mxu0 %v2517
        %v2765 = vpop.f32.mrf.mxu0
        %v2766 = vadd.f32 %v2746, %v2765
        %2767 = vdwg.mxu0
        %2768 = vmatpush.msra.mxu0 %v2631
        %2769 = vmatpush.msra.mxu0 %v2630
        %2770 = vmatpush.msra.mxu0 %v2629
        %2771 = vmatpush.msra.mxu0 %v2628
        %2772 = vmatpush.msra.mxu0 %v2627
        %2773 = vmatpush.msra.mxu0 %v2626
        %2774 = vmatpush.msra.mxu0 %v2625
        %2775 = vmatpush.msra.mxu0 %v2624
        %2776 = vmatpush.msra.mxu0 %v2623
        %2777 = vmatpush.msra.mxu0 %v2622
        %2778 = vmatpush.msra.mxu0 %v2621
        %2779 = vmatpush.msra.mxu0 %v2620
        %2780 = vmatpush.msra.mxu0 %v2619
        %2781 = vmatpush.msra.mxu0 %v2618
        %2782 = vmatpush.msra.mxu0 %v2617
        %2783 = vmatpush.msra.mxu0 %v2616
        %2784 = vmatmul.f32.gmra.mxu0 %v2518
        %v2785 = vpop.f32.mrf.mxu0
        %v2786 = vadd.f32 %v2766, %v2785
        %2787 = vdwg.mxu0
        %2788 = vmatpush.msra.mxu0 %v2647
        %2789 = vmatpush.msra.mxu0 %v2646
        %2790 = vmatpush.msra.mxu0 %v2645
        %2791 = vmatpush.msra.mxu0 %v2644
        %2792 = vmatpush.msra.mxu0 %v2643
        %2793 = vmatpush.msra.mxu0 %v2642
        %2794 = vmatpush.msra.mxu0 %v2641
        %2795 = vmatpush.msra.mxu0 %v2640
        %2796 = vmatpush.msra.mxu0 %v2639
        %2797 = vmatpush.msra.mxu0 %v2638
        %2798 = vmatpush.msra.mxu0 %v2637
        %2799 = vmatpush.msra.mxu0 %v2636
        %2800 = vmatpush.msra.mxu0 %v2635
        %2801 = vmatpush.msra.mxu0 %v2634
        %2802 = vmatpush.msra.mxu0 %v2633
        %2803 = vmatpush.msra.mxu0 %v2632
        %2804 = vmatmul.f32.gmra.mxu0 %v2519
        %v2805 = vpop.f32.mrf.mxu0
        %v2806 = vadd.f32 %v2786, %v2805
        %2807 = vdwg.mxu0
        %v2808 = vlaneseq
        %v2809 = vshrl.u32 %v2808, 7
        %vm2810 = vcmp.lt.s32.totalorder %v2809, 6
        %v2811 = vmul.u32 %v2809, 10
        %vm2812 = vcmp.ge.s32.totalorder %v301, %v2811
        %vm2813 = vmand %vm2810, %vm2812
        %v2814 = vadd.s32 %v2809, 1
        %v2815 = vmul.u32 %v2814, 10
        %vm2816 = vcmp.lt.s32.totalorder %v301, %v2815
        %vm2817 = vmand %vm2813, %vm2816
        %v2818 = vsel %vm2817, %v2806, 0.0
        %vm2819 = vcmask 523264
        %v2820 = vsel %vm2819, %v2818, 0.0
        %v2821 = vrot.slane %v2820, 4
        %v2822 = vadd.f32 %v2820, %v2821
        %v2823 = vrot.slane %v2822, 2
        %v2824 = vadd.f32 %v2822, %v2823
        %v2825 = vrot.slane %v2824, 1
        %v2826 = vadd.f32 %v2824, %v2825
        %v2827 = vld [vmem:[%s4] sm:$0x1]
        %v2828 = vadd.f32 %v2827, %v2826
        %2830 = vrot.lane.b32.xlu0 %v2826, 118
        %v2831 = vpop.permute.xlu0 %2830
        %v2833 = vadd.f32 %v2828, %v2831
        %2834 = vrot.lane.b32.xlu0 %v2826, 108
        %v2835 = vpop.permute.xlu0 %2834
        %v2837 = vadd.f32 %v2833, %v2835
        %2838 = vrot.lane.b32.xlu0 %v2826, 98
        %v2839 = vpop.permute.xlu0 %2838
        %v2841 = vadd.f32 %v2837, %v2839
        %2842 = vrot.lane.b32.xlu0 %v2826, 88
        %v2843 = vpop.permute.xlu0 %2842
        %v2845 = vadd.f32 %v2841, %v2843
        %2846 = vrot.lane.b32.xlu0 %v2826, 78
        %v2847 = vpop.permute.xlu0 %2846
        %v2849 = vadd.f32 %v2845, %v2847
        %vm2850 = vcmask 73728
        %2851 = vst.msk [vmem:[%s216] sm:$0x1] %vm2850, %v2849
        %s2852 = sand.u32 %s137, 1
        %s2853 = scalar_lea.sflag [#allocation4], %s2852
        %s2854 = sand.u32 %s137, 1
        %s2855 = scalar_lea.vmem [#allocation3], %s2854
        // Predicated region
        $region41: #{simple_net_forward.1} parent=39 // pred_check
          %p2856 = pneg %p147
        $region42: #{simple_net_forward.1} parent=39 // pred_check_branch
          %2858 = sbr.rel (%p2856) target = $region44
        $region43: #{simple_net_forward.1} parent=39 // pred_region
          %2860 = vsyncadd %s2853, 0
          %s2861 = scalar_lea.hbm %s5, %s19
          %s2863 = sshll.u32 %s2855, 4
          %s2864 = int_to_ptr.vmem [resolvable:$true] %s2863
          %s2865 = sshll.u32 %s2861, 4
          %s2866 = int_to_ptr.hbm [resolvable:$true] %s2865
          %2868 = dma.vmem_to_hbm [thread:$0]  %s2864, 16, %s2866, %s2853
        $region44: #{simple_net_forward.1} parent=39 // pred_fallthru
          _
      $region40: #{simple_net_forward.1} parent=5 // pred_fallthru
        _
      %p2869 = scmp.le.s32.totalorder 2, %s14
      // Predicated region
      $region45: #{simple_net_forward.1} parent=5 // pred_check
        %p2870 = pneg %p2869
      $region46: #{simple_net_forward.1} parent=5 // pred_check_branch
        %2872 = sbr.rel (%p2870) target = $region48
      $region47: #{simple_net_forward.1} parent=5 // pred_region
        %s2873 = ssub.s32 %s14, 2
        // Predicated region
        $region49: #{simple_net_forward.1} parent=47 // pred_check
          %p2874 = pneg %p153
        $region50: #{simple_net_forward.1} parent=47 // pred_check_branch
          %2876 = sbr.rel (%p2874) target = $region52
        $region51: #{simple_net_forward.1} parent=47 // pred_region
          %s2877 = sand.u32 %s138, 1
          %s2878 = scalar_lea.sflag [#allocation4], %s2877
          %s2879 = sand.u32 %s138, 1
          %s2880 = scalar_lea.vmem [#allocation3], %s2879
          %2882 = dma.done %s2878, 16
        $region52: #{simple_net_forward.1} parent=47 // pred_fallthru
          _
      $region48: #{simple_net_forward.1} parent=5 // pred_fallthru
        _
    $region6: #{simple_net_forward.1} parent=1 // loop_footer
      %s18 = sadd.s32 1, %s14
    $region7: #{simple_net_forward.1} parent=1 // loop_footer_branch
      %13 = sbr.rel target = $region3
    $region8: #{simple_net_forward.1} parent=1 // loop_exit
      _
    %2883 = vsyncpa [#allocation4], 1
    %s2884 = scalar_lea.sflag [#allocation4], 1
    %2885 = vsyncpa %s2884, 1

</llo_original>
